<compile_context>
chip_gen: v7x
topology: tpu7x:2x2x1
jax: 0.10.0
libtpu: 0.0.40
codegen_flags: <defaults>
</compile_context>

<pallas_src>
import numpy as np
import jax
import jax.numpy as jnp
from jax import lax
from jax.experimental import pallas as pl
from jax.experimental.pallas import tpu as pltpu


def _round_up(x, m):
    return ((x + m - 1) // m) * m


def _vmem_limit_bytes():
    """Generation-aware scoped-VMEM request (~half of physical VMEM)."""
    try:
        cap = int(pltpu.get_tpu_info().vmem_capacity_bytes)
        return max(32 * 1024 * 1024, min(cap // 2, 64 * 1024 * 1024))
    except Exception:
        return 32 * 1024 * 1024


def _pad_axis(x, axis, target):
    cur = x.shape[axis]
    if cur == target:
        return x
    widths = [(0, 0)] * x.ndim
    widths[axis] = (0, target - cur)
    return jnp.pad(x, widths)


# ----------------------------------------------------------------------------
# Fused decoder kernel
# ----------------------------------------------------------------------------
def _make_decoder_kernel(G1, c1):
    """G1 = kh*kw of upsample_1 (number of (i1,j1) groups),
    c1 = upsample_1 out-channels (lane width of one y1 column group)."""

    def kernel(x_ref, s4_ref, s3_ref,
               w0_ref, w1_ref, w2m_ref, w2s_ref, w3m_ref, w3s_ref,
               b0_ref, b1_ref, b2_ref, b3_ref, o_ref):
        f32, bf16 = jnp.float32, jnp.bfloat16

        # conv_7 (1x1 / im2col GEMM) + bias, re-fed to the MXU in bf16.
        a0 = jnp.dot(x_ref[...], w0_ref[...], preferred_element_type=f32)
        a0 = (a0 + b0_ref[...]).astype(bf16)

        # upsample_1; packed columns ordered (i1, j1, c1).
        y1 = jnp.dot(a0, w1_ref[...], preferred_element_type=f32)
        y1 = (y1 + b1_ref[...]).astype(bf16)

        w2m = w2m_ref[...]
        w2s = w2s_ref[...]
        b2 = b2_ref[...]

        # Head accumulator starts from the pool_3 skip path + bias so the
        # store epilogue is just add + cast + one packed store.
        acc = jnp.dot(s3_ref[...], w3s_ref[...], preferred_element_type=f32)
        acc = acc + b3_ref[...]

        # upsample_2 (main + pool_4 skip) and the upsample_3 main path, one
        # (i1, j1) group at a time: lane-aligned column slices and leading-
        # axis indexing only (no in-kernel row reshapes); the level-2 feature
        # map never leaves VMEM.
        for g1 in range(G1):
            y1_g = y1[:, g1 * c1:(g1 + 1) * c1]
            y2_g = jnp.dot(y1_g, w2m, preferred_element_type=f32)
            y2_g = y2_g + jnp.dot(s4_ref[g1], w2s, preferred_element_type=f32)
            y2_g = (y2_g + b2).astype(bf16)
            acc = acc + jnp.dot(y2_g, w3m_ref[g1], preferred_element_type=f32)

        o_ref[...] = acc.astype(o_ref.dtype)

    return kernel


def fused_table_decoder(a0_in, skip4, skip3,
                        w0r, w1r, w2m, w2s, w3m_bd, w3s_bd,
                        b0, b1t, b2t, b3t, *, tm=None):
    """Single pallas_call running the whole decoder, grid over output rows.

    a0_in : (M, K0)            bf16  conv7 im2col rows (row = (b, h0, w0))
    skip4 : (G1, M, C4p)       bf16  pool_4 skip, group-major
    skip3 : (M, S3p)           bf16  pool_3 skip, cols (i1, j1, i2, j2, c)
    w0r   : (K0, C0)           bf16  conv7 weights
    w1r   : (C0, G1*c1)        bf16  up1 weights, cols (i1, j1, c1)
    w2m   : (c1, G2*c2)        bf16  up2 main weights, cols (i2, j2, c2)
    w2s   : (C4p, G2*c2)       bf16  up2 skip weights
    w3m_bd: (G1, G2*c2, Nout)  bf16  up3 main weights (block-diag, placed)
    w3s_bd: (S3p, Nout)        bf16  up3 skip weights (block-diag)
    b*    :                    f32   biases tiled to packed column order
    Returns (M, Nout) f32 head, cols (i1, j1, i2, j2, i3, j3, cout).
    """
    M, K0 = a0_in.shape
    G1, M4, C4p = skip4.shape
    M3, S3p = skip3.shape
    assert M4 == M and M3 == M
    c1, n2 = w2m.shape
    Nout = w3s_bd.shape[1]
    assert w3m_bd.shape == (G1, n2, Nout)

    # Row tile: multiple of 16 (bf16 sublane packing), divides the 16-rounded
    # row count (no large pad copies), >= 2 tiles when possible so both v7x
    # TensorCores get a share of the "parallel" grid.
    M16 = _round_up(M, 16)
    if tm is None:
        cap = min(512, M16)
        if M16 >= 32:
            cap = min(cap, M16 // 2)
        tm = 16
        for t in range(16, cap + 1, 16):
            if M16 % t == 0:
                tm = t
    Mp = _round_up(M16, tm)
    grid = (Mp // tm,)

    a0_p = _pad_axis(a0_in, 0, Mp)
    s4_p = _pad_axis(skip4, 1, Mp)
    s3_p = _pad_axis(skip3, 0, Mp)

    bias0 = b0.reshape(1, -1).astype(jnp.float32)
    bias1 = b1t.reshape(1, -1).astype(jnp.float32)
    bias2 = b2t.reshape(1, -1).astype(jnp.float32)
    bias3 = b3t.reshape(1, -1).astype(jnp.float32)

    n0 = w0r.shape[1]
    n1 = w1r.shape[1]
    flops = 2 * Mp * (K0 * n0 + n0 * n1 + G1 * (c1 + C4p) * n2
                      + G1 * n2 * Nout + S3p * Nout)
    w_bytes = 2 * sum(int(np.prod(w.shape))
                      for w in (w0r, w1r, w2m, w2s, w3m_bd, w3s_bd))
    bytes_accessed = int(2 * (a0_p.size + s4_p.size + s3_p.size)
                         + 4 * (bias0.size + bias1.size + bias2.size + bias3.size)
                         + 4 * Mp * Nout + w_bytes)

    out = pl.pallas_call(
        _make_decoder_kernel(G1, c1),
        out_shape=jax.ShapeDtypeStruct((Mp, Nout), jnp.float32),
        grid=grid,
        in_specs=[
            pl.BlockSpec((tm, K0), lambda i: (i, 0)),           # conv7 rows
            pl.BlockSpec((G1, tm, C4p), lambda i: (0, i, 0)),   # pool_4 skip
            pl.BlockSpec((tm, S3p), lambda i: (i, 0)),          # pool_3 skip
            pl.BlockSpec(w0r.shape, lambda i: (0, 0)),
            pl.BlockSpec(w1r.shape, lambda i: (0, 0)),
            pl.BlockSpec(w2m.shape, lambda i: (0, 0)),
            pl.BlockSpec(w2s.shape, lambda i: (0, 0)),
            pl.BlockSpec(w3m_bd.shape, lambda i: (0, 0, 0)),
            pl.BlockSpec(w3s_bd.shape, lambda i: (0, 0)),
            pl.BlockSpec(bias0.shape, lambda i: (0, 0)),
            pl.BlockSpec(bias1.shape, lambda i: (0, 0)),
            pl.BlockSpec(bias2.shape, lambda i: (0, 0)),
            pl.BlockSpec(bias3.shape, lambda i: (0, 0)),
        ],
        out_specs=pl.BlockSpec((tm, Nout), lambda i: (i, 0)),
        compiler_params=pltpu.CompilerParams(
            dimension_semantics=("parallel",),
            vmem_limit_bytes=_vmem_limit_bytes(),
        ),
        cost_estimate=pl.CostEstimate(flops=int(flops), transcendentals=0,
                                      bytes_accessed=bytes_accessed),
    )(a0_p, s4_p, s3_p, w0r, w1r, w2m, w2s, w3m_bd, w3s_bd,
      bias0, bias1, bias2, bias3)

    return out[:M] if Mp != M else out


# ----------------------------------------------------------------------------
# Wrapper-side layout plumbing (all tiny / XLA)
# ----------------------------------------------------------------------------
def _conv_im2col(x_nchw, kernel, stride):
    """VALID conv patches; rows ordered (b, ho, wo), cols (i, j, c)."""
    kh, kw = kernel
    sh, sw = stride
    B, C, H, W = x_nchw.shape
    Ho = (H - kh) // sh + 1
    Wo = (W - kw) // sw + 1
    xh = jnp.transpose(x_nchw, (0, 2, 3, 1))
    if (kh, kw) == (1, 1):
        xs = xh[:, ::sh, ::sw, :][:, :Ho, :Wo, :]
        return xs.reshape(B * Ho * Wo, C), Ho, Wo
    # TODO(synk): large-kernel conv7 would be better streamed tap-by-tap
    # through the grid instead of materializing kh*kw*C patch columns.
    cols = []
    for i in range(kh):
        for j in range(kw):
            cols.append(xh[:, i:i + sh * (Ho - 1) + 1:sh,
                           j:j + sw * (Wo - 1) + 1:sw, :])
    patches = jnp.concatenate(cols, axis=-1)
    return patches.reshape(B * Ho * Wo, kh * kw * C), Ho, Wo


def _pool4_groups(p, base_hw, s1):
    """(B, C, H0*s1h, W0*s1w) -> (s1h*s1w, B*H0*W0, C)."""
    B, C, _, _ = p.shape
    H0, W0 = base_hw
    s1h, s1w = s1
    x = p.reshape(B, C, H0, s1h, W0, s1w)
    x = jnp.transpose(x, (3, 5, 0, 2, 4, 1))
    return x.reshape(s1h * s1w, B * H0 * W0, C)


def _pool3_rows(p, base_hw, s1, s2):
    """(B, C, H0*s1h*s2h, W0*s1w*s2w) -> (B*H0*W0, s1h*s1w*s2h*s2w*C)."""
    B, C, _, _ = p.shape
    H0, W0 = base_hw
    s1h, s1w = s1
    s2h, s2w = s2
    x = p.reshape(B, C, H0, s1h, s2h, W0, s1w, s2w)
    x = jnp.transpose(x, (0, 2, 5, 3, 6, 4, 7, 1))   # (B,H0,W0,i1,j1,i2,j2,C)
    return x.reshape(B * H0 * W0, s1h * s1w * s2h * s2w * C)


def _convt_weight_packed(w):
    """ConvTranspose2d weight (Cin, Cout, kh, kw) -> (Cin, kh*kw*Cout)."""
    cin, cout, kh, kw = w.shape
    return jnp.transpose(w, (0, 2, 3, 1)).reshape(cin, kh * kw * cout)


def _unpack_head(y, batch, base_hw, factors, cout):
    """(M, G1*G2*G3*cout) packed head -> NCHW (B, cout, Hout, Wout)."""
    H0, W0 = base_hw
    (s1h, s1w), (s2h, s2w), (s3h, s3w) = factors
    x = y.reshape(batch, H0, W0, s1h, s1w, s2h, s2w, s3h, s3w, cout)
    x = jnp.transpose(x, (0, 9, 1, 3, 5, 7, 2, 4, 6, 8))
    return x.reshape(batch, cout, H0 * s1h * s2h * s3h, W0 * s1w * s2w * s3w)


# ----------------------------------------------------------------------------
# TableDecoder forward (matches the PyTorch module semantics, NCHW interface)
# ----------------------------------------------------------------------------
def table_decoder_forward(params, x, pool_3_out, pool_4_out, kernels, strides):
    B = x.shape[0]
    for t in (1, 2, 3):
        assert tuple(kernels[t]) == tuple(strides[t]), (
            "fused decoder assumes kernel == stride for the transposed convs")
    # TODO(synk): kernel > stride (overlapping) transposed convs would need a
    # scatter-add epilogue; not required for the TableNet configuration.

    s1, s2, s3 = tuple(strides[1]), tuple(strides[2]), tuple(strides[3])
    G1, G2, G3 = s1[0] * s1[1], s2[0] * s2[1], s3[0] * s3[1]
    bf16 = jnp.bfloat16

    # conv_7 patches (rows = (b, h0, w0)).
    a0_in, H0, W0 = _conv_im2col(x, tuple(kernels[0]), tuple(strides[0]))

    # Weights reshaped to the packed-GEMM layouts (all small, trace-time).
    w0 = params["conv7_w"]
    c0 = w0.shape[0]
    w0r = jnp.transpose(w0, (2, 3, 1, 0)).reshape(-1, c0)

    w1 = params["up1_w"]
    c1 = w1.shape[1]
    w1r = _convt_weight_packed(w1)                        # (c0, G1*c1)

    w2 = params["up2_w"]
    c2 = w2.shape[1]
    w2m = _convt_weight_packed(w2[:c1])                   # (c1, G2*c2)
    w2s = _convt_weight_packed(w2[c1:])                   # (C4, G2*c2)
    c4 = w2.shape[0] - c1

    w3 = params["up3_w"]
    c3out = w3.shape[1]
    w3m = _convt_weight_packed(w3[:c2])                   # (c2, G3*c3out)
    w3s = _convt_weight_packed(w3[c2:])                   # (C3, G3*c3out)
    n2 = G2 * c2
    nout = G1 * G2 * G3 * c3out
    eye12 = jnp.eye(G1 * G2, dtype=w3m.dtype)
    w3m_bd = jnp.kron(eye12, w3m).reshape(G1, n2, nout)   # placed per (i1,j1)
    w3s_bd = jnp.kron(eye12, w3s)                         # (G1*G2*C3, nout)

    # Skip tensors rearranged into the packed row / column order.
    skip4 = _pool4_groups(pool_4_out, (H0, W0), s1)       # (G1, M, C4)
    skip3 = _pool3_rows(pool_3_out, (H0, W0), s1, s2)     # (M, G1*G2*C3)

    # Pad skip contraction dims to 16 (bf16 sublane packing).
    c4p = _round_up(max(c4, 1), 16)
    skip4 = _pad_axis(skip4, 2, c4p)
    w2s = _pad_axis(w2s, 0, c4p)
    s3p = _round_up(max(skip3.shape[1], 1), 16)
    skip3 = _pad_axis(skip3, 1, s3p)
    w3s_bd = _pad_axis(w3s_bd, 0, s3p)

    # Biases tiled to the packed column order.
    b0 = params["conv7_b"]
    b1t = jnp.tile(params["up1_b"], G1)
    b2t = jnp.tile(params["up2_b"], G2)
    b3t = jnp.tile(params["up3_b"], G1 * G2 * G3)

    head = fused_table_decoder(
        a0_in.astype(bf16), skip4.astype(bf16), skip3.astype(bf16),
        w0r.astype(bf16), w1r.astype(bf16), w2m.astype(bf16),
        w2s.astype(bf16), w3m_bd.astype(bf16), w3s_bd.astype(bf16),
        b0, b1t, b2t, b3t)

    return _unpack_head(head, B, (H0, W0), (s1, s2, s3), c3out)


# ----------------------------------------------------------------------------
# Pure-JAX f32 reference (independent formulation) for correctness checking
# ----------------------------------------------------------------------------
def _convt_ref_nchw(x, w, b, kernel):
    # kernel == stride: y[b,co,h*kh+i,w*kw+j] = sum_ci x[b,ci,h,w]*w[ci,co,i,j] + b
    y = jnp.einsum("bchw,cdij->bdhiwj", x, w)
    B, Co, H, kh, W, kw = y.shape
    return y.reshape(B, Co, H * kh, W * kw) + b[None, :, None, None]


def table_decoder_ref(params, x, pool_3_out, pool_4_out, kernels, strides):
    out = lax.conv_general_dilated(
        x, params["conv7_w"], strides[0], "VALID",
        dimension_numbers=("NCHW", "OIHW", "NCHW"),
    ) + params["conv7_b"][None, :, None, None]
    out = _convt_ref_nchw(out, params["up1_w"], params["up1_b"], kernels[1])
    out = jnp.concatenate([out, pool_4_out], axis=1)
    out = _convt_ref_nchw(out, params["up2_w"], params["up2_b"], kernels[2])
    out = jnp.concatenate([out, pool_3_out], axis=1)
    out = _convt_ref_nchw(out, params["up3_w"], params["up3_b"], kernels[3])
    return out


# ----------------------------------------------------------------------------
if __name__ == "__main__":
    channels = (8, 4)                                   # pool_4 / pool_3 channels
    kernels = ((1, 1), (2, 2), (2, 2), (2, 2))
    strides = ((1, 1), (2, 2), (2, 2), (2, 2))

    B, H, W = 2, 4, 4

    key = jax.random.PRNGKey(0)
    ks = jax.random.split(key, 12)

    def init(k, shape):
        return jax.random.normal(k, shape, jnp.float32) * 0.05

    params = {
        "conv7_w": init(ks[0], (256, 256, *kernels[0])),        # Conv2d (Cout,Cin,kh,kw)
        "conv7_b": init(ks[1], (256,)),
        "up1_w": init(ks[2], (256, 128, *kernels[1])),          # ConvT (Cin,Cout,kh,kw)
        "up1_b": init(ks[3], (128,)),
        "up2_w": init(ks[4], (128 + channels[0], 256, *kernels[2])),
        "up2_b": init(ks[5], (256,)),
        "up3_w": init(ks[6], (256 + channels[1], 1, *kernels[3])),
        "up3_b": init(ks[7], (1,)),
    }

    x = init(ks[8], (B, 256, H, W))                             # NCHW input
    pool_4_out = init(ks[9], (B, channels[0], H * 2, W * 2))    # matches upsample_1 out
    pool_3_out = init(ks[10], (B, channels[1], H * 4, W * 4))   # matches upsample_2 out

    fwd = jax.jit(table_decoder_forward, static_argnames=("kernels", "strides"))
    out = fwd(params, x, pool_3_out, pool_4_out, kernels=kernels, strides=strides)
    out = jax.block_until_ready(out)

    ref = jax.block_until_ready(
        table_decoder_ref(params, x, pool_3_out, pool_4_out, kernels, strides))

    assert out.shape == (B, 1, H * 8, W * 8), out.shape
    # bf16 MXU operands with f32 accumulation across the fused chain.
    np.testing.assert_allclose(np.asarray(out, dtype=np.float32),
                               np.asarray(ref, dtype=np.float32),
                               atol=5e-3, rtol=5e-2)

    print("KERNEL_OK")
</pallas_src>

<mosaic_0001>
module attributes {stable_mosaic.version = 11 : i64} {
  func.func @kernel(%arg0: i32, %arg1: memref<16x256xbf16, #tpu.memory_space<vmem>>, %arg2: memref<4x16x16xbf16, #tpu.memory_space<vmem>>, %arg3: memref<16x64xbf16, #tpu.memory_space<vmem>>, %arg4: memref<256x256xbf16, #tpu.memory_space<vmem>>, %arg5: memref<256x512xbf16, #tpu.memory_space<vmem>>, %arg6: memref<128x1024xbf16, #tpu.memory_space<vmem>>, %arg7: memref<16x1024xbf16, #tpu.memory_space<vmem>>, %arg8: memref<4x1024x64xbf16, #tpu.memory_space<vmem>>, %arg9: memref<64x64xbf16, #tpu.memory_space<vmem>>, %arg10: memref<1x256xf32, #tpu.memory_space<vmem>>, %arg11: memref<1x512xf32, #tpu.memory_space<vmem>>, %arg12: memref<1x1024xf32, #tpu.memory_space<vmem>>, %arg13: memref<1x64xf32, #tpu.memory_space<vmem>>, %arg14: memref<16x64xf32, #tpu.memory_space<vmem>>) attributes {dimension_semantics = [#tpu.dimension_semantics<parallel>], iteration_bounds = array<i64: 2>, scalar_prefetch = 0 : i64, scratch_operands = 0 : i64, tpu.core_type = #tpu.core_type<tc>, window_params = [{transform_indices = @transform_0, window_bounds = array<i64: 16, 256>}, {transform_indices = @transform_1, window_bounds = array<i64: 4, 16, 16>}, {transform_indices = @transform_2, window_bounds = array<i64: 16, 64>}, {pipeline_mode = #tpu.pipeline_mode<synchronous>, transform_indices = @transform_3, window_bounds = array<i64: 256, 256>}, {pipeline_mode = #tpu.pipeline_mode<synchronous>, transform_indices = @transform_4, window_bounds = array<i64: 256, 512>}, {pipeline_mode = #tpu.pipeline_mode<synchronous>, transform_indices = @transform_5, window_bounds = array<i64: 128, 1024>}, {pipeline_mode = #tpu.pipeline_mode<synchronous>, transform_indices = @transform_6, window_bounds = array<i64: 16, 1024>}, {pipeline_mode = #tpu.pipeline_mode<synchronous>, transform_indices = @transform_7, window_bounds = array<i64: 4, 1024, 64>}, {pipeline_mode = #tpu.pipeline_mode<synchronous>, transform_indices = @transform_8, window_bounds = array<i64: 64, 64>}, {pipeline_mode = #tpu.pipeline_mode<synchronous>, transform_indices = @transform_9, window_bounds = array<i64: 1, 256>}, {pipeline_mode = #tpu.pipeline_mode<synchronous>, transform_indices = @transform_10, window_bounds = array<i64: 1, 512>}, {pipeline_mode = #tpu.pipeline_mode<synchronous>, transform_indices = @transform_11, window_bounds = array<i64: 1, 1024>}, {pipeline_mode = #tpu.pipeline_mode<synchronous>, transform_indices = @transform_12, window_bounds = array<i64: 1, 64>}, {transform_indices = @transform_13, window_bounds = array<i64: 16, 64>}]} {
    %c0 = arith.constant 0 : index
    %c0_0 = arith.constant 0 : index
    %0 = vector.load %arg1[%c0, %c0_0] : memref<16x256xbf16, #tpu.memory_space<vmem>>, vector<16x256xbf16>
    %c0_1 = arith.constant 0 : index
    %c0_2 = arith.constant 0 : index
    %1 = vector.load %arg4[%c0_1, %c0_2] : memref<256x256xbf16, #tpu.memory_space<vmem>>, vector<256x256xbf16>
    %cst = arith.constant dense<0.000000e+00> : vector<16x256xf32>
    %2 = tpu.matmul %0, %1, %cst {dimension_numbers = #tpu.dot_dimension_numbers<[1], [0], [0], [1], [0, 0, 1, 1], [], []>} : vector<16x256xbf16>, vector<256x256xbf16>, vector<16x256xf32> -> vector<16x256xf32>
    %c0_3 = arith.constant 0 : index
    %c0_4 = arith.constant 0 : index
    %3 = vector.load %arg10[%c0_3, %c0_4] : memref<1x256xf32, #tpu.memory_space<vmem>>, vector<1x256xf32>
    %4 = vector.broadcast %3 : vector<1x256xf32> to vector<16x256xf32>
    %5 = arith.addf %2, %4 : vector<16x256xf32>
    %6 = arith.truncf %5 : vector<16x256xf32> to vector<16x256xbf16>
    %c0_5 = arith.constant 0 : index
    %c0_6 = arith.constant 0 : index
    %7 = vector.load %arg5[%c0_5, %c0_6] : memref<256x512xbf16, #tpu.memory_space<vmem>>, vector<256x512xbf16>
    %cst_7 = arith.constant dense<0.000000e+00> : vector<16x512xf32>
    %8 = tpu.matmul %6, %7, %cst_7 {dimension_numbers = #tpu.dot_dimension_numbers<[1], [0], [0], [1], [0, 0, 1, 1], [], []>} : vector<16x256xbf16>, vector<256x512xbf16>, vector<16x512xf32> -> vector<16x512xf32>
    %c0_8 = arith.constant 0 : index
    %c0_9 = arith.constant 0 : index
    %9 = vector.load %arg11[%c0_8, %c0_9] : memref<1x512xf32, #tpu.memory_space<vmem>>, vector<1x512xf32>
    %10 = vector.broadcast %9 : vector<1x512xf32> to vector<16x512xf32>
    %11 = arith.addf %8, %10 : vector<16x512xf32>
    %12 = arith.truncf %11 : vector<16x512xf32> to vector<16x512xbf16>
    %c0_10 = arith.constant 0 : index
    %c0_11 = arith.constant 0 : index
    %13 = vector.load %arg6[%c0_10, %c0_11] : memref<128x1024xbf16, #tpu.memory_space<vmem>>, vector<128x1024xbf16>
    %c0_12 = arith.constant 0 : index
    %c0_13 = arith.constant 0 : index
    %14 = vector.load %arg7[%c0_12, %c0_13] : memref<16x1024xbf16, #tpu.memory_space<vmem>>, vector<16x1024xbf16>
    %c0_14 = arith.constant 0 : index
    %c0_15 = arith.constant 0 : index
    %15 = vector.load %arg12[%c0_14, %c0_15] : memref<1x1024xf32, #tpu.memory_space<vmem>>, vector<1x1024xf32>
    %c0_16 = arith.constant 0 : index
    %c0_17 = arith.constant 0 : index
    %16 = vector.load %arg3[%c0_16, %c0_17] : memref<16x64xbf16, #tpu.memory_space<vmem>>, vector<16x64xbf16>
    %c0_18 = arith.constant 0 : index
    %c0_19 = arith.constant 0 : index
    %17 = vector.load %arg9[%c0_18, %c0_19] : memref<64x64xbf16, #tpu.memory_space<vmem>>, vector<64x64xbf16>
    %cst_20 = arith.constant dense<0.000000e+00> : vector<16x64xf32>
    %18 = tpu.matmul %16, %17, %cst_20 {dimension_numbers = #tpu.dot_dimension_numbers<[1], [0], [0], [1], [0, 0, 1, 1], [], []>} : vector<16x64xbf16>, vector<64x64xbf16>, vector<16x64xf32> -> vector<16x64xf32>
    %c0_21 = arith.constant 0 : index
    %c0_22 = arith.constant 0 : index
    %19 = vector.load %arg13[%c0_21, %c0_22] : memref<1x64xf32, #tpu.memory_space<vmem>>, vector<1x64xf32>
    %20 = vector.broadcast %19 : vector<1x64xf32> to vector<16x64xf32>
    %21 = arith.addf %18, %20 : vector<16x64xf32>
    %22 = vector.extract_strided_slice %12 {offsets = [0, 0], sizes = [16, 128], strides = [1, 1]} : vector<16x512xbf16> to vector<16x128xbf16>
    %cst_23 = arith.constant dense<0.000000e+00> : vector<16x1024xf32>
    %23 = tpu.matmul %22, %13, %cst_23 {dimension_numbers = #tpu.dot_dimension_numbers<[1], [0], [0], [1], [0, 0, 1, 1], [], []>} : vector<16x128xbf16>, vector<128x1024xbf16>, vector<16x1024xf32> -> vector<16x1024xf32>
    %c0_24 = arith.constant 0 : index
    %c0_25 = arith.constant 0 : index
    %c0_26 = arith.constant 0 : index
    %24 = vector.load %arg2[%c0_24, %c0_25, %c0_26] : memref<4x16x16xbf16, #tpu.memory_space<vmem>>, vector<1x16x16xbf16>
    %25 = vector.shape_cast %24 : vector<1x16x16xbf16> to vector<16x16xbf16>
    %cst_27 = arith.constant dense<0.000000e+00> : vector<16x1024xf32>
    %26 = tpu.matmul %25, %14, %cst_27 {dimension_numbers = #tpu.dot_dimension_numbers<[1], [0], [0], [1], [0, 0, 1, 1], [], []>} : vector<16x16xbf16>, vector<16x1024xbf16>, vector<16x1024xf32> -> vector<16x1024xf32>
    %27 = arith.addf %23, %26 : vector<16x1024xf32>
    %28 = vector.broadcast %15 : vector<1x1024xf32> to vector<16x1024xf32>
    %29 = arith.addf %27, %28 : vector<16x1024xf32>
    %30 = arith.truncf %29 : vector<16x1024xf32> to vector<16x1024xbf16>
    %c0_28 = arith.constant 0 : index
    %c0_29 = arith.constant 0 : index
    %c0_30 = arith.constant 0 : index
    %31 = vector.load %arg8[%c0_28, %c0_29, %c0_30] : memref<4x1024x64xbf16, #tpu.memory_space<vmem>>, vector<1x1024x64xbf16>
    %32 = vector.shape_cast %31 : vector<1x1024x64xbf16> to vector<1024x64xbf16>
    %cst_31 = arith.constant dense<0.000000e+00> : vector<16x64xf32>
    %33 = tpu.matmul %30, %32, %cst_31 {dimension_numbers = #tpu.dot_dimension_numbers<[1], [0], [0], [1], [0, 0, 1, 1], [], []>} : vector<16x1024xbf16>, vector<1024x64xbf16>, vector<16x64xf32> -> vector<16x64xf32>
    %34 = arith.addf %21, %33 : vector<16x64xf32>
    %35 = vector.extract_strided_slice %12 {offsets = [0, 128], sizes = [16, 128], strides = [1, 1]} : vector<16x512xbf16> to vector<16x128xbf16>
    %cst_32 = arith.constant dense<0.000000e+00> : vector<16x1024xf32>
    %36 = tpu.matmul %35, %13, %cst_32 {dimension_numbers = #tpu.dot_dimension_numbers<[1], [0], [0], [1], [0, 0, 1, 1], [], []>} : vector<16x128xbf16>, vector<128x1024xbf16>, vector<16x1024xf32> -> vector<16x1024xf32>
    %c1 = arith.constant 1 : index
    %c0_33 = arith.constant 0 : index
    %c0_34 = arith.constant 0 : index
    %37 = vector.load %arg2[%c1, %c0_33, %c0_34] : memref<4x16x16xbf16, #tpu.memory_space<vmem>>, vector<1x16x16xbf16>
    %38 = vector.shape_cast %37 : vector<1x16x16xbf16> to vector<16x16xbf16>
    %cst_35 = arith.constant dense<0.000000e+00> : vector<16x1024xf32>
    %39 = tpu.matmul %38, %14, %cst_35 {dimension_numbers = #tpu.dot_dimension_numbers<[1], [0], [0], [1], [0, 0, 1, 1], [], []>} : vector<16x16xbf16>, vector<16x1024xbf16>, vector<16x1024xf32> -> vector<16x1024xf32>
    %40 = arith.addf %36, %39 : vector<16x1024xf32>
    %41 = vector.broadcast %15 : vector<1x1024xf32> to vector<16x1024xf32>
    %42 = arith.addf %40, %41 : vector<16x1024xf32>
    %43 = arith.truncf %42 : vector<16x1024xf32> to vector<16x1024xbf16>
    %c1_36 = arith.constant 1 : index
    %c0_37 = arith.constant 0 : index
    %c0_38 = arith.constant 0 : index
    %44 = vector.load %arg8[%c1_36, %c0_37, %c0_38] : memref<4x1024x64xbf16, #tpu.memory_space<vmem>>, vector<1x1024x64xbf16>
    %45 = vector.shape_cast %44 : vector<1x1024x64xbf16> to vector<1024x64xbf16>
    %cst_39 = arith.constant dense<0.000000e+00> : vector<16x64xf32>
    %46 = tpu.matmul %43, %45, %cst_39 {dimension_numbers = #tpu.dot_dimension_numbers<[1], [0], [0], [1], [0, 0, 1, 1], [], []>} : vector<16x1024xbf16>, vector<1024x64xbf16>, vector<16x64xf32> -> vector<16x64xf32>
    %47 = arith.addf %34, %46 : vector<16x64xf32>
    %48 = vector.extract_strided_slice %12 {offsets = [0, 256], sizes = [16, 128], strides = [1, 1]} : vector<16x512xbf16> to vector<16x128xbf16>
    %cst_40 = arith.constant dense<0.000000e+00> : vector<16x1024xf32>
    %49 = tpu.matmul %48, %13, %cst_40 {dimension_numbers = #tpu.dot_dimension_numbers<[1], [0], [0], [1], [0, 0, 1, 1], [], []>} : vector<16x128xbf16>, vector<128x1024xbf16>, vector<16x1024xf32> -> vector<16x1024xf32>
    %c2 = arith.constant 2 : index
    %c0_41 = arith.constant 0 : index
    %c0_42 = arith.constant 0 : index
    %50 = vector.load %arg2[%c2, %c0_41, %c0_42] : memref<4x16x16xbf16, #tpu.memory_space<vmem>>, vector<1x16x16xbf16>
    %51 = vector.shape_cast %50 : vector<1x16x16xbf16> to vector<16x16xbf16>
    %cst_43 = arith.constant dense<0.000000e+00> : vector<16x1024xf32>
    %52 = tpu.matmul %51, %14, %cst_43 {dimension_numbers = #tpu.dot_dimension_numbers<[1], [0], [0], [1], [0, 0, 1, 1], [], []>} : vector<16x16xbf16>, vector<16x1024xbf16>, vector<16x1024xf32> -> vector<16x1024xf32>
    %53 = arith.addf %49, %52 : vector<16x1024xf32>
    %54 = vector.broadcast %15 : vector<1x1024xf32> to vector<16x1024xf32>
    %55 = arith.addf %53, %54 : vector<16x1024xf32>
    %56 = arith.truncf %55 : vector<16x1024xf32> to vector<16x1024xbf16>
    %c2_44 = arith.constant 2 : index
    %c0_45 = arith.constant 0 : index
    %c0_46 = arith.constant 0 : index
    %57 = vector.load %arg8[%c2_44, %c0_45, %c0_46] : memref<4x1024x64xbf16, #tpu.memory_space<vmem>>, vector<1x1024x64xbf16>
    %58 = vector.shape_cast %57 : vector<1x1024x64xbf16> to vector<1024x64xbf16>
    %cst_47 = arith.constant dense<0.000000e+00> : vector<16x64xf32>
    %59 = tpu.matmul %56, %58, %cst_47 {dimension_numbers = #tpu.dot_dimension_numbers<[1], [0], [0], [1], [0, 0, 1, 1], [], []>} : vector<16x1024xbf16>, vector<1024x64xbf16>, vector<16x64xf32> -> vector<16x64xf32>
    %60 = arith.addf %47, %59 : vector<16x64xf32>
    %61 = vector.extract_strided_slice %12 {offsets = [0, 384], sizes = [16, 128], strides = [1, 1]} : vector<16x512xbf16> to vector<16x128xbf16>
    %cst_48 = arith.constant dense<0.000000e+00> : vector<16x1024xf32>
    %62 = tpu.matmul %61, %13, %cst_48 {dimension_numbers = #tpu.dot_dimension_numbers<[1], [0], [0], [1], [0, 0, 1, 1], [], []>} : vector<16x128xbf16>, vector<128x1024xbf16>, vector<16x1024xf32> -> vector<16x1024xf32>
    %c3 = arith.constant 3 : index
    %c0_49 = arith.constant 0 : index
    %c0_50 = arith.constant 0 : index
    %63 = vector.load %arg2[%c3, %c0_49, %c0_50] : memref<4x16x16xbf16, #tpu.memory_space<vmem>>, vector<1x16x16xbf16>
    %64 = vector.shape_cast %63 : vector<1x16x16xbf16> to vector<16x16xbf16>
    %cst_51 = arith.constant dense<0.000000e+00> : vector<16x1024xf32>
    %65 = tpu.matmul %64, %14, %cst_51 {dimension_numbers = #tpu.dot_dimension_numbers<[1], [0], [0], [1], [0, 0, 1, 1], [], []>} : vector<16x16xbf16>, vector<16x1024xbf16>, vector<16x1024xf32> -> vector<16x1024xf32>
    %66 = arith.addf %62, %65 : vector<16x1024xf32>
    %67 = vector.broadcast %15 : vector<1x1024xf32> to vector<16x1024xf32>
    %68 = arith.addf %66, %67 : vector<16x1024xf32>
    %69 = arith.truncf %68 : vector<16x1024xf32> to vector<16x1024xbf16>
    %c3_52 = arith.constant 3 : index
    %c0_53 = arith.constant 0 : index
    %c0_54 = arith.constant 0 : index
    %70 = vector.load %arg8[%c3_52, %c0_53, %c0_54] : memref<4x1024x64xbf16, #tpu.memory_space<vmem>>, vector<1x1024x64xbf16>
    %71 = vector.shape_cast %70 : vector<1x1024x64xbf16> to vector<1024x64xbf16>
    %cst_55 = arith.constant dense<0.000000e+00> : vector<16x64xf32>
    %72 = tpu.matmul %69, %71, %cst_55 {dimension_numbers = #tpu.dot_dimension_numbers<[1], [0], [0], [1], [0, 0, 1, 1], [], []>} : vector<16x1024xbf16>, vector<1024x64xbf16>, vector<16x64xf32> -> vector<16x64xf32>
    %73 = arith.addf %60, %72 : vector<16x64xf32>
    %c0_56 = arith.constant 0 : index
    %c0_57 = arith.constant 0 : index
    %74 = vector.load %arg14[%c0_56, %c0_57] : memref<16x64xf32, #tpu.memory_space<vmem>>, vector<16x64xf32>
    tpu.vector_store %arg14[%c0_56, %c0_57], %73 {strides = array<i32>} : memref<16x64xf32, #tpu.memory_space<vmem>>, vector<16x64xf32>,
    return
  }
  func.func @transform_0(%arg0: i32) -> (i32, i32) {
    %c0_i32 = arith.constant 0 : i32
    %c0_i32_0 = arith.constant 0 : i32
    return %arg0, %c0_i32 : i32, i32
  }
  func.func @transform_1(%arg0: i32) -> (i32, i32, i32) {
    %c0_i32 = arith.constant 0 : i32
    %c0_i32_0 = arith.constant 0 : i32
    %c0_i32_1 = arith.constant 0 : i32
    return %c0_i32, %arg0, %c0_i32_0 : i32, i32, i32
  }
  func.func @transform_2(%arg0: i32) -> (i32, i32) {
    %c0_i32 = arith.constant 0 : i32
    %c0_i32_0 = arith.constant 0 : i32
    return %arg0, %c0_i32 : i32, i32
  }
  func.func @transform_3(%arg0: i32) -> (i32, i32) {
    %c0_i32 = arith.constant 0 : i32
    %c0_i32_0 = arith.constant 0 : i32
    %c0_i32_1 = arith.constant 0 : i32
    return %c0_i32, %c0_i32_0 : i32, i32
  }
  func.func @transform_4(%arg0: i32) -> (i32, i32) {
    %c0_i32 = arith.constant 0 : i32
    %c0_i32_0 = arith.constant 0 : i32
    %c0_i32_1 = arith.constant 0 : i32
    return %c0_i32, %c0_i32_0 : i32, i32
  }
  func.func @transform_5(%arg0: i32) -> (i32, i32) {
    %c0_i32 = arith.constant 0 : i32
    %c0_i32_0 = arith.constant 0 : i32
    %c0_i32_1 = arith.constant 0 : i32
    return %c0_i32, %c0_i32_0 : i32, i32
  }
  func.func @transform_6(%arg0: i32) -> (i32, i32) {
    %c0_i32 = arith.constant 0 : i32
    %c0_i32_0 = arith.constant 0 : i32
    %c0_i32_1 = arith.constant 0 : i32
    return %c0_i32, %c0_i32_0 : i32, i32
  }
  func.func @transform_7(%arg0: i32) -> (i32, i32, i32) {
    %c0_i32 = arith.constant 0 : i32
    %c0_i32_0 = arith.constant 0 : i32
    %c0_i32_1 = arith.constant 0 : i32
    %c0_i32_2 = arith.constant 0 : i32
    return %c0_i32, %c0_i32_0, %c0_i32_1 : i32, i32, i32
  }
  func.func @transform_8(%arg0: i32) -> (i32, i32) {
    %c0_i32 = arith.constant 0 : i32
    %c0_i32_0 = arith.constant 0 : i32
    %c0_i32_1 = arith.constant 0 : i32
    return %c0_i32, %c0_i32_0 : i32, i32
  }
  func.func @transform_9(%arg0: i32) -> (i32, i32) {
    %c0_i32 = arith.constant 0 : i32
    %c0_i32_0 = arith.constant 0 : i32
    %c0_i32_1 = arith.constant 0 : i32
    return %c0_i32, %c0_i32_0 : i32, i32
  }
  func.func @transform_10(%arg0: i32) -> (i32, i32) {
    %c0_i32 = arith.constant 0 : i32
    %c0_i32_0 = arith.constant 0 : i32
    %c0_i32_1 = arith.constant 0 : i32
    return %c0_i32, %c0_i32_0 : i32, i32
  }
  func.func @transform_11(%arg0: i32) -> (i32, i32) {
    %c0_i32 = arith.constant 0 : i32
    %c0_i32_0 = arith.constant 0 : i32
    %c0_i32_1 = arith.constant 0 : i32
    return %c0_i32, %c0_i32_0 : i32, i32
  }
  func.func @transform_12(%arg0: i32) -> (i32, i32) {
    %c0_i32 = arith.constant 0 : i32
    %c0_i32_0 = arith.constant 0 : i32
    %c0_i32_1 = arith.constant 0 : i32
    return %c0_i32, %c0_i32_0 : i32, i32
  }
  func.func @transform_13(%arg0: i32) -> (i32, i32) {
    %c0_i32 = arith.constant 0 : i32
    %c0_i32_0 = arith.constant 0 : i32
    return %arg0, %c0_i32 : i32, i32
  }
}

</mosaic_0001>

<llo_original>
// kernel: mul.4
$region0: #{mul.4}
  %s0 = inlined_call_operand.vmem [shape: f32[256,1,2,2], index: 0, kind: input, shape index: {}]
  %s1 = inlined_call_operand.vmem [shape: f32[256,4], index: 1, kind: output, shape index: {}]
  $region1: #{mul.4} parent=0
    #allocation0 [shape = 'u8[8192]{0}', space=vmem, size = 0x2000, scoped, tag = 'scoped mem for output reshape']
    #allocation1 [shape = 'u8[16384]{0}', space=vmem, size = 0x4000, scoped, tag = 'scoped mem for input reshape']
    %s3 = sshllo.u32 0, 2
    %s4 = smul.addr 2, 3
    %s5 = scalar_lea.vmem %s0, %s4
    %v6 = vld [vmem:[%s5] sm:%s3]
    %s7 = scalar_lea.vmem [#allocation1], 24
    %8 = vst [vmem:[%s7] sm:%s3] %v6
    %s9 = smul.addr 2, 2
    %s10 = scalar_lea.vmem %s0, %s9
    %v11 = vld [vmem:[%s10] sm:%s3]
    %s12 = scalar_lea.vmem [#allocation1], 16
    %13 = vst [vmem:[%s12] sm:%s3] %v11
    %s14 = scalar_lea.vmem %s0, 2
    %v15 = vld [vmem:[%s14] sm:%s3]
    %s16 = scalar_lea.vmem [#allocation1], 8
    %17 = vst [vmem:[%s16] sm:%s3] %v15
    %v18 = vld [vmem:[%s0] sm:%s3]
    %19 = vst [vmem:[#allocation1] sm:%s3] %v18
    %v20 = vld [vmem:[#allocation1] sm:$0x3]
    %21 = vst [vmem:[#allocation0] sm:$0x3] %v20
    %s22 = scalar_lea.vmem [#allocation1], 8
    %v23 = vld [vmem:[%s22] sm:$0x3]
    %s24 = scalar_lea.vmem [#allocation0], 8
    %25 = vst [vmem:[%s24] sm:$0x3] %v23
    %s26 = scalar_lea.vmem [#allocation1], 16
    %v27 = vld [vmem:[%s26] sm:$0x3]
    %s28 = scalar_lea.vmem [#allocation0], 2
    %29 = vst [vmem:[%s28] sm:$0x3] %v27
    %s30 = scalar_lea.vmem [#allocation1], 24
    %v31 = vld [vmem:[%s30] sm:$0x3]
    %s32 = scalar_lea.vmem [#allocation0], 10
    %33 = vst [vmem:[%s32] sm:$0x3] %v31
    %s35 = sshllo.u32 0, 4
    %v37 = vld [vmem:[#allocation0] sm:%s35]
    %s38 = sshllo.u32 0, 4
    %39 = vst [vmem:[%s1] sm:%s38] %v37
    %s40 = scalar_lea.vmem [#allocation0], 8
    %v41 = vld [vmem:[%s40] sm:%s35]
    %s42 = sshllo.u32 0, 4
    %s43 = scalar_lea.vmem %s1, 4
    %44 = vst [vmem:[%s43] sm:%s42] %v41

// kernel: tile.18
$region0: #{tile.18}
  #allocation0 [shape = 's32[1]{0}', space=sflag, size = 0x4, scoped, tag = 'scoped memory for tile.18']
  %s0 = inlined_call_operand.vmem [shape: f32[128], index: 0, kind: input, shape index: {}]
  %s1 = inlined_call_operand.vmem [shape: f32[4,128], index: 1, kind: output, shape index: {}]
  // Predicated region
  $region2: #{tile.18} parent=0 // pred_check
    _
  $region3: #{tile.18} parent=0 // pred_check_branch
    %3 = sbr.rel (0) target = $region5
  $region4: #{tile.18} parent=0 // pred_region
    _
  $region5: #{tile.18} parent=0 // pred_fallthru
    _
  %v4 = vld [vmem:[%s0] ss:$0 sm:$0xff]
  %5 = vst [vmem:[%s1] sm:$0xf] %v4

// kernel: table_decoder_forward.1
$region0: #{table_decoder_forward.1}
  #allocation0 [shape = 'u32[]', space=smem, size = 0x4, offset = 0x4, fixed_abs, tag = 'smem constant byte address 0x4 - core index']
  #allocation1 [shape = 'u32[144,128]{1,0:T(1,128)}', space=vmem, size = 0x12000, scoped, tag = 'internal scratch']
  %s0 = inlined_call_operand.vmem [shape: bf16[32,256], index: 0, kind: input, shape index: {}]
  %s1 = inlined_call_operand.vmem [shape: bf16[4,32,16], index: 1, kind: input, shape index: {}]
  %s2 = inlined_call_operand.vmem [shape: bf16[32,64], index: 2, kind: input, shape index: {}]
  %s3 = inlined_call_operand.vmem [shape: bf16[256,256], index: 3, kind: input, shape index: {}]
  %s4 = inlined_call_operand.vmem [shape: bf16[256,512], index: 4, kind: input, shape index: {}]
  %s5 = inlined_call_operand.vmem [shape: bf16[128,1024], index: 5, kind: input, shape index: {}]
  %s6 = inlined_call_operand.vmem [shape: bf16[16,1024], index: 6, kind: input, shape index: {}]
  %s7 = inlined_call_operand.vmem [shape: bf16[4,1024,64], index: 7, kind: input, shape index: {}]
  %s8 = inlined_call_operand.vmem [shape: bf16[64,64], index: 8, kind: input, shape index: {}]
  %s9 = inlined_call_operand.vmem [shape: f32[1,256], index: 9, kind: input, shape index: {}]
  %s10 = inlined_call_operand.vmem [shape: f32[1,512], index: 10, kind: input, shape index: {}]
  %s11 = inlined_call_operand.vmem [shape: f32[1,1024], index: 11, kind: input, shape index: {}]
  %s12 = inlined_call_operand.vmem [shape: f32[1,64], index: 12, kind: input, shape index: {}]
  %s13 = inlined_call_operand.vmem [shape: f32[32,64], index: 13, kind: output, shape index: {}]
  %s14 = sld [smem:[#allocation0]]
  $region126: #{table_decoder_forward.1} parent=0
    _
  %s16 = ssub.s32 1, %s14
  %s17 = scalar_select 0, %s16, %s14
  $region1: #{table_decoder_forward.1} parent=0
    #allocation2 [shape = 'u8[32768]{0}', space=vmem, size = 0x8000, scoped, tag = 'input window, operand 1']
    loop: start=0, step=1, limit=4
    $region2: #{table_decoder_forward.1} parent=1 // loop_pre_header
      _
    $region3: #{table_decoder_forward.1} parent=1 // loop_header
      %s19 = sphi 0, %s23
      %p20 = scmp.ge.s32.totalorder %s19, 4
      %s29 = sphi 0, %s31
      %s32 = sphi 0, %s29
      %s33 = sphi 0, %s32
      %s49 = sphi 0, %s33
      %s55 = sphi 0, %s57
      %s58 = sphi 0, %s55
      %s59 = sphi 0, %s58
      %s75 = sphi 0, %s59
      %s81 = sphi 0, %s83
      %s84 = sphi 0, %s81
      %s85 = sphi 0, %s84
      %s101 = sphi 0, %s85
      %s105 = sphi 0, %s105
      %s107 = sphi 0, %s105
      %s108 = sphi 0, %s107
      %s122 = sphi 0, %s108
      %s126 = sphi 0, %s126
      %s128 = sphi 0, %s126
      %s129 = sphi 0, %s128
      %s143 = sphi 0, %s129
      %s147 = sphi 0, %s147
      %s149 = sphi 0, %s147
      %s150 = sphi 0, %s149
      %s164 = sphi 0, %s150
      %s168 = sphi 0, %s168
      %s170 = sphi 0, %s168
      %s171 = sphi 0, %s170
      %s185 = sphi 0, %s171
      %s189 = sphi 0, %s189
      %s191 = sphi 0, %s189
      %s192 = sphi 0, %s191
      %s206 = sphi 0, %s192
      %s210 = sphi 0, %s210
      %s212 = sphi 0, %s210
      %s213 = sphi 0, %s212
      %s227 = sphi 0, %s213
      %s231 = sphi 0, %s231
      %s233 = sphi 0, %s231
      %s234 = sphi 0, %s233
      %s248 = sphi 0, %s234
      %s252 = sphi 0, %s252
      %s254 = sphi 0, %s252
      %s255 = sphi 0, %s254
      %s269 = sphi 0, %s255
      %s273 = sphi 0, %s273
      %s275 = sphi 0, %s273
      %s276 = sphi 0, %s275
      %s290 = sphi 0, %s276
      %s294 = sphi 0, %s294
      %s296 = sphi 0, %s294
      %s297 = sphi 0, %s296
      %s311 = sphi 0, %s297
      %s317 = sphi 0, %s319
      %s320 = sphi 0, %s317
      %s321 = sphi 0, %s320
      %s337 = sphi 0, %s321
    $region4: #{table_decoder_forward.1} parent=1 // loop_header_branch
      %22 = sbr.rel (%p20) target = $region8
    $region5: #{table_decoder_forward.1} parent=1 // loop_body
      %s24 = ssub.s32 %s19, 1
      %s25 = ssub.s32 %s19, 2
      %s26 = sadd.s32 %s19, 1
      %s27 = ssub.s32 %s19, %s26
      %p28 = scmp.eq.s32.totalorder %s27, 0
      %s30 = sadd.s32 %s29, 1
      %s31 = scalar_select %p28, %s29, %s30
      %p34 = pneg %p28
      %p35 = scmp.eq.s32.totalorder %s19, 1
      %p36 = por %p34, %p35
      %p37 = scmp.ne.s32.totalorder %s29, %s32
      %p38 = scmp.eq.s32.totalorder %s19, 0
      %p39 = por %p37, %p38
      %p40 = scmp.ne.s32.totalorder %s29, %s32
      %p41 = scmp.eq.s32.totalorder %s24, 1
      %p42 = por %p40, %p41
      %p43 = scmp.ne.s32.totalorder %s32, %s33
      %p44 = scmp.eq.s32.totalorder %s24, 0
      %p45 = por %p43, %p44
      %p46 = scmp.ne.s32.totalorder %s32, %s33
      %p47 = scmp.eq.s32.totalorder %s25, 1
      %p48 = por %p46, %p47
      %p50 = scmp.ne.s32.totalorder %s33, %s49
      %p51 = scmp.eq.s32.totalorder %s25, 0
      %p52 = por %p50, %p51
      %s53 = ssub.s32 %s19, %s26
      %p54 = scmp.eq.s32.totalorder %s53, 0
      %s56 = sadd.s32 %s55, 1
      %s57 = scalar_select %p54, %s55, %s56
      %p60 = pneg %p54
      %p61 = scmp.eq.s32.totalorder %s19, 1
      %p62 = por %p60, %p61
      %p63 = scmp.ne.s32.totalorder %s55, %s58
      %p64 = scmp.eq.s32.totalorder %s19, 0
      %p65 = por %p63, %p64
      %p66 = scmp.ne.s32.totalorder %s55, %s58
      %p67 = scmp.eq.s32.totalorder %s24, 1
      %p68 = por %p66, %p67
      %p69 = scmp.ne.s32.totalorder %s58, %s59
      %p70 = scmp.eq.s32.totalorder %s24, 0
      %p71 = por %p69, %p70
      %p72 = scmp.ne.s32.totalorder %s58, %s59
      %p73 = scmp.eq.s32.totalorder %s25, 1
      %p74 = por %p72, %p73
      %p76 = scmp.ne.s32.totalorder %s59, %s75
      %p77 = scmp.eq.s32.totalorder %s25, 0
      %p78 = por %p76, %p77
      %s79 = ssub.s32 %s19, %s26
      %p80 = scmp.eq.s32.totalorder %s79, 0
      %s82 = sadd.s32 %s81, 1
      %s83 = scalar_select %p80, %s81, %s82
      %p86 = pneg %p80
      %p87 = scmp.eq.s32.totalorder %s19, 1
      %p88 = por %p86, %p87
      %p89 = scmp.ne.s32.totalorder %s81, %s84
      %p90 = scmp.eq.s32.totalorder %s19, 0
      %p91 = por %p89, %p90
      %p92 = scmp.ne.s32.totalorder %s81, %s84
      %p93 = scmp.eq.s32.totalorder %s24, 1
      %p94 = por %p92, %p93
      %p95 = scmp.ne.s32.totalorder %s84, %s85
      %p96 = scmp.eq.s32.totalorder %s24, 0
      %p97 = por %p95, %p96
      %p98 = scmp.ne.s32.totalorder %s84, %s85
      %p99 = scmp.eq.s32.totalorder %s25, 1
      %p100 = por %p98, %p99
      %p102 = scmp.ne.s32.totalorder %s85, %s101
      %p103 = scmp.eq.s32.totalorder %s25, 0
      %p104 = por %p102, %p103
      %s106 = sadd.s32 %s105, 1
      %p109 = scmp.eq.s32.totalorder %s19, 1
      %p110 = scmp.ne.s32.totalorder %s105, %s107
      %p111 = scmp.eq.s32.totalorder %s19, 0
      %p112 = por %p110, %p111
      %p113 = scmp.ne.s32.totalorder %s105, %s107
      %p114 = scmp.eq.s32.totalorder %s24, 1
      %p115 = por %p113, %p114
      %p116 = scmp.ne.s32.totalorder %s107, %s108
      %p117 = scmp.eq.s32.totalorder %s24, 0
      %p118 = por %p116, %p117
      %p119 = scmp.ne.s32.totalorder %s107, %s108
      %p120 = scmp.eq.s32.totalorder %s25, 1
      %p121 = por %p119, %p120
      %p123 = scmp.ne.s32.totalorder %s108, %s122
      %p124 = scmp.eq.s32.totalorder %s25, 0
      %p125 = por %p123, %p124
      %s127 = sadd.s32 %s126, 1
      %p130 = scmp.eq.s32.totalorder %s19, 1
      %p131 = scmp.ne.s32.totalorder %s126, %s128
      %p132 = scmp.eq.s32.totalorder %s19, 0
      %p133 = por %p131, %p132
      %p134 = scmp.ne.s32.totalorder %s126, %s128
      %p135 = scmp.eq.s32.totalorder %s24, 1
      %p136 = por %p134, %p135
      %p137 = scmp.ne.s32.totalorder %s128, %s129
      %p138 = scmp.eq.s32.totalorder %s24, 0
      %p139 = por %p137, %p138
      %p140 = scmp.ne.s32.totalorder %s128, %s129
      %p141 = scmp.eq.s32.totalorder %s25, 1
      %p142 = por %p140, %p141
      %p144 = scmp.ne.s32.totalorder %s129, %s143
      %p145 = scmp.eq.s32.totalorder %s25, 0
      %p146 = por %p144, %p145
      %s148 = sadd.s32 %s147, 1
      %p151 = scmp.eq.s32.totalorder %s19, 1
      %p152 = scmp.ne.s32.totalorder %s147, %s149
      %p153 = scmp.eq.s32.totalorder %s19, 0
      %p154 = por %p152, %p153
      %p155 = scmp.ne.s32.totalorder %s147, %s149
      %p156 = scmp.eq.s32.totalorder %s24, 1
      %p157 = por %p155, %p156
      %p158 = scmp.ne.s32.totalorder %s149, %s150
      %p159 = scmp.eq.s32.totalorder %s24, 0
      %p160 = por %p158, %p159
      %p161 = scmp.ne.s32.totalorder %s149, %s150
      %p162 = scmp.eq.s32.totalorder %s25, 1
      %p163 = por %p161, %p162
      %p165 = scmp.ne.s32.totalorder %s150, %s164
      %p166 = scmp.eq.s32.totalorder %s25, 0
      %p167 = por %p165, %p166
      %s169 = sadd.s32 %s168, 1
      %p172 = scmp.eq.s32.totalorder %s19, 1
      %p173 = scmp.ne.s32.totalorder %s168, %s170
      %p174 = scmp.eq.s32.totalorder %s19, 0
      %p175 = por %p173, %p174
      %p176 = scmp.ne.s32.totalorder %s168, %s170
      %p177 = scmp.eq.s32.totalorder %s24, 1
      %p178 = por %p176, %p177
      %p179 = scmp.ne.s32.totalorder %s170, %s171
      %p180 = scmp.eq.s32.totalorder %s24, 0
      %p181 = por %p179, %p180
      %p182 = scmp.ne.s32.totalorder %s170, %s171
      %p183 = scmp.eq.s32.totalorder %s25, 1
      %p184 = por %p182, %p183
      %p186 = scmp.ne.s32.totalorder %s171, %s185
      %p187 = scmp.eq.s32.totalorder %s25, 0
      %p188 = por %p186, %p187
      %s190 = sadd.s32 %s189, 1
      %p193 = scmp.eq.s32.totalorder %s19, 1
      %p194 = scmp.ne.s32.totalorder %s189, %s191
      %p195 = scmp.eq.s32.totalorder %s19, 0
      %p196 = por %p194, %p195
      %p197 = scmp.ne.s32.totalorder %s189, %s191
      %p198 = scmp.eq.s32.totalorder %s24, 1
      %p199 = por %p197, %p198
      %p200 = scmp.ne.s32.totalorder %s191, %s192
      %p201 = scmp.eq.s32.totalorder %s24, 0
      %p202 = por %p200, %p201
      %p203 = scmp.ne.s32.totalorder %s191, %s192
      %p204 = scmp.eq.s32.totalorder %s25, 1
      %p205 = por %p203, %p204
      %p207 = scmp.ne.s32.totalorder %s192, %s206
      %p208 = scmp.eq.s32.totalorder %s25, 0
      %p209 = por %p207, %p208
      %s211 = sadd.s32 %s210, 1
      %p214 = scmp.eq.s32.totalorder %s19, 1
      %p215 = scmp.ne.s32.totalorder %s210, %s212
      %p216 = scmp.eq.s32.totalorder %s19, 0
      %p217 = por %p215, %p216
      %p218 = scmp.ne.s32.totalorder %s210, %s212
      %p219 = scmp.eq.s32.totalorder %s24, 1
      %p220 = por %p218, %p219
      %p221 = scmp.ne.s32.totalorder %s212, %s213
      %p222 = scmp.eq.s32.totalorder %s24, 0
      %p223 = por %p221, %p222
      %p224 = scmp.ne.s32.totalorder %s212, %s213
      %p225 = scmp.eq.s32.totalorder %s25, 1
      %p226 = por %p224, %p225
      %p228 = scmp.ne.s32.totalorder %s213, %s227
      %p229 = scmp.eq.s32.totalorder %s25, 0
      %p230 = por %p228, %p229
      %s232 = sadd.s32 %s231, 1
      %p235 = scmp.eq.s32.totalorder %s19, 1
      %p236 = scmp.ne.s32.totalorder %s231, %s233
      %p237 = scmp.eq.s32.totalorder %s19, 0
      %p238 = por %p236, %p237
      %p239 = scmp.ne.s32.totalorder %s231, %s233
      %p240 = scmp.eq.s32.totalorder %s24, 1
      %p241 = por %p239, %p240
      %p242 = scmp.ne.s32.totalorder %s233, %s234
      %p243 = scmp.eq.s32.totalorder %s24, 0
      %p244 = por %p242, %p243
      %p245 = scmp.ne.s32.totalorder %s233, %s234
      %p246 = scmp.eq.s32.totalorder %s25, 1
      %p247 = por %p245, %p246
      %p249 = scmp.ne.s32.totalorder %s234, %s248
      %p250 = scmp.eq.s32.totalorder %s25, 0
      %p251 = por %p249, %p250
      %s253 = sadd.s32 %s252, 1
      %p256 = scmp.eq.s32.totalorder %s19, 1
      %p257 = scmp.ne.s32.totalorder %s252, %s254
      %p258 = scmp.eq.s32.totalorder %s19, 0
      %p259 = por %p257, %p258
      %p260 = scmp.ne.s32.totalorder %s252, %s254
      %p261 = scmp.eq.s32.totalorder %s24, 1
      %p262 = por %p260, %p261
      %p263 = scmp.ne.s32.totalorder %s254, %s255
      %p264 = scmp.eq.s32.totalorder %s24, 0
      %p265 = por %p263, %p264
      %p266 = scmp.ne.s32.totalorder %s254, %s255
      %p267 = scmp.eq.s32.totalorder %s25, 1
      %p268 = por %p266, %p267
      %p270 = scmp.ne.s32.totalorder %s255, %s269
      %p271 = scmp.eq.s32.totalorder %s25, 0
      %p272 = por %p270, %p271
      %s274 = sadd.s32 %s273, 1
      %p277 = scmp.eq.s32.totalorder %s19, 1
      %p278 = scmp.ne.s32.totalorder %s273, %s275
      %p279 = scmp.eq.s32.totalorder %s19, 0
      %p280 = por %p278, %p279
      %p281 = scmp.ne.s32.totalorder %s273, %s275
      %p282 = scmp.eq.s32.totalorder %s24, 1
      %p283 = por %p281, %p282
      %p284 = scmp.ne.s32.totalorder %s275, %s276
      %p285 = scmp.eq.s32.totalorder %s24, 0
      %p286 = por %p284, %p285
      %p287 = scmp.ne.s32.totalorder %s275, %s276
      %p288 = scmp.eq.s32.totalorder %s25, 1
      %p289 = por %p287, %p288
      %p291 = scmp.ne.s32.totalorder %s276, %s290
      %p292 = scmp.eq.s32.totalorder %s25, 0
      %p293 = por %p291, %p292
      %s295 = sadd.s32 %s294, 1
      %p298 = scmp.eq.s32.totalorder %s19, 1
      %p299 = scmp.ne.s32.totalorder %s294, %s296
      %p300 = scmp.eq.s32.totalorder %s19, 0
      %p301 = por %p299, %p300
      %p302 = scmp.ne.s32.totalorder %s294, %s296
      %p303 = scmp.eq.s32.totalorder %s24, 1
      %p304 = por %p302, %p303
      %p305 = scmp.ne.s32.totalorder %s296, %s297
      %p306 = scmp.eq.s32.totalorder %s24, 0
      %p307 = por %p305, %p306
      %p308 = scmp.ne.s32.totalorder %s296, %s297
      %p309 = scmp.eq.s32.totalorder %s25, 1
      %p310 = por %p308, %p309
      %p312 = scmp.ne.s32.totalorder %s297, %s311
      %p313 = scmp.eq.s32.totalorder %s25, 0
      %p314 = por %p312, %p313
      %s315 = ssub.s32 %s19, %s26
      %p316 = scmp.eq.s32.totalorder %s315, 0
      %s318 = sadd.s32 %s317, 1
      %s319 = scalar_select %p316, %s317, %s318
      %p322 = pneg %p316
      %p323 = scmp.eq.s32.totalorder %s19, 1
      %p324 = por %p322, %p323
      %p325 = scmp.ne.s32.totalorder %s317, %s320
      %p326 = scmp.eq.s32.totalorder %s19, 0
      %p327 = por %p325, %p326
      %p328 = scmp.ne.s32.totalorder %s317, %s320
      %p329 = scmp.eq.s32.totalorder %s24, 1
      %p330 = por %p328, %p329
      %p331 = scmp.ne.s32.totalorder %s320, %s321
      %p332 = scmp.eq.s32.totalorder %s24, 0
      %p333 = por %p331, %p332
      %p334 = scmp.ne.s32.totalorder %s320, %s321
      %p335 = scmp.eq.s32.totalorder %s25, 1
      %p336 = por %p334, %p335
      %p338 = scmp.ne.s32.totalorder %s321, %s337
      %p339 = scmp.eq.s32.totalorder %s25, 0
      %p340 = por %p338, %p339
      %p341 = scmp.le.s32.totalorder 1, %s19
      %p342 = scmp.lt.s32.totalorder %s19, 3
      %p343 = pnand %p341, %p342
      %p344 = pneg %p343
      // Predicated region
      $region9: #{table_decoder_forward.1} parent=5 // pred_check
        _
      $region10: #{table_decoder_forward.1} parent=5 // pred_check_branch
        %346 = sbr.rel (%p343) target = $region12
      $region11: #{table_decoder_forward.1} parent=5 // pred_region
        %s347 = ssub.s32 %s19, 1
        // Predicated region
        $region13: #{table_decoder_forward.1} parent=11 // pred_check
          %p348 = pneg %p118
        $region14: #{table_decoder_forward.1} parent=11 // pred_check_branch
          %350 = sbr.rel (%p348) target = $region16
        $region15: #{table_decoder_forward.1} parent=11 // pred_region
          _
        $region16: #{table_decoder_forward.1} parent=11 // pred_fallthru
          _
        // Predicated region
        $region17: #{table_decoder_forward.1} parent=11 // pred_check
          %p351 = pneg %p139
        $region18: #{table_decoder_forward.1} parent=11 // pred_check_branch
          %353 = sbr.rel (%p351) target = $region20
        $region19: #{table_decoder_forward.1} parent=11 // pred_region
          _
        $region20: #{table_decoder_forward.1} parent=11 // pred_fallthru
          _
        // Predicated region
        $region21: #{table_decoder_forward.1} parent=11 // pred_check
          %p354 = pneg %p160
        $region22: #{table_decoder_forward.1} parent=11 // pred_check_branch
          %356 = sbr.rel (%p354) target = $region24
        $region23: #{table_decoder_forward.1} parent=11 // pred_region
          _
        $region24: #{table_decoder_forward.1} parent=11 // pred_fallthru
          _
        // Predicated region
        $region25: #{table_decoder_forward.1} parent=11 // pred_check
          %p357 = pneg %p181
        $region26: #{table_decoder_forward.1} parent=11 // pred_check_branch
          %359 = sbr.rel (%p357) target = $region28
        $region27: #{table_decoder_forward.1} parent=11 // pred_region
          _
        $region28: #{table_decoder_forward.1} parent=11 // pred_fallthru
          _
        // Predicated region
        $region29: #{table_decoder_forward.1} parent=11 // pred_check
          %p360 = pneg %p202
        $region30: #{table_decoder_forward.1} parent=11 // pred_check_branch
          %362 = sbr.rel (%p360) target = $region32
        $region31: #{table_decoder_forward.1} parent=11 // pred_region
          _
        $region32: #{table_decoder_forward.1} parent=11 // pred_fallthru
          _
        // Predicated region
        $region33: #{table_decoder_forward.1} parent=11 // pred_check
          %p363 = pneg %p223
        $region34: #{table_decoder_forward.1} parent=11 // pred_check_branch
          %365 = sbr.rel (%p363) target = $region36
        $region35: #{table_decoder_forward.1} parent=11 // pred_region
          _
        $region36: #{table_decoder_forward.1} parent=11 // pred_fallthru
          _
        // Predicated region
        $region37: #{table_decoder_forward.1} parent=11 // pred_check
          %p366 = pneg %p244
        $region38: #{table_decoder_forward.1} parent=11 // pred_check_branch
          %368 = sbr.rel (%p366) target = $region40
        $region39: #{table_decoder_forward.1} parent=11 // pred_region
          _
        $region40: #{table_decoder_forward.1} parent=11 // pred_fallthru
          _
        // Predicated region
        $region41: #{table_decoder_forward.1} parent=11 // pred_check
          %p369 = pneg %p265
        $region42: #{table_decoder_forward.1} parent=11 // pred_check_branch
          %371 = sbr.rel (%p369) target = $region44
        $region43: #{table_decoder_forward.1} parent=11 // pred_region
          _
        $region44: #{table_decoder_forward.1} parent=11 // pred_fallthru
          _
        // Predicated region
        $region45: #{table_decoder_forward.1} parent=11 // pred_check
          %p372 = pneg %p286
        $region46: #{table_decoder_forward.1} parent=11 // pred_check_branch
          %374 = sbr.rel (%p372) target = $region48
        $region47: #{table_decoder_forward.1} parent=11 // pred_region
          _
        $region48: #{table_decoder_forward.1} parent=11 // pred_fallthru
          _
        // Predicated region
        $region49: #{table_decoder_forward.1} parent=11 // pred_check
          %p375 = pneg %p307
        $region50: #{table_decoder_forward.1} parent=11 // pred_check_branch
          %377 = sbr.rel (%p375) target = $region52
        $region51: #{table_decoder_forward.1} parent=11 // pred_region
          _
        $region52: #{table_decoder_forward.1} parent=11 // pred_fallthru
          _
      $region12: #{table_decoder_forward.1} parent=5 // pred_fallthru
        _
      %p378 = scmp.lt.s32.totalorder %s19, 2
      // Predicated region
      $region53: #{table_decoder_forward.1} parent=5 // pred_check
        %p379 = pneg %p378
      $region54: #{table_decoder_forward.1} parent=5 // pred_check_branch
        %381 = sbr.rel (%p379) target = $region56
      $region55: #{table_decoder_forward.1} parent=5 // pred_region
        // Predicated region
        $region57: #{table_decoder_forward.1} parent=55 // pred_check
          %p382 = pneg %p39
        $region58: #{table_decoder_forward.1} parent=55 // pred_check_branch
          %384 = sbr.rel (%p382) target = $region60
        $region59: #{table_decoder_forward.1} parent=55 // pred_region
          %s385 = smul.u32 2, %s19
          %p386 = scmp.lt.s32.totalorder %s385, 3
          %s387 = scalar_select %p386, %s385, 3
          %s388 = smul.addr %s387, 2
          %s389 = smul.addr %s388, 4
          %s390 = scalar_lea.vmem %s0, %s389
          %s391 = smul.u32 2, %s19
        $region60: #{table_decoder_forward.1} parent=55 // pred_fallthru
          _
        // Predicated region
        $region61: #{table_decoder_forward.1} parent=55 // pred_check
          %p392 = pneg %p65
        $region62: #{table_decoder_forward.1} parent=55 // pred_check_branch
          %394 = sbr.rel (%p392) target = $region64
        $region63: #{table_decoder_forward.1} parent=55 // pred_region
          %s395 = sand.u32 %s55, 1
          %s396 = sand.u32 %s55, 1
          %s397 = smul.addr %s396, 32
          %s398 = scalar_lea.vmem [#allocation2], %s397
          %s399 = smul.u32 2, %s19
          %s400 = smul.addr %s399, 4
          %s401 = scalar_lea.vmem %s1, %s400
          // Predicated region
          $region65: #{table_decoder_forward.1} parent=63 // pred_check
            _
          $region66: #{table_decoder_forward.1} parent=63 // pred_check_branch
            %403 = sbr.rel (0) target = $region68
          $region67: #{table_decoder_forward.1} parent=63 // pred_region
            // Predicated region
            $region69: #{table_decoder_forward.1} parent=67 // pred_check
              _
            $region70: #{table_decoder_forward.1} parent=67 // pred_check_branch
              %405 = sbr.rel target = $region72
            $region71: #{table_decoder_forward.1} parent=67 // pred_region
              // Predicated region
              $region84: #{table_decoder_forward.1} parent=71 // pred_check
                _
              $region85: #{table_decoder_forward.1} parent=71 // pred_check_branch
                %434 = sbr.rel (0) target = $region87
              $region86: #{table_decoder_forward.1} parent=71 // pred_region
                loop: start=0, step=1, limit=1
                $region88: #{table_decoder_forward.1} parent=86 // loop_pre_header
                  _
                $region89: #{table_decoder_forward.1} parent=86 // loop_header
                  %s436 = sphi 0, %s440
                  %p437 = scmp.ge.s32.totalorder %s436, 1
                  %s441 = sphi %s401, %s401
                  %s442 = sphi %s398, %s398
                $region90: #{table_decoder_forward.1} parent=86 // loop_header_branch
                  %439 = sbr.rel (%p437) target = $region94
                $region91: #{table_decoder_forward.1} parent=86 // loop_body
                  _
                $region92: #{table_decoder_forward.1} parent=86 // loop_footer
                  %s440 = sadd.s32 1, %s436
                $region93: #{table_decoder_forward.1} parent=86 // loop_footer_branch
                  %435 = sbr.rel target = $region89
                $region94: #{table_decoder_forward.1} parent=86 // loop_exit
                  _
                loop: start=0, step=1, limit=1
                $region95: #{table_decoder_forward.1} parent=86 // loop_pre_header
                  _
                $region96: #{table_decoder_forward.1} parent=86 // loop_header
                  %s445 = sphi 0, %s449
                  %p446 = scmp.ge.s32.totalorder %s445, 1
                  %s450 = sphi %s401, %s401
                  %s451 = sphi %s398, %s398
                $region97: #{table_decoder_forward.1} parent=86 // loop_header_branch
                  %448 = sbr.rel (%p446) target = $region101
                $region98: #{table_decoder_forward.1} parent=86 // loop_body
                  %v452 = vld [vmem:[%s450] sm:$0xf]
                  %453 = vst [vmem:[%s451] sm:$0xf] %v452
                  %v454 = vld [vmem:[%s450 + $0x4] sm:$0xf]
                  %455 = vst [vmem:[%s451 + $0x4] sm:$0xf] %v454
                  %v456 = vld [vmem:[%s450 + $0x10] sm:$0xf]
                  %457 = vst [vmem:[%s451 + $0x8] sm:$0xf] %v456
                  %v458 = vld [vmem:[%s450 + $0x14] sm:$0xf]
                  %459 = vst [vmem:[%s451 + $0xc] sm:$0xf] %v458
                  %v460 = vld [vmem:[%s450 + $0x20] sm:$0xf]
                  %461 = vst [vmem:[%s451 + $0x10] sm:$0xf] %v460
                  %v462 = vld [vmem:[%s450 + $0x24] sm:$0xf]
                  %463 = vst [vmem:[%s451 + $0x14] sm:$0xf] %v462
                  %v464 = vld [vmem:[%s450 + $0x30] sm:$0xf]
                  %465 = vst [vmem:[%s451 + $0x18] sm:$0xf] %v464
                  %v466 = vld [vmem:[%s450 + $0x34] sm:$0xf]
                  %467 = vst [vmem:[%s451 + $0x1c] sm:$0xf] %v466
                $region99: #{table_decoder_forward.1} parent=86 // loop_footer
                  %s449 = sadd.s32 1, %s445
                $region100: #{table_decoder_forward.1} parent=86 // loop_footer_branch
                  %444 = sbr.rel target = $region96
                $region101: #{table_decoder_forward.1} parent=86 // loop_exit
                  _
              $region87: #{table_decoder_forward.1} parent=71 // pred_fallthru
                _
            $region72: #{table_decoder_forward.1} parent=67 // pred_fallthru
              _
            // Predicated region
            $region73: #{table_decoder_forward.1} parent=67 // pred_check
              _
            $region74: #{table_decoder_forward.1} parent=67 // pred_check_branch
              %407 = sbr.rel (0) target = $region76
            $region75: #{table_decoder_forward.1} parent=67 // pred_region
              loop: start=0, step=1, limit=1
              $region77: #{table_decoder_forward.1} parent=75 // loop_pre_header
                _
              $region78: #{table_decoder_forward.1} parent=75 // loop_header
                %s410 = sphi 0, %s414
                %p411 = scmp.ge.s32.totalorder %s410, 1
                %s415 = sphi %s401, %s401
                %s416 = sphi %s398, %s398
              $region79: #{table_decoder_forward.1} parent=75 // loop_header_branch
                %413 = sbr.rel (%p411) target = $region83
              $region80: #{table_decoder_forward.1} parent=75 // loop_body
                %v417 = vld [vmem:[%s415] sm:$0xf]
                %418 = vst [vmem:[%s416] sm:$0xf] %v417
                %v419 = vld [vmem:[%s415 + $0x4] sm:$0xf]
                %420 = vst [vmem:[%s416 + $0x4] sm:$0xf] %v419
                %v421 = vld [vmem:[%s415 + $0x10] sm:$0xf]
                %422 = vst [vmem:[%s416 + $0x8] sm:$0xf] %v421
                %v423 = vld [vmem:[%s415 + $0x14] sm:$0xf]
                %424 = vst [vmem:[%s416 + $0xc] sm:$0xf] %v423
                %v425 = vld [vmem:[%s415 + $0x20] sm:$0xf]
                %426 = vst [vmem:[%s416 + $0x10] sm:$0xf] %v425
                %v427 = vld [vmem:[%s415 + $0x24] sm:$0xf]
                %428 = vst [vmem:[%s416 + $0x14] sm:$0xf] %v427
                %v429 = vld [vmem:[%s415 + $0x30] sm:$0xf]
                %430 = vst [vmem:[%s416 + $0x18] sm:$0xf] %v429
                %v431 = vld [vmem:[%s415 + $0x34] sm:$0xf]
                %432 = vst [vmem:[%s416 + $0x1c] sm:$0xf] %v431
              $region81: #{table_decoder_forward.1} parent=75 // loop_footer
                %s414 = sadd.s32 1, %s410
              $region82: #{table_decoder_forward.1} parent=75 // loop_footer_branch
                %409 = sbr.rel target = $region78
              $region83: #{table_decoder_forward.1} parent=75 // loop_exit
                _
            $region76: #{table_decoder_forward.1} parent=67 // pred_fallthru
              _
          $region68: #{table_decoder_forward.1} parent=63 // pred_fallthru
            _
          %468 = vnop
        $region64: #{table_decoder_forward.1} parent=55 // pred_fallthru
          _
        // Predicated region
        $region102: #{table_decoder_forward.1} parent=55 // pred_check
          %p469 = pneg %p91
        $region103: #{table_decoder_forward.1} parent=55 // pred_check_branch
          %471 = sbr.rel (%p469) target = $region105
        $region104: #{table_decoder_forward.1} parent=55 // pred_region
          %s472 = smul.u32 2, %s19
          %p473 = scmp.lt.s32.totalorder %s472, 3
          %s474 = scalar_select %p473, %s472, 3
          %s475 = smul.addr %s474, 4
          %s476 = scalar_lea.vmem %s2, %s475
          %s477 = smul.u32 2, %s19
        $region105: #{table_decoder_forward.1} parent=55 // pred_fallthru
          _
      $region56: #{table_decoder_forward.1} parent=5 // pred_fallthru
        _
      %p478 = scmp.le.s32.totalorder 1, %s19
      %p479 = scmp.lt.s32.totalorder %s19, 3
      %p480 = pnand %p478, %p479
      %p481 = pneg %p480
      // Predicated region
      $region106: #{table_decoder_forward.1} parent=5 // pred_check
        _
      $region107: #{table_decoder_forward.1} parent=5 // pred_check_branch
        %483 = sbr.rel (%p480) target = $region109
      $region108: #{table_decoder_forward.1} parent=5 // pred_region
        %s484 = ssub.s32 %s19, 1
        %s485 = sand.u32 %s58, 1
        %s486 = sand.u32 %s58, 1
        %s487 = smul.addr %s486, 32
        %s488 = scalar_lea.vmem [#allocation2], %s487
        // Predicated region
        $region110: #{table_decoder_forward.1} parent=108 // pred_check
          %p489 = pneg %p71
        $region111: #{table_decoder_forward.1} parent=108 // pred_check_branch
          %491 = sbr.rel (%p489) target = $region113
        $region112: #{table_decoder_forward.1} parent=108 // pred_region
          _
        $region113: #{table_decoder_forward.1} parent=108 // pred_fallthru
          _
        %s492 = smul.u32 2, %s24
        %p493 = scmp.lt.s32.totalorder %s492, 3
        %s494 = scalar_select %p493, %s492, 3
        %s495 = smul.addr %s494, 2
        %s496 = smul.addr %s495, 4
        %s497 = scalar_lea.vmem %s0, %s496
        %p498 = pneg %p45
        %p499 = pneg %p42
        %s500 = sand.u32 %s58, 1
        %s501 = sand.u32 %s58, 1
        %s502 = smul.addr %s501, 32
        %s503 = scalar_lea.vmem [#allocation2], %s502
        %p504 = pneg %p71
        %p505 = pneg %p68
        %s506 = smul.u32 2, %s24
        %p507 = scmp.lt.s32.totalorder %s506, 3
        %s508 = scalar_select %p507, %s506, 3
        %s509 = smul.addr %s508, 4
        %s510 = scalar_lea.vmem %s2, %s509
        %p511 = pneg %p97
        %p512 = pneg %p94
        %p513 = pneg %p118
        %p514 = pneg %p115
        %p515 = pneg %p139
        %p516 = pneg %p136
        %p517 = pneg %p160
        %p518 = pneg %p157
        %p519 = pneg %p181
        %p520 = pneg %p178
        %p521 = pneg %p202
        %p522 = pneg %p199
        %p523 = pneg %p223
        %p524 = pneg %p220
        %p525 = pneg %p244
        %p526 = pneg %p241
        %p527 = pneg %p265
        %p528 = pneg %p262
        %p529 = pneg %p286
        %p530 = pneg %p283
        %p531 = pneg %p307
        %p532 = pneg %p304
        %p533 = pneg %p333
        %p534 = pneg %p330
        %s535 = smul.u32 2, %s24
        %p536 = scmp.lt.s32.totalorder %s535, 3
        %s537 = scalar_select %p536, %s535, 3
        %s538 = smul.addr %s537, 8
        %s539 = scalar_lea.vmem %s13, %s538
        %s540 = smul.u32 2, %s24
        %p541 = scmp.lt.s32.totalorder %s540, 3
        %s542 = scalar_select %p541, %s540, 3
        %s543 = smul.addr %s542, 2
        %s544 = smul.addr %s543, 4
        %s545 = scalar_lea.vmem %s0, %s544
        %s546 = smul.u32 2, %s24
        %s547 = smul.u32 2, %s24
        %s548 = smul.u32 2, %s24
        %p549 = scmp.lt.s32.totalorder %s548, 3
        %s550 = scalar_select %p549, %s548, 3
        %s551 = smul.addr %s550, 4
        %s552 = scalar_lea.vmem %s2, %s551
        %s553 = smul.u32 2, %s24
        %s554 = smul.u32 2, %s24
        %p555 = scmp.lt.s32.totalorder %s554, 3
        %s556 = scalar_select %p555, %s554, 3
        %s557 = smul.addr %s556, 8
        %s558 = scalar_lea.vmem %s13, %s557
        %s559 = smul.u32 2, %s24
        %v561 = vld [vmem:[%s545] sm:$0xff]
        %v562 = vld [vmem:[%s545 + $0x8] sm:$0xff]
        %v563 = vld [vmem:[%s3] sm:$0xff]
        %v564 = vld [vmem:[%s3 + $0x8] sm:$0xff]
        %v565 = vld [vmem:[%s3 + $0x10] sm:$0xff]
        %v566 = vld [vmem:[%s3 + $0x18] sm:$0xff]
        %v567 = vld [vmem:[%s3 + $0x20] sm:$0xff]
        %v568 = vld [vmem:[%s3 + $0x28] sm:$0xff]
        %v569 = vld [vmem:[%s3 + $0x30] sm:$0xff]
        %v570 = vld [vmem:[%s3 + $0x38] sm:$0xff]
        %v571 = vld [vmem:[%s3 + $0x40] sm:$0xff]
        %v572 = vld [vmem:[%s3 + $0x48] sm:$0xff]
        %v573 = vld [vmem:[%s3 + $0x50] sm:$0xff]
        %v574 = vld [vmem:[%s3 + $0x58] sm:$0xff]
        %v575 = vld [vmem:[%s3 + $0x60] sm:$0xff]
        %v576 = vld [vmem:[%s3 + $0x68] sm:$0xff]
        %v577 = vld [vmem:[%s3 + $0x70] sm:$0xff]
        %v578 = vld [vmem:[%s3 + $0x78] sm:$0xff]
        %v579 = vld [vmem:[%s3 + $0x80] sm:$0xff]
        %v580 = vld [vmem:[%s3 + $0x88] sm:$0xff]
        %v581 = vld [vmem:[%s3 + $0x90] sm:$0xff]
        %v582 = vld [vmem:[%s3 + $0x98] sm:$0xff]
        %v583 = vld [vmem:[%s3 + $0xa0] sm:$0xff]
        %v584 = vld [vmem:[%s3 + $0xa8] sm:$0xff]
        %v585 = vld [vmem:[%s3 + $0xb0] sm:$0xff]
        %v586 = vld [vmem:[%s3 + $0xb8] sm:$0xff]
        %v587 = vld [vmem:[%s3 + $0xc0] sm:$0xff]
        %v588 = vld [vmem:[%s3 + $0xc8] sm:$0xff]
        %v589 = vld [vmem:[%s3 + $0xd0] sm:$0xff]
        %v590 = vld [vmem:[%s3 + $0xd8] sm:$0xff]
        %v591 = vld [vmem:[%s3 + $0xe0] sm:$0xff]
        %v592 = vld [vmem:[%s3 + $0xe8] sm:$0xff]
        %v593 = vld [vmem:[%s3 + $0xf0] sm:$0xff]
        %v594 = vld [vmem:[%s3 + $0xf8] sm:$0xff]
        %v595 = vld [vmem:[%s9] sm:$0x3]
        %v597 = vlaneseq
        %v598 = vshrl.u32 %v597, 7
        %v599 = vsub.s32 0, %v598
        %v600 = vrot.slane %v595, %v599
        %v601 = vlaneseq
        %v602 = vshrl.u32 %v601, 7
        %v603 = vsub.s32 1, %v602
        %v604 = vrot.slane %v595, %v603
        %v609 = vunpack.c.l.b16 %v561
        %v610 = vunpack.c.h.b16 %v561
        %v611 = vunpack.c.l.b16 %v562
        %v612 = vunpack.c.h.b16 %v562
        %v613 = vpack.c.b16 %v611, %v609
        %v614 = vpack.c.b16 %v612, %v610
        %v649 = vunpack.c.l.b16 %v563
        %v650 = vunpack.c.h.b16 %v563
        %v651 = vunpack.c.l.b16 %v564
        %v652 = vunpack.c.h.b16 %v564
        %v653 = vunpack.c.l.b16 %v565
        %v654 = vunpack.c.h.b16 %v565
        %v655 = vunpack.c.l.b16 %v566
        %v656 = vunpack.c.h.b16 %v566
        %v657 = vunpack.c.l.b16 %v567
        %v658 = vunpack.c.h.b16 %v567
        %v659 = vunpack.c.l.b16 %v568
        %v660 = vunpack.c.h.b16 %v568
        %v661 = vunpack.c.l.b16 %v569
        %v662 = vunpack.c.h.b16 %v569
        %v663 = vunpack.c.l.b16 %v570
        %v664 = vunpack.c.h.b16 %v570
        %v665 = vunpack.c.l.b16 %v571
        %v666 = vunpack.c.h.b16 %v571
        %v667 = vunpack.c.l.b16 %v572
        %v668 = vunpack.c.h.b16 %v572
        %v669 = vunpack.c.l.b16 %v573
        %v670 = vunpack.c.h.b16 %v573
        %v671 = vunpack.c.l.b16 %v574
        %v672 = vunpack.c.h.b16 %v574
        %v673 = vunpack.c.l.b16 %v575
        %v674 = vunpack.c.h.b16 %v575
        %v675 = vunpack.c.l.b16 %v576
        %v676 = vunpack.c.h.b16 %v576
        %v677 = vunpack.c.l.b16 %v577
        %v678 = vunpack.c.h.b16 %v577
        %v679 = vunpack.c.l.b16 %v578
        %v680 = vunpack.c.h.b16 %v578
        %v681 = vunpack.c.l.b16 %v579
        %v682 = vunpack.c.h.b16 %v579
        %v683 = vunpack.c.l.b16 %v580
        %v684 = vunpack.c.h.b16 %v580
        %v685 = vunpack.c.l.b16 %v581
        %v686 = vunpack.c.h.b16 %v581
        %v687 = vunpack.c.l.b16 %v582
        %v688 = vunpack.c.h.b16 %v582
        %v689 = vunpack.c.l.b16 %v583
        %v690 = vunpack.c.h.b16 %v583
        %v691 = vunpack.c.l.b16 %v584
        %v692 = vunpack.c.h.b16 %v584
        %v693 = vunpack.c.l.b16 %v585
        %v694 = vunpack.c.h.b16 %v585
        %v695 = vunpack.c.l.b16 %v586
        %v696 = vunpack.c.h.b16 %v586
        %v697 = vunpack.c.l.b16 %v587
        %v698 = vunpack.c.h.b16 %v587
        %v699 = vunpack.c.l.b16 %v588
        %v700 = vunpack.c.h.b16 %v588
        %v701 = vunpack.c.l.b16 %v589
        %v702 = vunpack.c.h.b16 %v589
        %v703 = vunpack.c.l.b16 %v590
        %v704 = vunpack.c.h.b16 %v590
        %v705 = vunpack.c.l.b16 %v591
        %v706 = vunpack.c.h.b16 %v591
        %v707 = vunpack.c.l.b16 %v592
        %v708 = vunpack.c.h.b16 %v592
        %v709 = vunpack.c.l.b16 %v593
        %v710 = vunpack.c.h.b16 %v593
        %v711 = vunpack.c.l.b16 %v594
        %v712 = vunpack.c.h.b16 %v594
        %v713 = vpack.c.b16 %v651, %v649
        %v714 = vpack.c.b16 %v652, %v650
        %v715 = vpack.c.b16 %v655, %v653
        %v716 = vpack.c.b16 %v656, %v654
        %v717 = vpack.c.b16 %v659, %v657
        %v718 = vpack.c.b16 %v660, %v658
        %v719 = vpack.c.b16 %v663, %v661
        %v720 = vpack.c.b16 %v664, %v662
        %v721 = vpack.c.b16 %v667, %v665
        %v722 = vpack.c.b16 %v668, %v666
        %v723 = vpack.c.b16 %v671, %v669
        %v724 = vpack.c.b16 %v672, %v670
        %v725 = vpack.c.b16 %v675, %v673
        %v726 = vpack.c.b16 %v676, %v674
        %v727 = vpack.c.b16 %v679, %v677
        %v728 = vpack.c.b16 %v680, %v678
        %v729 = vpack.c.b16 %v683, %v681
        %v730 = vpack.c.b16 %v684, %v682
        %v731 = vpack.c.b16 %v687, %v685
        %v732 = vpack.c.b16 %v688, %v686
        %v733 = vpack.c.b16 %v691, %v689
        %v734 = vpack.c.b16 %v692, %v690
        %v735 = vpack.c.b16 %v695, %v693
        %v736 = vpack.c.b16 %v696, %v694
        %v737 = vpack.c.b16 %v699, %v697
        %v738 = vpack.c.b16 %v700, %v698
        %v739 = vpack.c.b16 %v703, %v701
        %v740 = vpack.c.b16 %v704, %v702
        %v741 = vpack.c.b16 %v707, %v705
        %v742 = vpack.c.b16 %v708, %v706
        %v743 = vpack.c.b16 %v711, %v709
        %v744 = vpack.c.b16 %v712, %v710
        %777 = vmatprep.subr.bf16.mxu0 %v714
        %778 = vmatpush1.bf16.msra.mxu0 %v713
        %779 = vmatprep.subr.bf16.mxu0 %v716
        %780 = vmatpush1.bf16.msra.mxu0 %v715
        %781 = vmatprep.subr.bf16.mxu0 %v718
        %782 = vmatpush1.bf16.msra.mxu0 %v717
        %783 = vmatprep.subr.bf16.mxu0 %v720
        %784 = vmatpush1.bf16.msra.mxu0 %v719
        %785 = vmatprep.subr.bf16.mxu0 %v722
        %786 = vmatpush1.bf16.msra.mxu0 %v721
        %787 = vmatprep.subr.bf16.mxu0 %v724
        %788 = vmatpush1.bf16.msra.mxu0 %v723
        %789 = vmatprep.subr.bf16.mxu0 %v726
        %790 = vmatpush1.bf16.msra.mxu0 %v725
        %791 = vmatprep.subr.bf16.mxu0 %v728
        %792 = vmatpush1.bf16.msra.mxu0 %v727
        %793 = vmatprep.subr.bf16.mxu0 %v730
        %794 = vmatpush1.bf16.msra.mxu0 %v729
        %795 = vmatprep.subr.bf16.mxu0 %v732
        %796 = vmatpush1.bf16.msra.mxu0 %v731
        %797 = vmatprep.subr.bf16.mxu0 %v734
        %798 = vmatpush1.bf16.msra.mxu0 %v733
        %799 = vmatprep.subr.bf16.mxu0 %v736
        %800 = vmatpush1.bf16.msra.mxu0 %v735
        %801 = vmatprep.subr.bf16.mxu0 %v738
        %802 = vmatpush1.bf16.msra.mxu0 %v737
        %803 = vmatprep.subr.bf16.mxu0 %v740
        %804 = vmatpush1.bf16.msra.mxu0 %v739
        %805 = vmatprep.subr.bf16.mxu0 %v742
        %806 = vmatpush1.bf16.msra.mxu0 %v741
        %807 = vmatprep.subr.bf16.mxu0 %v744
        %808 = vmatpush1.bf16.msra.mxu0 %v743
        %809 = vmatprep.mubr.bf16.mxu0 %v614
        %810 = vmatmul.mubr.bf16.gmra.mrb[0].mxu0 %v613
        %v811 = vpop.f32.mrb[0].mxu0
        %v812 = vadd.f32 %v600, %v811
        %v813 = vpop.f32.mrb[0].mxu0
        %v814 = vadd.f32 %v604, %v813
        %v815 = vpop.f32.mrb[0].mxu0
        %v816 = vadd.f32 %v600, %v815
        %v817 = vpop.f32.mrb[0].mxu0
        %v818 = vadd.f32 %v604, %v817
        %819 = vdwg.mxu0
        %v820 = vpack.c.bf16 %v816, %v812
        %v821 = vpack.c.bf16 %v818, %v814
        %v822 = vld [vmem:[%s4] sm:$0xff]
        %v823 = vld [vmem:[%s4 + $0x8] sm:$0xff]
        %v824 = vld [vmem:[%s4 + $0x10] sm:$0xff]
        %v825 = vld [vmem:[%s4 + $0x18] sm:$0xff]
        %v826 = vld [vmem:[%s4 + $0x20] sm:$0xff]
        %v827 = vld [vmem:[%s4 + $0x28] sm:$0xff]
        %v828 = vld [vmem:[%s4 + $0x30] sm:$0xff]
        %v829 = vld [vmem:[%s4 + $0x38] sm:$0xff]
        %v830 = vld [vmem:[%s4 + $0x40] sm:$0xff]
        %v831 = vld [vmem:[%s4 + $0x48] sm:$0xff]
        %v832 = vld [vmem:[%s4 + $0x50] sm:$0xff]
        %v833 = vld [vmem:[%s4 + $0x58] sm:$0xff]
        %v834 = vld [vmem:[%s4 + $0x60] sm:$0xff]
        %v835 = vld [vmem:[%s4 + $0x68] sm:$0xff]
        %v836 = vld [vmem:[%s4 + $0x70] sm:$0xff]
        %v837 = vld [vmem:[%s4 + $0x78] sm:$0xff]
        %v838 = vld [vmem:[%s4 + $0x80] sm:$0xff]
        %v839 = vld [vmem:[%s4 + $0x88] sm:$0xff]
        %v840 = vld [vmem:[%s4 + $0x90] sm:$0xff]
        %v841 = vld [vmem:[%s4 + $0x98] sm:$0xff]
        %v842 = vld [vmem:[%s4 + $0xa0] sm:$0xff]
        %v843 = vld [vmem:[%s4 + $0xa8] sm:$0xff]
        %v844 = vld [vmem:[%s4 + $0xb0] sm:$0xff]
        %v845 = vld [vmem:[%s4 + $0xb8] sm:$0xff]
        %v846 = vld [vmem:[%s4 + $0xc0] sm:$0xff]
        %v847 = vld [vmem:[%s4 + $0xc8] sm:$0xff]
        %v848 = vld [vmem:[%s4 + $0xd0] sm:$0xff]
        %v849 = vld [vmem:[%s4 + $0xd8] sm:$0xff]
        %v850 = vld [vmem:[%s4 + $0xe0] sm:$0xff]
        %v851 = vld [vmem:[%s4 + $0xe8] sm:$0xff]
        %v852 = vld [vmem:[%s4 + $0xf0] sm:$0xff]
        %v853 = vld [vmem:[%s4 + $0xf8] sm:$0xff]
        %v854 = vld [vmem:[%s4 + $0x100] sm:$0xff]
        %v855 = vld [vmem:[%s4 + $0x108] sm:$0xff]
        %v856 = vld [vmem:[%s4 + $0x110] sm:$0xff]
        %v857 = vld [vmem:[%s4 + $0x118] sm:$0xff]
        %v858 = vld [vmem:[%s4 + $0x120] sm:$0xff]
        %v859 = vld [vmem:[%s4 + $0x128] sm:$0xff]
        %v860 = vld [vmem:[%s4 + $0x130] sm:$0xff]
        %v861 = vld [vmem:[%s4 + $0x138] sm:$0xff]
        %v862 = vld [vmem:[%s4 + $0x140] sm:$0xff]
        %v863 = vld [vmem:[%s4 + $0x148] sm:$0xff]
        %v864 = vld [vmem:[%s4 + $0x150] sm:$0xff]
        %v865 = vld [vmem:[%s4 + $0x158] sm:$0xff]
        %v866 = vld [vmem:[%s4 + $0x160] sm:$0xff]
        %v867 = vld [vmem:[%s4 + $0x168] sm:$0xff]
        %v868 = vld [vmem:[%s4 + $0x170] sm:$0xff]
        %v869 = vld [vmem:[%s4 + $0x178] sm:$0xff]
        %v870 = vld [vmem:[%s4 + $0x180] sm:$0xff]
        %v871 = vld [vmem:[%s4 + $0x188] sm:$0xff]
        %v872 = vld [vmem:[%s4 + $0x190] sm:$0xff]
        %v873 = vld [vmem:[%s4 + $0x198] sm:$0xff]
        %v874 = vld [vmem:[%s4 + $0x1a0] sm:$0xff]
        %v875 = vld [vmem:[%s4 + $0x1a8] sm:$0xff]
        %v876 = vld [vmem:[%s4 + $0x1b0] sm:$0xff]
        %v877 = vld [vmem:[%s4 + $0x1b8] sm:$0xff]
        %v878 = vld [vmem:[%s4 + $0x1c0] sm:$0xff]
        %v879 = vld [vmem:[%s4 + $0x1c8] sm:$0xff]
        %v880 = vld [vmem:[%s4 + $0x1d0] sm:$0xff]
        %v881 = vld [vmem:[%s4 + $0x1d8] sm:$0xff]
        %v882 = vld [vmem:[%s4 + $0x1e0] sm:$0xff]
        %v883 = vld [vmem:[%s4 + $0x1e8] sm:$0xff]
        %v884 = vld [vmem:[%s4 + $0x1f0] sm:$0xff]
        %v885 = vld [vmem:[%s4 + $0x1f8] sm:$0xff]
        %v886 = vld [vmem:[%s10] sm:$0xf]
        %v888 = vlaneseq
        %v889 = vshrl.u32 %v888, 7
        %v890 = vsub.s32 0, %v889
        %v891 = vrot.slane %v886, %v890
        %v892 = vlaneseq
        %v893 = vshrl.u32 %v892, 7
        %v894 = vsub.s32 1, %v893
        %v895 = vrot.slane %v886, %v894
        %v896 = vlaneseq
        %v897 = vshrl.u32 %v896, 7
        %v898 = vsub.s32 2, %v897
        %v899 = vrot.slane %v886, %v898
        %v900 = vlaneseq
        %v901 = vshrl.u32 %v900, 7
        %v902 = vsub.s32 3, %v901
        %v903 = vrot.slane %v886, %v902
        %v972 = vunpack.c.l.b16 %v822
        %v973 = vunpack.c.h.b16 %v822
        %v974 = vunpack.c.l.b16 %v823
        %v975 = vunpack.c.h.b16 %v823
        %v976 = vunpack.c.l.b16 %v824
        %v977 = vunpack.c.h.b16 %v824
        %v978 = vunpack.c.l.b16 %v825
        %v979 = vunpack.c.h.b16 %v825
        %v980 = vunpack.c.l.b16 %v826
        %v981 = vunpack.c.h.b16 %v826
        %v982 = vunpack.c.l.b16 %v827
        %v983 = vunpack.c.h.b16 %v827
        %v984 = vunpack.c.l.b16 %v828
        %v985 = vunpack.c.h.b16 %v828
        %v986 = vunpack.c.l.b16 %v829
        %v987 = vunpack.c.h.b16 %v829
        %v988 = vunpack.c.l.b16 %v830
        %v989 = vunpack.c.h.b16 %v830
        %v990 = vunpack.c.l.b16 %v831
        %v991 = vunpack.c.h.b16 %v831
        %v992 = vunpack.c.l.b16 %v832
        %v993 = vunpack.c.h.b16 %v832
        %v994 = vunpack.c.l.b16 %v833
        %v995 = vunpack.c.h.b16 %v833
        %v996 = vunpack.c.l.b16 %v834
        %v997 = vunpack.c.h.b16 %v834
        %v998 = vunpack.c.l.b16 %v835
        %v999 = vunpack.c.h.b16 %v835
        %v1000 = vunpack.c.l.b16 %v836
        %v1001 = vunpack.c.h.b16 %v836
        %v1002 = vunpack.c.l.b16 %v837
        %v1003 = vunpack.c.h.b16 %v837
        %v1004 = vunpack.c.l.b16 %v838
        %v1005 = vunpack.c.h.b16 %v838
        %v1006 = vunpack.c.l.b16 %v839
        %v1007 = vunpack.c.h.b16 %v839
        %v1008 = vunpack.c.l.b16 %v840
        %v1009 = vunpack.c.h.b16 %v840
        %v1010 = vunpack.c.l.b16 %v841
        %v1011 = vunpack.c.h.b16 %v841
        %v1012 = vunpack.c.l.b16 %v842
        %v1013 = vunpack.c.h.b16 %v842
        %v1014 = vunpack.c.l.b16 %v843
        %v1015 = vunpack.c.h.b16 %v843
        %v1016 = vunpack.c.l.b16 %v844
        %v1017 = vunpack.c.h.b16 %v844
        %v1018 = vunpack.c.l.b16 %v845
        %v1019 = vunpack.c.h.b16 %v845
        %v1020 = vunpack.c.l.b16 %v846
        %v1021 = vunpack.c.h.b16 %v846
        %v1022 = vunpack.c.l.b16 %v847
        %v1023 = vunpack.c.h.b16 %v847
        %v1024 = vunpack.c.l.b16 %v848
        %v1025 = vunpack.c.h.b16 %v848
        %v1026 = vunpack.c.l.b16 %v849
        %v1027 = vunpack.c.h.b16 %v849
        %v1028 = vunpack.c.l.b16 %v850
        %v1029 = vunpack.c.h.b16 %v850
        %v1030 = vunpack.c.l.b16 %v851
        %v1031 = vunpack.c.h.b16 %v851
        %v1032 = vunpack.c.l.b16 %v852
        %v1033 = vunpack.c.h.b16 %v852
        %v1034 = vunpack.c.l.b16 %v853
        %v1035 = vunpack.c.h.b16 %v853
        %v1036 = vunpack.c.l.b16 %v854
        %v1037 = vunpack.c.h.b16 %v854
        %v1038 = vunpack.c.l.b16 %v855
        %v1039 = vunpack.c.h.b16 %v855
        %v1040 = vunpack.c.l.b16 %v856
        %v1041 = vunpack.c.h.b16 %v856
        %v1042 = vunpack.c.l.b16 %v857
        %v1043 = vunpack.c.h.b16 %v857
        %v1044 = vunpack.c.l.b16 %v858
        %v1045 = vunpack.c.h.b16 %v858
        %v1046 = vunpack.c.l.b16 %v859
        %v1047 = vunpack.c.h.b16 %v859
        %v1048 = vunpack.c.l.b16 %v860
        %v1049 = vunpack.c.h.b16 %v860
        %v1050 = vunpack.c.l.b16 %v861
        %v1051 = vunpack.c.h.b16 %v861
        %v1052 = vunpack.c.l.b16 %v862
        %v1053 = vunpack.c.h.b16 %v862
        %v1054 = vunpack.c.l.b16 %v863
        %v1055 = vunpack.c.h.b16 %v863
        %v1056 = vunpack.c.l.b16 %v864
        %v1057 = vunpack.c.h.b16 %v864
        %v1058 = vunpack.c.l.b16 %v865
        %v1059 = vunpack.c.h.b16 %v865
        %v1060 = vunpack.c.l.b16 %v866
        %v1061 = vunpack.c.h.b16 %v866
        %v1062 = vunpack.c.l.b16 %v867
        %v1063 = vunpack.c.h.b16 %v867
        %v1064 = vunpack.c.l.b16 %v868
        %v1065 = vunpack.c.h.b16 %v868
        %v1066 = vunpack.c.l.b16 %v869
        %v1067 = vunpack.c.h.b16 %v869
        %v1068 = vunpack.c.l.b16 %v870
        %v1069 = vunpack.c.h.b16 %v870
        %v1070 = vunpack.c.l.b16 %v871
        %v1071 = vunpack.c.h.b16 %v871
        %v1072 = vunpack.c.l.b16 %v872
        %v1073 = vunpack.c.h.b16 %v872
        %v1074 = vunpack.c.l.b16 %v873
        %v1075 = vunpack.c.h.b16 %v873
        %v1076 = vunpack.c.l.b16 %v874
        %v1077 = vunpack.c.h.b16 %v874
        %v1078 = vunpack.c.l.b16 %v875
        %v1079 = vunpack.c.h.b16 %v875
        %v1080 = vunpack.c.l.b16 %v876
        %v1081 = vunpack.c.h.b16 %v876
        %v1082 = vunpack.c.l.b16 %v877
        %v1083 = vunpack.c.h.b16 %v877
        %v1084 = vunpack.c.l.b16 %v878
        %v1085 = vunpack.c.h.b16 %v878
        %v1086 = vunpack.c.l.b16 %v879
        %v1087 = vunpack.c.h.b16 %v879
        %v1088 = vunpack.c.l.b16 %v880
        %v1089 = vunpack.c.h.b16 %v880
        %v1090 = vunpack.c.l.b16 %v881
        %v1091 = vunpack.c.h.b16 %v881
        %v1092 = vunpack.c.l.b16 %v882
        %v1093 = vunpack.c.h.b16 %v882
        %v1094 = vunpack.c.l.b16 %v883
        %v1095 = vunpack.c.h.b16 %v883
        %v1096 = vunpack.c.l.b16 %v884
        %v1097 = vunpack.c.h.b16 %v884
        %v1098 = vunpack.c.l.b16 %v885
        %v1099 = vunpack.c.h.b16 %v885
        %v1100 = vpack.c.b16 %v976, %v972
        %v1101 = vpack.c.b16 %v977, %v973
        %v1102 = vpack.c.b16 %v978, %v974
        %v1103 = vpack.c.b16 %v979, %v975
        %v1104 = vpack.c.b16 %v984, %v980
        %v1105 = vpack.c.b16 %v985, %v981
        %v1106 = vpack.c.b16 %v986, %v982
        %v1107 = vpack.c.b16 %v987, %v983
        %v1108 = vpack.c.b16 %v992, %v988
        %v1109 = vpack.c.b16 %v993, %v989
        %v1110 = vpack.c.b16 %v994, %v990
        %v1111 = vpack.c.b16 %v995, %v991
        %v1112 = vpack.c.b16 %v1000, %v996
        %v1113 = vpack.c.b16 %v1001, %v997
        %v1114 = vpack.c.b16 %v1002, %v998
        %v1115 = vpack.c.b16 %v1003, %v999
        %v1116 = vpack.c.b16 %v1008, %v1004
        %v1117 = vpack.c.b16 %v1009, %v1005
        %v1118 = vpack.c.b16 %v1010, %v1006
        %v1119 = vpack.c.b16 %v1011, %v1007
        %v1120 = vpack.c.b16 %v1016, %v1012
        %v1121 = vpack.c.b16 %v1017, %v1013
        %v1122 = vpack.c.b16 %v1018, %v1014
        %v1123 = vpack.c.b16 %v1019, %v1015
        %v1124 = vpack.c.b16 %v1024, %v1020
        %v1125 = vpack.c.b16 %v1025, %v1021
        %v1126 = vpack.c.b16 %v1026, %v1022
        %v1127 = vpack.c.b16 %v1027, %v1023
        %v1128 = vpack.c.b16 %v1032, %v1028
        %v1129 = vpack.c.b16 %v1033, %v1029
        %v1130 = vpack.c.b16 %v1034, %v1030
        %v1131 = vpack.c.b16 %v1035, %v1031
        %v1132 = vpack.c.b16 %v1040, %v1036
        %v1133 = vpack.c.b16 %v1041, %v1037
        %v1134 = vpack.c.b16 %v1042, %v1038
        %v1135 = vpack.c.b16 %v1043, %v1039
        %v1136 = vpack.c.b16 %v1048, %v1044
        %v1137 = vpack.c.b16 %v1049, %v1045
        %v1138 = vpack.c.b16 %v1050, %v1046
        %v1139 = vpack.c.b16 %v1051, %v1047
        %v1140 = vpack.c.b16 %v1056, %v1052
        %v1141 = vpack.c.b16 %v1057, %v1053
        %v1142 = vpack.c.b16 %v1058, %v1054
        %v1143 = vpack.c.b16 %v1059, %v1055
        %v1144 = vpack.c.b16 %v1064, %v1060
        %v1145 = vpack.c.b16 %v1065, %v1061
        %v1146 = vpack.c.b16 %v1066, %v1062
        %v1147 = vpack.c.b16 %v1067, %v1063
        %v1148 = vpack.c.b16 %v1072, %v1068
        %v1149 = vpack.c.b16 %v1073, %v1069
        %v1150 = vpack.c.b16 %v1074, %v1070
        %v1151 = vpack.c.b16 %v1075, %v1071
        %v1152 = vpack.c.b16 %v1080, %v1076
        %v1153 = vpack.c.b16 %v1081, %v1077
        %v1154 = vpack.c.b16 %v1082, %v1078
        %v1155 = vpack.c.b16 %v1083, %v1079
        %v1156 = vpack.c.b16 %v1088, %v1084
        %v1157 = vpack.c.b16 %v1089, %v1085
        %v1158 = vpack.c.b16 %v1090, %v1086
        %v1159 = vpack.c.b16 %v1091, %v1087
        %v1160 = vpack.c.b16 %v1096, %v1092
        %v1161 = vpack.c.b16 %v1097, %v1093
        %v1162 = vpack.c.b16 %v1098, %v1094
        %v1163 = vpack.c.b16 %v1099, %v1095
        %1228 = vmatprep.subr.bf16.mxu0 %v1101
        %1229 = vmatpush1.bf16.msra.mxu0 %v1100
        %1230 = vmatprep.subr.bf16.mxu0 %v1105
        %1231 = vmatpush1.bf16.msra.mxu0 %v1104
        %1232 = vmatprep.subr.bf16.mxu0 %v1109
        %1233 = vmatpush1.bf16.msra.mxu0 %v1108
        %1234 = vmatprep.subr.bf16.mxu0 %v1113
        %1235 = vmatpush1.bf16.msra.mxu0 %v1112
        %1236 = vmatprep.subr.bf16.mxu0 %v1117
        %1237 = vmatpush1.bf16.msra.mxu0 %v1116
        %1238 = vmatprep.subr.bf16.mxu0 %v1121
        %1239 = vmatpush1.bf16.msra.mxu0 %v1120
        %1240 = vmatprep.subr.bf16.mxu0 %v1125
        %1241 = vmatpush1.bf16.msra.mxu0 %v1124
        %1242 = vmatprep.subr.bf16.mxu0 %v1129
        %1243 = vmatpush1.bf16.msra.mxu0 %v1128
        %1244 = vmatprep.subr.bf16.mxu0 %v1133
        %1245 = vmatpush1.bf16.msra.mxu0 %v1132
        %1246 = vmatprep.subr.bf16.mxu0 %v1137
        %1247 = vmatpush1.bf16.msra.mxu0 %v1136
        %1248 = vmatprep.subr.bf16.mxu0 %v1141
        %1249 = vmatpush1.bf16.msra.mxu0 %v1140
        %1250 = vmatprep.subr.bf16.mxu0 %v1145
        %1251 = vmatpush1.bf16.msra.mxu0 %v1144
        %1252 = vmatprep.subr.bf16.mxu0 %v1149
        %1253 = vmatpush1.bf16.msra.mxu0 %v1148
        %1254 = vmatprep.subr.bf16.mxu0 %v1153
        %1255 = vmatpush1.bf16.msra.mxu0 %v1152
        %1256 = vmatprep.subr.bf16.mxu0 %v1157
        %1257 = vmatpush1.bf16.msra.mxu0 %v1156
        %1258 = vmatprep.subr.bf16.mxu0 %v1161
        %1259 = vmatpush1.bf16.msra.mxu0 %v1160
        %1260 = vmatprep.mubr.bf16.mxu0 %v821
        %1261 = vmatmul.mubr.bf16.gmra.mrb[0].mxu0 %v820
        %v1262 = vpop.f32.mrb[0].mxu0
        %v1263 = vadd.f32 %v891, %v1262
        %v1264 = vpop.f32.mrb[0].mxu0
        %v1265 = vadd.f32 %v895, %v1264
        %v1266 = vpop.f32.mrb[0].mxu0
        %v1267 = vadd.f32 %v891, %v1266
        %v1268 = vpop.f32.mrb[0].mxu0
        %v1269 = vadd.f32 %v895, %v1268
        %1270 = vdwg.mxu0
        %1271 = vmatprep.subr.bf16.mxu0 %v1103
        %1272 = vmatpush1.bf16.msra.mxu0 %v1102
        %1273 = vmatprep.subr.bf16.mxu0 %v1107
        %1274 = vmatpush1.bf16.msra.mxu0 %v1106
        %1275 = vmatprep.subr.bf16.mxu0 %v1111
        %1276 = vmatpush1.bf16.msra.mxu0 %v1110
        %1277 = vmatprep.subr.bf16.mxu0 %v1115
        %1278 = vmatpush1.bf16.msra.mxu0 %v1114
        %1279 = vmatprep.subr.bf16.mxu0 %v1119
        %1280 = vmatpush1.bf16.msra.mxu0 %v1118
        %1281 = vmatprep.subr.bf16.mxu0 %v1123
        %1282 = vmatpush1.bf16.msra.mxu0 %v1122
        %1283 = vmatprep.subr.bf16.mxu0 %v1127
        %1284 = vmatpush1.bf16.msra.mxu0 %v1126
        %1285 = vmatprep.subr.bf16.mxu0 %v1131
        %1286 = vmatpush1.bf16.msra.mxu0 %v1130
        %1287 = vmatprep.subr.bf16.mxu0 %v1135
        %1288 = vmatpush1.bf16.msra.mxu0 %v1134
        %1289 = vmatprep.subr.bf16.mxu0 %v1139
        %1290 = vmatpush1.bf16.msra.mxu0 %v1138
        %1291 = vmatprep.subr.bf16.mxu0 %v1143
        %1292 = vmatpush1.bf16.msra.mxu0 %v1142
        %1293 = vmatprep.subr.bf16.mxu0 %v1147
        %1294 = vmatpush1.bf16.msra.mxu0 %v1146
        %1295 = vmatprep.subr.bf16.mxu0 %v1151
        %1296 = vmatpush1.bf16.msra.mxu0 %v1150
        %1297 = vmatprep.subr.bf16.mxu0 %v1155
        %1298 = vmatpush1.bf16.msra.mxu0 %v1154
        %1299 = vmatprep.subr.bf16.mxu0 %v1159
        %1300 = vmatpush1.bf16.msra.mxu0 %v1158
        %1301 = vmatprep.subr.bf16.mxu0 %v1163
        %1302 = vmatpush1.bf16.msra.mxu0 %v1162
        %1303 = vmatprep.mubr.bf16.mxu0 %v821
        %1304 = vmatmul.mubr.bf16.gmra.mrb[0].mxu0 %v820
        %v1305 = vpop.f32.mrb[0].mxu0
        %v1306 = vadd.f32 %v899, %v1305
        %v1307 = vpop.f32.mrb[0].mxu0
        %v1308 = vadd.f32 %v903, %v1307
        %v1309 = vpop.f32.mrb[0].mxu0
        %v1310 = vadd.f32 %v899, %v1309
        %v1311 = vpop.f32.mrb[0].mxu0
        %v1312 = vadd.f32 %v903, %v1311
        %1313 = vdwg.mxu0
        %v1314 = vpack.c.bf16 %v1267, %v1263
        %v1315 = vpack.c.bf16 %v1269, %v1265
        %v1316 = vpack.c.bf16 %v1310, %v1306
        %v1317 = vpack.c.bf16 %v1312, %v1308
        %v1318 = vld [vmem:[%s5] sm:$0xff]
        %v1319 = vld [vmem:[%s5 + $0x8] sm:$0xff]
        %v1320 = vld [vmem:[%s5 + $0x10] sm:$0xff]
        %v1321 = vld [vmem:[%s5 + $0x18] sm:$0xff]
        %v1322 = vld [vmem:[%s5 + $0x20] sm:$0xff]
        %v1323 = vld [vmem:[%s5 + $0x28] sm:$0xff]
        %v1324 = vld [vmem:[%s5 + $0x30] sm:$0xff]
        %v1325 = vld [vmem:[%s5 + $0x38] sm:$0xff]
        %v1326 = vld [vmem:[%s5 + $0x40] sm:$0xff]
        %v1327 = vld [vmem:[%s5 + $0x48] sm:$0xff]
        %v1328 = vld [vmem:[%s5 + $0x50] sm:$0xff]
        %v1329 = vld [vmem:[%s5 + $0x58] sm:$0xff]
        %v1330 = vld [vmem:[%s5 + $0x60] sm:$0xff]
        %v1331 = vld [vmem:[%s5 + $0x68] sm:$0xff]
        %v1332 = vld [vmem:[%s5 + $0x70] sm:$0xff]
        %v1333 = vld [vmem:[%s5 + $0x78] sm:$0xff]
        %v1334 = vld [vmem:[%s5 + $0x80] sm:$0xff]
        %v1335 = vld [vmem:[%s5 + $0x88] sm:$0xff]
        %v1336 = vld [vmem:[%s5 + $0x90] sm:$0xff]
        %v1337 = vld [vmem:[%s5 + $0x98] sm:$0xff]
        %v1338 = vld [vmem:[%s5 + $0xa0] sm:$0xff]
        %v1339 = vld [vmem:[%s5 + $0xa8] sm:$0xff]
        %v1340 = vld [vmem:[%s5 + $0xb0] sm:$0xff]
        %v1341 = vld [vmem:[%s5 + $0xb8] sm:$0xff]
        %v1342 = vld [vmem:[%s5 + $0xc0] sm:$0xff]
        %v1343 = vld [vmem:[%s5 + $0xc8] sm:$0xff]
        %v1344 = vld [vmem:[%s5 + $0xd0] sm:$0xff]
        %v1345 = vld [vmem:[%s5 + $0xd8] sm:$0xff]
        %v1346 = vld [vmem:[%s5 + $0xe0] sm:$0xff]
        %v1347 = vld [vmem:[%s5 + $0xe8] sm:$0xff]
        %v1348 = vld [vmem:[%s5 + $0xf0] sm:$0xff]
        %v1349 = vld [vmem:[%s5 + $0xf8] sm:$0xff]
        %v1350 = vld [vmem:[%s5 + $0x100] sm:$0xff]
        %v1351 = vld [vmem:[%s5 + $0x108] sm:$0xff]
        %v1352 = vld [vmem:[%s5 + $0x110] sm:$0xff]
        %v1353 = vld [vmem:[%s5 + $0x118] sm:$0xff]
        %v1354 = vld [vmem:[%s5 + $0x120] sm:$0xff]
        %v1355 = vld [vmem:[%s5 + $0x128] sm:$0xff]
        %v1356 = vld [vmem:[%s5 + $0x130] sm:$0xff]
        %v1357 = vld [vmem:[%s5 + $0x138] sm:$0xff]
        %v1358 = vld [vmem:[%s5 + $0x140] sm:$0xff]
        %v1359 = vld [vmem:[%s5 + $0x148] sm:$0xff]
        %v1360 = vld [vmem:[%s5 + $0x150] sm:$0xff]
        %v1361 = vld [vmem:[%s5 + $0x158] sm:$0xff]
        %v1362 = vld [vmem:[%s5 + $0x160] sm:$0xff]
        %v1363 = vld [vmem:[%s5 + $0x168] sm:$0xff]
        %v1364 = vld [vmem:[%s5 + $0x170] sm:$0xff]
        %v1365 = vld [vmem:[%s5 + $0x178] sm:$0xff]
        %v1366 = vld [vmem:[%s5 + $0x180] sm:$0xff]
        %v1367 = vld [vmem:[%s5 + $0x188] sm:$0xff]
        %v1368 = vld [vmem:[%s5 + $0x190] sm:$0xff]
        %v1369 = vld [vmem:[%s5 + $0x198] sm:$0xff]
        %v1370 = vld [vmem:[%s5 + $0x1a0] sm:$0xff]
        %v1371 = vld [vmem:[%s5 + $0x1a8] sm:$0xff]
        %v1372 = vld [vmem:[%s5 + $0x1b0] sm:$0xff]
        %v1373 = vld [vmem:[%s5 + $0x1b8] sm:$0xff]
        %v1374 = vld [vmem:[%s5 + $0x1c0] sm:$0xff]
        %v1375 = vld [vmem:[%s5 + $0x1c8] sm:$0xff]
        %v1376 = vld [vmem:[%s5 + $0x1d0] sm:$0xff]
        %v1377 = vld [vmem:[%s5 + $0x1d8] sm:$0xff]
        %v1378 = vld [vmem:[%s5 + $0x1e0] sm:$0xff]
        %v1379 = vld [vmem:[%s5 + $0x1e8] sm:$0xff]
        %v1380 = vld [vmem:[%s5 + $0x1f0] sm:$0xff]
        %v1381 = vld [vmem:[%s5 + $0x1f8] sm:$0xff]
        %v1382 = vld [vmem:[%s6] sm:$0xff]
        %v1383 = vld [vmem:[%s6 + $0x8] sm:$0xff]
        %v1384 = vld [vmem:[%s6 + $0x10] sm:$0xff]
        %v1385 = vld [vmem:[%s6 + $0x18] sm:$0xff]
        %v1386 = vld [vmem:[%s6 + $0x20] sm:$0xff]
        %v1387 = vld [vmem:[%s6 + $0x28] sm:$0xff]
        %v1388 = vld [vmem:[%s6 + $0x30] sm:$0xff]
        %v1389 = vld [vmem:[%s6 + $0x38] sm:$0xff]
        %v1390 = vld [vmem:[%s11] sm:$0xff]
        %v1391 = vld [vmem:[%s552] sm:$0xf]
        %v1392 = vld [vmem:[%s552 + $0x4] sm:$0xf]
        %v1393 = vld [vmem:[%s8] sm:$0xf]
        %v1394 = vld [vmem:[%s8 + $0x4] sm:$0xf]
        %v1395 = vld [vmem:[%s8 + $0x8] sm:$0xf]
        %v1396 = vld [vmem:[%s8 + $0xc] sm:$0xf]
        %v1397 = vld [vmem:[%s8 + $0x10] sm:$0xf]
        %v1398 = vld [vmem:[%s8 + $0x14] sm:$0xf]
        %v1399 = vld [vmem:[%s8 + $0x18] sm:$0xf]
        %v1400 = vld [vmem:[%s8 + $0x1c] sm:$0xf]
        %v1401 = vld [vmem:[%s12] sm:$0x1]
        %v1403 = vlaneseq
        %v1404 = vshrl.u32 %v1403, 7
        %v1405 = vsub.s32 0, %v1404
        %v1406 = vrot.slane %v1401, %v1405
        %v1410 = vunpack.c.l.b16 %v1391
        %v1411 = vunpack.c.l.b16 %v1392
        %v1412 = vpack.c.b16 %v1411, %v1410
        %v1421 = vunpack.c.l.b16 %v1393
        %v1422 = vunpack.c.l.b16 %v1394
        %v1423 = vunpack.c.l.b16 %v1395
        %v1424 = vunpack.c.l.b16 %v1396
        %v1425 = vunpack.c.l.b16 %v1397
        %v1426 = vunpack.c.l.b16 %v1398
        %v1427 = vunpack.c.l.b16 %v1399
        %v1428 = vunpack.c.l.b16 %v1400
        %v1429 = vpack.c.b16 %v1422, %v1421
        %v1430 = vpack.c.b16 %v1424, %v1423
        %v1431 = vpack.c.b16 %v1426, %v1425
        %v1432 = vpack.c.b16 %v1428, %v1427
        %vm1437 = vcmask 523264
        %v1439 = vsel %vm1437, %v1412, 0
        %1441 = vmatprep.subr.bf16.mxu0 0
        %1442 = vmatpush1.bf16.msra.mxu0 %v1429
        %1443 = vmatprep.subr.bf16.mxu0 0
        %1444 = vmatpush1.bf16.msra.mxu0 %v1430
        %1445 = vmatprep.subr.bf16.mxu0 0
        %1446 = vmatpush1.bf16.msra.mxu0 %v1431
        %1447 = vmatprep.subr.bf16.mxu0 0
        %1448 = vmatpush1.bf16.msra.mxu0 %v1432
        %1449 = vmatprep.subr.bf16.mxu0 0
        %1450 = vmatpush1.bf16.msra.mxu0 0
        %1451 = vmatprep.subr.bf16.mxu0 0
        %1452 = vmatpush1.bf16.msra.mxu0 0
        %1453 = vmatprep.subr.bf16.mxu0 0
        %1454 = vmatpush1.bf16.msra.mxu0 0
        %1455 = vmatprep.subr.bf16.mxu0 0
        %1456 = vmatpush1.bf16.msra.mxu0 0
        %1457 = vmatprep.subr.bf16.mxu0 0
        %1458 = vmatpush1.bf16.msra.mxu0 0
        %1459 = vmatprep.subr.bf16.mxu0 0
        %1460 = vmatpush1.bf16.msra.mxu0 0
        %1461 = vmatprep.subr.bf16.mxu0 0
        %1462 = vmatpush1.bf16.msra.mxu0 0
        %1463 = vmatprep.subr.bf16.mxu0 0
        %1464 = vmatpush1.bf16.msra.mxu0 0
        %1465 = vmatprep.subr.bf16.mxu0 0
        %1466 = vmatpush1.bf16.msra.mxu0 0
        %1467 = vmatprep.subr.bf16.mxu0 0
        %1468 = vmatpush1.bf16.msra.mxu0 0
        %1469 = vmatprep.subr.bf16.mxu0 0
        %1470 = vmatpush1.bf16.msra.mxu0 0
        %1471 = vmatprep.subr.bf16.mxu0 0
        %1472 = vmatpush1.bf16.msra.mxu0 0
        %1473 = vmatprep.mubr.bf16.mxu0 0
        %1474 = vmatmul.mubr.bf16.gmra.mrb[0].mxu0 %v1439
        %v1475 = vpop.f32.mrb[0].mxu0
        %v1476 = vadd.f32 %v1406, %v1475
        %v1477 = vpop.f32.mrb[0].mxu0
        %v1478 = vpop.f32.mrb[0].mxu0
        %v1479 = vadd.f32 %v1406, %v1478
        %v1480 = vpop.f32.mrb[0].mxu0
        %1481 = vdwg.mxu0
        %v1482 = vld [vmem:[%s488] sm:$0xf]
        %v1483 = vld [vmem:[%s488 + $0x4] sm:$0xf]
        %v1486 = vunpack.c.l.b16 %v1482
        %v1487 = vunpack.c.l.b16 %v1483
        %v1488 = vpack.c.b16 %v1487, %v1486
        %v1497 = vunpack.c.l.b16 %v1382
        %v1498 = vunpack.c.h.b16 %v1382
        %v1499 = vunpack.c.l.b16 %v1383
        %v1500 = vunpack.c.h.b16 %v1383
        %v1501 = vunpack.c.l.b16 %v1384
        %v1502 = vunpack.c.h.b16 %v1384
        %v1503 = vunpack.c.l.b16 %v1385
        %v1504 = vunpack.c.h.b16 %v1385
        %v1505 = vunpack.c.l.b16 %v1386
        %v1506 = vunpack.c.h.b16 %v1386
        %v1507 = vunpack.c.l.b16 %v1387
        %v1508 = vunpack.c.h.b16 %v1387
        %v1509 = vunpack.c.l.b16 %v1388
        %v1510 = vunpack.c.h.b16 %v1388
        %v1511 = vunpack.c.l.b16 %v1389
        %v1512 = vunpack.c.h.b16 %v1389
        %v1513 = vpack.c.b16 %v1505, %v1497
        %v1514 = vpack.c.b16 %v1506, %v1498
        %v1515 = vpack.c.b16 %v1507, %v1499
        %v1516 = vpack.c.b16 %v1508, %v1500
        %v1517 = vpack.c.b16 %v1509, %v1501
        %v1518 = vpack.c.b16 %v1510, %v1502
        %v1519 = vpack.c.b16 %v1511, %v1503
        %v1520 = vpack.c.b16 %v1512, %v1504
        %vm1529 = vcmask 130048
        %v1531 = vsel %vm1529, %v1488, 0
        %1533 = vmatprep.subr.bf16.mxu0 %v1514
        %1534 = vmatpush1.bf16.msra.mxu0 %v1513
        %1535 = vmatprep.subr.bf16.mxu0 0
        %1536 = vmatpush1.bf16.msra.mxu0 0
        %1537 = vmatprep.subr.bf16.mxu0 0
        %1538 = vmatpush1.bf16.msra.mxu0 0
        %1539 = vmatprep.subr.bf16.mxu0 0
        %1540 = vmatpush1.bf16.msra.mxu0 0
        %1541 = vmatprep.subr.bf16.mxu0 0
        %1542 = vmatpush1.bf16.msra.mxu0 0
        %1543 = vmatprep.subr.bf16.mxu0 0
        %1544 = vmatpush1.bf16.msra.mxu0 0
        %1545 = vmatprep.subr.bf16.mxu0 0
        %1546 = vmatpush1.bf16.msra.mxu0 0
        %1547 = vmatprep.subr.bf16.mxu0 0
        %1548 = vmatpush1.bf16.msra.mxu0 0
        %1549 = vmatprep.subr.bf16.mxu0 0
        %1550 = vmatpush1.bf16.msra.mxu0 0
        %1551 = vmatprep.subr.bf16.mxu0 0
        %1552 = vmatpush1.bf16.msra.mxu0 0
        %1553 = vmatprep.subr.bf16.mxu0 0
        %1554 = vmatpush1.bf16.msra.mxu0 0
        %1555 = vmatprep.subr.bf16.mxu0 0
        %1556 = vmatpush1.bf16.msra.mxu0 0
        %1557 = vmatprep.subr.bf16.mxu0 0
        %1558 = vmatpush1.bf16.msra.mxu0 0
        %1559 = vmatprep.subr.bf16.mxu0 0
        %1560 = vmatpush1.bf16.msra.mxu0 0
        %1561 = vmatprep.subr.bf16.mxu0 0
        %1562 = vmatpush1.bf16.msra.mxu0 0
        %1563 = vmatprep.subr.bf16.mxu0 0
        %1564 = vmatpush1.bf16.msra.mxu0 0
        %1565 = vmatprep.mubr.bf16.mxu0 0
        %1566 = vmatmul.mubr.bf16.gmra.mrb[0].mxu0 %v1531
        %v1567 = vpop.f32.mrb[0].mxu0
        %v1568 = vadd.f32 0.0, %v1567
        %v1569 = vpop.f32.mrb[0].mxu0
        %v1570 = vadd.f32 0.0, %v1569
        %v1571 = vpop.f32.mrb[0].mxu0
        %v1572 = vadd.f32 0.0, %v1571
        %v1573 = vpop.f32.mrb[0].mxu0
        %v1574 = vadd.f32 0.0, %v1573
        %1575 = vdwg.mxu0
        %1576 = vmatprep.subr.bf16.mxu0 %v1516
        %1577 = vmatpush1.bf16.msra.mxu0 %v1515
        %1578 = vmatprep.subr.bf16.mxu0 0
        %1579 = vmatpush1.bf16.msra.mxu0 0
        %1580 = vmatprep.subr.bf16.mxu0 0
        %1581 = vmatpush1.bf16.msra.mxu0 0
        %1582 = vmatprep.subr.bf16.mxu0 0
        %1583 = vmatpush1.bf16.msra.mxu0 0
        %1584 = vmatprep.subr.bf16.mxu0 0
        %1585 = vmatpush1.bf16.msra.mxu0 0
        %1586 = vmatprep.subr.bf16.mxu0 0
        %1587 = vmatpush1.bf16.msra.mxu0 0
        %1588 = vmatprep.subr.bf16.mxu0 0
        %1589 = vmatpush1.bf16.msra.mxu0 0
        %1590 = vmatprep.subr.bf16.mxu0 0
        %1591 = vmatpush1.bf16.msra.mxu0 0
        %1592 = vmatprep.subr.bf16.mxu0 0
        %1593 = vmatpush1.bf16.msra.mxu0 0
        %1594 = vmatprep.subr.bf16.mxu0 0
        %1595 = vmatpush1.bf16.msra.mxu0 0
        %1596 = vmatprep.subr.bf16.mxu0 0
        %1597 = vmatpush1.bf16.msra.mxu0 0
        %1598 = vmatprep.subr.bf16.mxu0 0
        %1599 = vmatpush1.bf16.msra.mxu0 0
        %1600 = vmatprep.subr.bf16.mxu0 0
        %1601 = vmatpush1.bf16.msra.mxu0 0
        %1602 = vmatprep.subr.bf16.mxu0 0
        %1603 = vmatpush1.bf16.msra.mxu0 0
        %1604 = vmatprep.subr.bf16.mxu0 0
        %1605 = vmatpush1.bf16.msra.mxu0 0
        %1606 = vmatprep.subr.bf16.mxu0 0
        %1607 = vmatpush1.bf16.msra.mxu0 0
        %1608 = vmatprep.mubr.bf16.mxu0 0
        %1609 = vmatmul.mubr.bf16.gmra.mrb[0].mxu0 %v1531
        %v1610 = vpop.f32.mrb[0].mxu0
        %v1611 = vadd.f32 0.0, %v1610
        %v1612 = vpop.f32.mrb[0].mxu0
        %v1613 = vadd.f32 0.0, %v1612
        %v1614 = vpop.f32.mrb[0].mxu0
        %v1615 = vadd.f32 0.0, %v1614
        %v1616 = vpop.f32.mrb[0].mxu0
        %v1617 = vadd.f32 0.0, %v1616
        %1618 = vdwg.mxu0
        %1619 = vmatprep.subr.bf16.mxu0 %v1518
        %1620 = vmatpush1.bf16.msra.mxu0 %v1517
        %1621 = vmatprep.subr.bf16.mxu0 0
        %1622 = vmatpush1.bf16.msra.mxu0 0
        %1623 = vmatprep.subr.bf16.mxu0 0
        %1624 = vmatpush1.bf16.msra.mxu0 0
        %1625 = vmatprep.subr.bf16.mxu0 0
        %1626 = vmatpush1.bf16.msra.mxu0 0
        %1627 = vmatprep.subr.bf16.mxu0 0
        %1628 = vmatpush1.bf16.msra.mxu0 0
        %1629 = vmatprep.subr.bf16.mxu0 0
        %1630 = vmatpush1.bf16.msra.mxu0 0
        %1631 = vmatprep.subr.bf16.mxu0 0
        %1632 = vmatpush1.bf16.msra.mxu0 0
        %1633 = vmatprep.subr.bf16.mxu0 0
        %1634 = vmatpush1.bf16.msra.mxu0 0
        %1635 = vmatprep.subr.bf16.mxu0 0
        %1636 = vmatpush1.bf16.msra.mxu0 0
        %1637 = vmatprep.subr.bf16.mxu0 0
        %1638 = vmatpush1.bf16.msra.mxu0 0
        %1639 = vmatprep.subr.bf16.mxu0 0
        %1640 = vmatpush1.bf16.msra.mxu0 0
        %1641 = vmatprep.subr.bf16.mxu0 0
        %1642 = vmatpush1.bf16.msra.mxu0 0
        %1643 = vmatprep.subr.bf16.mxu0 0
        %1644 = vmatpush1.bf16.msra.mxu0 0
        %1645 = vmatprep.subr.bf16.mxu0 0
        %1646 = vmatpush1.bf16.msra.mxu0 0
        %1647 = vmatprep.subr.bf16.mxu0 0
        %1648 = vmatpush1.bf16.msra.mxu0 0
        %1649 = vmatprep.subr.bf16.mxu0 0
        %1650 = vmatpush1.bf16.msra.mxu0 0
        %1651 = vmatprep.mubr.bf16.mxu0 0
        %1652 = vmatmul.mubr.bf16.gmra.mrb[0].mxu0 %v1531
        %v1653 = vpop.f32.mrb[0].mxu0
        %v1654 = vadd.f32 0.0, %v1653
        %v1655 = vpop.f32.mrb[0].mxu0
        %v1656 = vadd.f32 0.0, %v1655
        %v1657 = vpop.f32.mrb[0].mxu0
        %v1658 = vadd.f32 0.0, %v1657
        %v1659 = vpop.f32.mrb[0].mxu0
        %v1660 = vadd.f32 0.0, %v1659
        %1661 = vdwg.mxu0
        %1662 = vmatprep.subr.bf16.mxu0 %v1520
        %1663 = vmatpush1.bf16.msra.mxu0 %v1519
        %1664 = vmatprep.subr.bf16.mxu0 0
        %1665 = vmatpush1.bf16.msra.mxu0 0
        %1666 = vmatprep.subr.bf16.mxu0 0
        %1667 = vmatpush1.bf16.msra.mxu0 0
        %1668 = vmatprep.subr.bf16.mxu0 0
        %1669 = vmatpush1.bf16.msra.mxu0 0
        %1670 = vmatprep.subr.bf16.mxu0 0
        %1671 = vmatpush1.bf16.msra.mxu0 0
        %1672 = vmatprep.subr.bf16.mxu0 0
        %1673 = vmatpush1.bf16.msra.mxu0 0
        %1674 = vmatprep.subr.bf16.mxu0 0
        %1675 = vmatpush1.bf16.msra.mxu0 0
        %1676 = vmatprep.subr.bf16.mxu0 0
        %1677 = vmatpush1.bf16.msra.mxu0 0
        %1678 = vmatprep.subr.bf16.mxu0 0
        %1679 = vmatpush1.bf16.msra.mxu0 0
        %1680 = vmatprep.subr.bf16.mxu0 0
        %1681 = vmatpush1.bf16.msra.mxu0 0
        %1682 = vmatprep.subr.bf16.mxu0 0
        %1683 = vmatpush1.bf16.msra.mxu0 0
        %1684 = vmatprep.subr.bf16.mxu0 0
        %1685 = vmatpush1.bf16.msra.mxu0 0
        %1686 = vmatprep.subr.bf16.mxu0 0
        %1687 = vmatpush1.bf16.msra.mxu0 0
        %1688 = vmatprep.subr.bf16.mxu0 0
        %1689 = vmatpush1.bf16.msra.mxu0 0
        %1690 = vmatprep.subr.bf16.mxu0 0
        %1691 = vmatpush1.bf16.msra.mxu0 0
        %1692 = vmatprep.subr.bf16.mxu0 0
        %1693 = vmatpush1.bf16.msra.mxu0 0
        %1694 = vmatprep.mubr.bf16.mxu0 0
        %1695 = vmatmul.mubr.bf16.gmra.mrb[0].mxu0 %v1531
        %v1696 = vpop.f32.mrb[0].mxu0
        %v1697 = vadd.f32 0.0, %v1696
        %v1698 = vpop.f32.mrb[0].mxu0
        %v1699 = vadd.f32 0.0, %v1698
        %v1700 = vpop.f32.mrb[0].mxu0
        %v1701 = vadd.f32 0.0, %v1700
        %v1702 = vpop.f32.mrb[0].mxu0
        %v1703 = vadd.f32 0.0, %v1702
        %1704 = vdwg.mxu0
        %v1769 = vunpack.c.l.b16 %v1318
        %v1770 = vunpack.c.h.b16 %v1318
        %v1771 = vunpack.c.l.b16 %v1319
        %v1772 = vunpack.c.h.b16 %v1319
        %v1773 = vunpack.c.l.b16 %v1320
        %v1774 = vunpack.c.h.b16 %v1320
        %v1775 = vunpack.c.l.b16 %v1321
        %v1776 = vunpack.c.h.b16 %v1321
        %v1777 = vunpack.c.l.b16 %v1322
        %v1778 = vunpack.c.h.b16 %v1322
        %v1779 = vunpack.c.l.b16 %v1323
        %v1780 = vunpack.c.h.b16 %v1323
        %v1781 = vunpack.c.l.b16 %v1324
        %v1782 = vunpack.c.h.b16 %v1324
        %v1783 = vunpack.c.l.b16 %v1325
        %v1784 = vunpack.c.h.b16 %v1325
        %v1785 = vunpack.c.l.b16 %v1326
        %v1786 = vunpack.c.h.b16 %v1326
        %v1787 = vunpack.c.l.b16 %v1327
        %v1788 = vunpack.c.h.b16 %v1327
        %v1789 = vunpack.c.l.b16 %v1328
        %v1790 = vunpack.c.h.b16 %v1328
        %v1791 = vunpack.c.l.b16 %v1329
        %v1792 = vunpack.c.h.b16 %v1329
        %v1793 = vunpack.c.l.b16 %v1330
        %v1794 = vunpack.c.h.b16 %v1330
        %v1795 = vunpack.c.l.b16 %v1331
        %v1796 = vunpack.c.h.b16 %v1331
        %v1797 = vunpack.c.l.b16 %v1332
        %v1798 = vunpack.c.h.b16 %v1332
        %v1799 = vunpack.c.l.b16 %v1333
        %v1800 = vunpack.c.h.b16 %v1333
        %v1801 = vunpack.c.l.b16 %v1334
        %v1802 = vunpack.c.h.b16 %v1334
        %v1803 = vunpack.c.l.b16 %v1335
        %v1804 = vunpack.c.h.b16 %v1335
        %v1805 = vunpack.c.l.b16 %v1336
        %v1806 = vunpack.c.h.b16 %v1336
        %v1807 = vunpack.c.l.b16 %v1337
        %v1808 = vunpack.c.h.b16 %v1337
        %v1809 = vunpack.c.l.b16 %v1338
        %v1810 = vunpack.c.h.b16 %v1338
        %v1811 = vunpack.c.l.b16 %v1339
        %v1812 = vunpack.c.h.b16 %v1339
        %v1813 = vunpack.c.l.b16 %v1340
        %v1814 = vunpack.c.h.b16 %v1340
        %v1815 = vunpack.c.l.b16 %v1341
        %v1816 = vunpack.c.h.b16 %v1341
        %v1817 = vunpack.c.l.b16 %v1342
        %v1818 = vunpack.c.h.b16 %v1342
        %v1819 = vunpack.c.l.b16 %v1343
        %v1820 = vunpack.c.h.b16 %v1343
        %v1821 = vunpack.c.l.b16 %v1344
        %v1822 = vunpack.c.h.b16 %v1344
        %v1823 = vunpack.c.l.b16 %v1345
        %v1824 = vunpack.c.h.b16 %v1345
        %v1825 = vunpack.c.l.b16 %v1346
        %v1826 = vunpack.c.h.b16 %v1346
        %v1827 = vunpack.c.l.b16 %v1347
        %v1828 = vunpack.c.h.b16 %v1347
        %v1829 = vunpack.c.l.b16 %v1348
        %v1830 = vunpack.c.h.b16 %v1348
        %v1831 = vunpack.c.l.b16 %v1349
        %v1832 = vunpack.c.h.b16 %v1349
        %v1833 = vunpack.c.l.b16 %v1350
        %v1834 = vunpack.c.h.b16 %v1350
        %v1835 = vunpack.c.l.b16 %v1351
        %v1836 = vunpack.c.h.b16 %v1351
        %v1837 = vunpack.c.l.b16 %v1352
        %v1838 = vunpack.c.h.b16 %v1352
        %v1839 = vunpack.c.l.b16 %v1353
        %v1840 = vunpack.c.h.b16 %v1353
        %v1841 = vunpack.c.l.b16 %v1354
        %v1842 = vunpack.c.h.b16 %v1354
        %v1843 = vunpack.c.l.b16 %v1355
        %v1844 = vunpack.c.h.b16 %v1355
        %v1845 = vunpack.c.l.b16 %v1356
        %v1846 = vunpack.c.h.b16 %v1356
        %v1847 = vunpack.c.l.b16 %v1357
        %v1848 = vunpack.c.h.b16 %v1357
        %v1849 = vunpack.c.l.b16 %v1358
        %v1850 = vunpack.c.h.b16 %v1358
        %v1851 = vunpack.c.l.b16 %v1359
        %v1852 = vunpack.c.h.b16 %v1359
        %v1853 = vunpack.c.l.b16 %v1360
        %v1854 = vunpack.c.h.b16 %v1360
        %v1855 = vunpack.c.l.b16 %v1361
        %v1856 = vunpack.c.h.b16 %v1361
        %v1857 = vunpack.c.l.b16 %v1362
        %v1858 = vunpack.c.h.b16 %v1362
        %v1859 = vunpack.c.l.b16 %v1363
        %v1860 = vunpack.c.h.b16 %v1363
        %v1861 = vunpack.c.l.b16 %v1364
        %v1862 = vunpack.c.h.b16 %v1364
        %v1863 = vunpack.c.l.b16 %v1365
        %v1864 = vunpack.c.h.b16 %v1365
        %v1865 = vunpack.c.l.b16 %v1366
        %v1866 = vunpack.c.h.b16 %v1366
        %v1867 = vunpack.c.l.b16 %v1367
        %v1868 = vunpack.c.h.b16 %v1367
        %v1869 = vunpack.c.l.b16 %v1368
        %v1870 = vunpack.c.h.b16 %v1368
        %v1871 = vunpack.c.l.b16 %v1369
        %v1872 = vunpack.c.h.b16 %v1369
        %v1873 = vunpack.c.l.b16 %v1370
        %v1874 = vunpack.c.h.b16 %v1370
        %v1875 = vunpack.c.l.b16 %v1371
        %v1876 = vunpack.c.h.b16 %v1371
        %v1877 = vunpack.c.l.b16 %v1372
        %v1878 = vunpack.c.h.b16 %v1372
        %v1879 = vunpack.c.l.b16 %v1373
        %v1880 = vunpack.c.h.b16 %v1373
        %v1881 = vunpack.c.l.b16 %v1374
        %v1882 = vunpack.c.h.b16 %v1374
        %v1883 = vunpack.c.l.b16 %v1375
        %v1884 = vunpack.c.h.b16 %v1375
        %v1885 = vunpack.c.l.b16 %v1376
        %v1886 = vunpack.c.h.b16 %v1376
        %v1887 = vunpack.c.l.b16 %v1377
        %v1888 = vunpack.c.h.b16 %v1377
        %v1889 = vunpack.c.l.b16 %v1378
        %v1890 = vunpack.c.h.b16 %v1378
        %v1891 = vunpack.c.l.b16 %v1379
        %v1892 = vunpack.c.h.b16 %v1379
        %v1893 = vunpack.c.l.b16 %v1380
        %v1894 = vunpack.c.h.b16 %v1380
        %v1895 = vunpack.c.l.b16 %v1381
        %v1896 = vunpack.c.h.b16 %v1381
        %v1897 = vpack.c.b16 %v1777, %v1769
        %v1898 = vpack.c.b16 %v1778, %v1770
        %v1899 = vpack.c.b16 %v1779, %v1771
        %v1900 = vpack.c.b16 %v1780, %v1772
        %v1901 = vpack.c.b16 %v1781, %v1773
        %v1902 = vpack.c.b16 %v1782, %v1774
        %v1903 = vpack.c.b16 %v1783, %v1775
        %v1904 = vpack.c.b16 %v1784, %v1776
        %v1905 = vpack.c.b16 %v1793, %v1785
        %v1906 = vpack.c.b16 %v1794, %v1786
        %v1907 = vpack.c.b16 %v1795, %v1787
        %v1908 = vpack.c.b16 %v1796, %v1788
        %v1909 = vpack.c.b16 %v1797, %v1789
        %v1910 = vpack.c.b16 %v1798, %v1790
        %v1911 = vpack.c.b16 %v1799, %v1791
        %v1912 = vpack.c.b16 %v1800, %v1792
        %v1913 = vpack.c.b16 %v1809, %v1801
        %v1914 = vpack.c.b16 %v1810, %v1802
        %v1915 = vpack.c.b16 %v1811, %v1803
        %v1916 = vpack.c.b16 %v1812, %v1804
        %v1917 = vpack.c.b16 %v1813, %v1805
        %v1918 = vpack.c.b16 %v1814, %v1806
        %v1919 = vpack.c.b16 %v1815, %v1807
        %v1920 = vpack.c.b16 %v1816, %v1808
        %v1921 = vpack.c.b16 %v1825, %v1817
        %v1922 = vpack.c.b16 %v1826, %v1818
        %v1923 = vpack.c.b16 %v1827, %v1819
        %v1924 = vpack.c.b16 %v1828, %v1820
        %v1925 = vpack.c.b16 %v1829, %v1821
        %v1926 = vpack.c.b16 %v1830, %v1822
        %v1927 = vpack.c.b16 %v1831, %v1823
        %v1928 = vpack.c.b16 %v1832, %v1824
        %v1929 = vpack.c.b16 %v1841, %v1833
        %v1930 = vpack.c.b16 %v1842, %v1834
        %v1931 = vpack.c.b16 %v1843, %v1835
        %v1932 = vpack.c.b16 %v1844, %v1836
        %v1933 = vpack.c.b16 %v1845, %v1837
        %v1934 = vpack.c.b16 %v1846, %v1838
        %v1935 = vpack.c.b16 %v1847, %v1839
        %v1936 = vpack.c.b16 %v1848, %v1840
        %v1937 = vpack.c.b16 %v1857, %v1849
        %v1938 = vpack.c.b16 %v1858, %v1850
        %v1939 = vpack.c.b16 %v1859, %v1851
        %v1940 = vpack.c.b16 %v1860, %v1852
        %v1941 = vpack.c.b16 %v1861, %v1853
        %v1942 = vpack.c.b16 %v1862, %v1854
        %v1943 = vpack.c.b16 %v1863, %v1855
        %v1944 = vpack.c.b16 %v1864, %v1856
        %v1945 = vpack.c.b16 %v1873, %v1865
        %v1946 = vpack.c.b16 %v1874, %v1866
        %v1947 = vpack.c.b16 %v1875, %v1867
        %v1948 = vpack.c.b16 %v1876, %v1868
        %v1949 = vpack.c.b16 %v1877, %v1869
        %v1950 = vpack.c.b16 %v1878, %v1870
        %v1951 = vpack.c.b16 %v1879, %v1871
        %v1952 = vpack.c.b16 %v1880, %v1872
        %v1953 = vpack.c.b16 %v1889, %v1881
        %v1954 = vpack.c.b16 %v1890, %v1882
        %v1955 = vpack.c.b16 %v1891, %v1883
        %v1956 = vpack.c.b16 %v1892, %v1884
        %v1957 = vpack.c.b16 %v1893, %v1885
        %v1958 = vpack.c.b16 %v1894, %v1886
        %v1959 = vpack.c.b16 %v1895, %v1887
        %v1960 = vpack.c.b16 %v1896, %v1888
        %2025 = vmatprep.subr.bf16.mxu0 %v1898
        %2026 = vmatpush1.bf16.msra.mxu0 %v1897
        %2027 = vmatprep.subr.bf16.mxu0 %v1906
        %2028 = vmatpush1.bf16.msra.mxu0 %v1905
        %2029 = vmatprep.subr.bf16.mxu0 %v1914
        %2030 = vmatpush1.bf16.msra.mxu0 %v1913
        %2031 = vmatprep.subr.bf16.mxu0 %v1922
        %2032 = vmatpush1.bf16.msra.mxu0 %v1921
        %2033 = vmatprep.subr.bf16.mxu0 %v1930
        %2034 = vmatpush1.bf16.msra.mxu0 %v1929
        %2035 = vmatprep.subr.bf16.mxu0 %v1938
        %2036 = vmatpush1.bf16.msra.mxu0 %v1937
        %2037 = vmatprep.subr.bf16.mxu0 %v1946
        %2038 = vmatpush1.bf16.msra.mxu0 %v1945
        %2039 = vmatprep.subr.bf16.mxu0 %v1954
        %2040 = vmatpush1.bf16.msra.mxu0 %v1953
        %2041 = vmatprep.subr.bf16.mxu0 0
        %2042 = vmatpush1.bf16.msra.mxu0 0
        %2043 = vmatprep.subr.bf16.mxu0 0
        %2044 = vmatpush1.bf16.msra.mxu0 0
        %2045 = vmatprep.subr.bf16.mxu0 0
        %2046 = vmatpush1.bf16.msra.mxu0 0
        %2047 = vmatprep.subr.bf16.mxu0 0
        %2048 = vmatpush1.bf16.msra.mxu0 0
        %2049 = vmatprep.subr.bf16.mxu0 0
        %2050 = vmatpush1.bf16.msra.mxu0 0
        %2051 = vmatprep.subr.bf16.mxu0 0
        %2052 = vmatpush1.bf16.msra.mxu0 0
        %2053 = vmatprep.subr.bf16.mxu0 0
        %2054 = vmatpush1.bf16.msra.mxu0 0
        %2055 = vmatprep.subr.bf16.mxu0 0
        %2056 = vmatpush1.bf16.msra.mxu0 0
        %2057 = vmatprep.mubr.bf16.mxu0 0
        %2058 = vmatmul.mubr.bf16.gmra.mrb[0].mxu0 %v1314
        %v2059 = vpop.f32.mrb[0].mxu0
        %v2060 = vadd.f32 %v1568, %v2059
        %v2061 = vpop.f32.mrb[0].mxu0
        %v2062 = vadd.f32 %v1570, %v2061
        %v2063 = vpop.f32.mrb[0].mxu0
        %v2064 = vadd.f32 %v1572, %v2063
        %v2065 = vpop.f32.mrb[0].mxu0
        %v2066 = vadd.f32 %v1574, %v2065
        %2067 = vdwg.mxu0
        %2068 = vmatprep.subr.bf16.mxu0 %v1900
        %2069 = vmatpush1.bf16.msra.mxu0 %v1899
        %2070 = vmatprep.subr.bf16.mxu0 %v1908
        %2071 = vmatpush1.bf16.msra.mxu0 %v1907
        %2072 = vmatprep.subr.bf16.mxu0 %v1916
        %2073 = vmatpush1.bf16.msra.mxu0 %v1915
        %2074 = vmatprep.subr.bf16.mxu0 %v1924
        %2075 = vmatpush1.bf16.msra.mxu0 %v1923
        %2076 = vmatprep.subr.bf16.mxu0 %v1932
        %2077 = vmatpush1.bf16.msra.mxu0 %v1931
        %2078 = vmatprep.subr.bf16.mxu0 %v1940
        %2079 = vmatpush1.bf16.msra.mxu0 %v1939
        %2080 = vmatprep.subr.bf16.mxu0 %v1948
        %2081 = vmatpush1.bf16.msra.mxu0 %v1947
        %2082 = vmatprep.subr.bf16.mxu0 %v1956
        %2083 = vmatpush1.bf16.msra.mxu0 %v1955
        %2084 = vmatprep.subr.bf16.mxu0 0
        %2085 = vmatpush1.bf16.msra.mxu0 0
        %2086 = vmatprep.subr.bf16.mxu0 0
        %2087 = vmatpush1.bf16.msra.mxu0 0
        %2088 = vmatprep.subr.bf16.mxu0 0
        %2089 = vmatpush1.bf16.msra.mxu0 0
        %2090 = vmatprep.subr.bf16.mxu0 0
        %2091 = vmatpush1.bf16.msra.mxu0 0
        %2092 = vmatprep.subr.bf16.mxu0 0
        %2093 = vmatpush1.bf16.msra.mxu0 0
        %2094 = vmatprep.subr.bf16.mxu0 0
        %2095 = vmatpush1.bf16.msra.mxu0 0
        %2096 = vmatprep.subr.bf16.mxu0 0
        %2097 = vmatpush1.bf16.msra.mxu0 0
        %2098 = vmatprep.subr.bf16.mxu0 0
        %2099 = vmatpush1.bf16.msra.mxu0 0
        %2100 = vmatprep.mubr.bf16.mxu0 0
        %2101 = vmatmul.mubr.bf16.gmra.mrb[0].mxu0 %v1314
        %v2102 = vpop.f32.mrb[0].mxu0
        %v2103 = vadd.f32 %v1611, %v2102
        %v2104 = vpop.f32.mrb[0].mxu0
        %v2105 = vadd.f32 %v1613, %v2104
        %v2106 = vpop.f32.mrb[0].mxu0
        %v2107 = vadd.f32 %v1615, %v2106
        %v2108 = vpop.f32.mrb[0].mxu0
        %v2109 = vadd.f32 %v1617, %v2108
        %2110 = vdwg.mxu0
        %2111 = vmatprep.subr.bf16.mxu0 %v1902
        %2112 = vmatpush1.bf16.msra.mxu0 %v1901
        %2113 = vmatprep.subr.bf16.mxu0 %v1910
        %2114 = vmatpush1.bf16.msra.mxu0 %v1909
        %2115 = vmatprep.subr.bf16.mxu0 %v1918
        %2116 = vmatpush1.bf16.msra.mxu0 %v1917
        %2117 = vmatprep.subr.bf16.mxu0 %v1926
        %2118 = vmatpush1.bf16.msra.mxu0 %v1925
        %2119 = vmatprep.subr.bf16.mxu0 %v1934
        %2120 = vmatpush1.bf16.msra.mxu0 %v1933
        %2121 = vmatprep.subr.bf16.mxu0 %v1942
        %2122 = vmatpush1.bf16.msra.mxu0 %v1941
        %2123 = vmatprep.subr.bf16.mxu0 %v1950
        %2124 = vmatpush1.bf16.msra.mxu0 %v1949
        %2125 = vmatprep.subr.bf16.mxu0 %v1958
        %2126 = vmatpush1.bf16.msra.mxu0 %v1957
        %2127 = vmatprep.subr.bf16.mxu0 0
        %2128 = vmatpush1.bf16.msra.mxu0 0
        %2129 = vmatprep.subr.bf16.mxu0 0
        %2130 = vmatpush1.bf16.msra.mxu0 0
        %2131 = vmatprep.subr.bf16.mxu0 0
        %2132 = vmatpush1.bf16.msra.mxu0 0
        %2133 = vmatprep.subr.bf16.mxu0 0
        %2134 = vmatpush1.bf16.msra.mxu0 0
        %2135 = vmatprep.subr.bf16.mxu0 0
        %2136 = vmatpush1.bf16.msra.mxu0 0
        %2137 = vmatprep.subr.bf16.mxu0 0
        %2138 = vmatpush1.bf16.msra.mxu0 0
        %2139 = vmatprep.subr.bf16.mxu0 0
        %2140 = vmatpush1.bf16.msra.mxu0 0
        %2141 = vmatprep.subr.bf16.mxu0 0
        %2142 = vmatpush1.bf16.msra.mxu0 0
        %2143 = vmatprep.mubr.bf16.mxu0 0
        %2144 = vmatmul.mubr.bf16.gmra.mrb[0].mxu0 %v1314
        %v2145 = vpop.f32.mrb[0].mxu0
        %v2146 = vadd.f32 %v1654, %v2145
        %v2147 = vpop.f32.mrb[0].mxu0
        %v2148 = vadd.f32 %v1656, %v2147
        %v2149 = vpop.f32.mrb[0].mxu0
        %v2150 = vadd.f32 %v1658, %v2149
        %v2151 = vpop.f32.mrb[0].mxu0
        %v2152 = vadd.f32 %v1660, %v2151
        %2153 = vdwg.mxu0
        %2154 = vmatprep.subr.bf16.mxu0 %v1904
        %2155 = vmatpush1.bf16.msra.mxu0 %v1903
        %2156 = vmatprep.subr.bf16.mxu0 %v1912
        %2157 = vmatpush1.bf16.msra.mxu0 %v1911
        %2158 = vmatprep.subr.bf16.mxu0 %v1920
        %2159 = vmatpush1.bf16.msra.mxu0 %v1919
        %2160 = vmatprep.subr.bf16.mxu0 %v1928
        %2161 = vmatpush1.bf16.msra.mxu0 %v1927
        %2162 = vmatprep.subr.bf16.mxu0 %v1936
        %2163 = vmatpush1.bf16.msra.mxu0 %v1935
        %2164 = vmatprep.subr.bf16.mxu0 %v1944
        %2165 = vmatpush1.bf16.msra.mxu0 %v1943
        %2166 = vmatprep.subr.bf16.mxu0 %v1952
        %2167 = vmatpush1.bf16.msra.mxu0 %v1951
        %2168 = vmatprep.subr.bf16.mxu0 %v1960
        %2169 = vmatpush1.bf16.msra.mxu0 %v1959
        %2170 = vmatprep.subr.bf16.mxu0 0
        %2171 = vmatpush1.bf16.msra.mxu0 0
        %2172 = vmatprep.subr.bf16.mxu0 0
        %2173 = vmatpush1.bf16.msra.mxu0 0
        %2174 = vmatprep.subr.bf16.mxu0 0
        %2175 = vmatpush1.bf16.msra.mxu0 0
        %2176 = vmatprep.subr.bf16.mxu0 0
        %2177 = vmatpush1.bf16.msra.mxu0 0
        %2178 = vmatprep.subr.bf16.mxu0 0
        %2179 = vmatpush1.bf16.msra.mxu0 0
        %2180 = vmatprep.subr.bf16.mxu0 0
        %2181 = vmatpush1.bf16.msra.mxu0 0
        %2182 = vmatprep.subr.bf16.mxu0 0
        %2183 = vmatpush1.bf16.msra.mxu0 0
        %2184 = vmatprep.subr.bf16.mxu0 0
        %2185 = vmatpush1.bf16.msra.mxu0 0
        %2186 = vmatprep.mubr.bf16.mxu0 0
        %2187 = vmatmul.mubr.bf16.gmra.mrb[0].mxu0 %v1314
        %v2188 = vpop.f32.mrb[0].mxu0
        %v2189 = vadd.f32 %v1697, %v2188
        %v2190 = vpop.f32.mrb[0].mxu0
        %v2191 = vadd.f32 %v1699, %v2190
        %v2192 = vpop.f32.mrb[0].mxu0
        %v2193 = vadd.f32 %v1701, %v2192
        %v2194 = vpop.f32.mrb[0].mxu0
        %v2195 = vadd.f32 %v1703, %v2194
        %2196 = vdwg.mxu0
        %v2198 = vlaneseq
        %v2199 = vshrl.u32 %v2198, 7
        %v2200 = vsub.s32 0, %v2199
        %v2201 = vrot.slane %v1390, %v2200
        %v2202 = vlaneseq
        %v2203 = vshrl.u32 %v2202, 7
        %v2204 = vsub.s32 1, %v2203
        %v2205 = vrot.slane %v1390, %v2204
        %v2206 = vlaneseq
        %v2207 = vshrl.u32 %v2206, 7
        %v2208 = vsub.s32 2, %v2207
        %v2209 = vrot.slane %v1390, %v2208
        %v2210 = vlaneseq
        %v2211 = vshrl.u32 %v2210, 7
        %v2212 = vsub.s32 3, %v2211
        %v2213 = vrot.slane %v1390, %v2212
        %v2214 = vlaneseq
        %v2215 = vshrl.u32 %v2214, 7
        %v2216 = vsub.s32 4, %v2215
        %v2217 = vrot.slane %v1390, %v2216
        %v2218 = vlaneseq
        %v2219 = vshrl.u32 %v2218, 7
        %v2220 = vsub.s32 5, %v2219
        %v2221 = vrot.slane %v1390, %v2220
        %v2222 = vlaneseq
        %v2223 = vshrl.u32 %v2222, 7
        %v2224 = vsub.s32 6, %v2223
        %v2225 = vrot.slane %v1390, %v2224
        %v2226 = vlaneseq
        %v2227 = vshrl.u32 %v2226, 7
        %v2228 = vsub.s32 7, %v2227
        %v2229 = vrot.slane %v1390, %v2228
        %v2238 = vadd.f32 %v2060, %v2201
        %v2239 = vadd.f32 %v2062, %v2205
        %v2240 = vadd.f32 %v2103, %v2209
        %v2241 = vadd.f32 %v2105, %v2213
        %v2242 = vadd.f32 %v2146, %v2217
        %v2243 = vadd.f32 %v2148, %v2221
        %v2244 = vadd.f32 %v2189, %v2225
        %v2245 = vadd.f32 %v2191, %v2229
        %v2246 = vadd.f32 %v2064, %v2201
        %v2247 = vadd.f32 %v2066, %v2205
        %v2248 = vadd.f32 %v2107, %v2209
        %v2249 = vadd.f32 %v2109, %v2213
        %v2250 = vadd.f32 %v2150, %v2217
        %v2251 = vadd.f32 %v2152, %v2221
        %v2252 = vadd.f32 %v2193, %v2225
        %v2253 = vadd.f32 %v2195, %v2229
        %v2254 = vpack.c.bf16 %v2246, %v2238
        %v2255 = vpack.c.bf16 %v2247, %v2239
        %v2256 = vpack.c.bf16 %v2248, %v2240
        %v2257 = vpack.c.bf16 %v2249, %v2241
        %v2258 = vpack.c.bf16 %v2250, %v2242
        %v2259 = vpack.c.bf16 %v2251, %v2243
        %v2260 = vpack.c.bf16 %v2252, %v2244
        %v2261 = vpack.c.bf16 %v2253, %v2245
        %v2262 = vld [vmem:[%s7] sm:$0xf]
        %v2263 = vld [vmem:[%s7 + $0x4] sm:$0xf]
        %v2264 = vld [vmem:[%s7 + $0x8] sm:$0xf]
        %v2265 = vld [vmem:[%s7 + $0xc] sm:$0xf]
        %v2266 = vld [vmem:[%s7 + $0x10] sm:$0xf]
        %v2267 = vld [vmem:[%s7 + $0x14] sm:$0xf]
        %v2268 = vld [vmem:[%s7 + $0x18] sm:$0xf]
        %v2269 = vld [vmem:[%s7 + $0x1c] sm:$0xf]
        %v2270 = vld [vmem:[%s7 + $0x20] sm:$0xf]
        %v2271 = vld [vmem:[%s7 + $0x24] sm:$0xf]
        %v2272 = vld [vmem:[%s7 + $0x28] sm:$0xf]
        %v2273 = vld [vmem:[%s7 + $0x2c] sm:$0xf]
        %v2274 = vld [vmem:[%s7 + $0x30] sm:$0xf]
        %v2275 = vld [vmem:[%s7 + $0x34] sm:$0xf]
        %v2276 = vld [vmem:[%s7 + $0x38] sm:$0xf]
        %v2277 = vld [vmem:[%s7 + $0x3c] sm:$0xf]
        %v2278 = vld [vmem:[%s7 + $0x40] sm:$0xf]
        %v2279 = vld [vmem:[%s7 + $0x44] sm:$0xf]
        %v2280 = vld [vmem:[%s7 + $0x48] sm:$0xf]
        %v2281 = vld [vmem:[%s7 + $0x4c] sm:$0xf]
        %v2282 = vld [vmem:[%s7 + $0x50] sm:$0xf]
        %v2283 = vld [vmem:[%s7 + $0x54] sm:$0xf]
        %v2284 = vld [vmem:[%s7 + $0x58] sm:$0xf]
        %v2285 = vld [vmem:[%s7 + $0x5c] sm:$0xf]
        %v2286 = vld [vmem:[%s7 + $0x60] sm:$0xf]
        %v2287 = vld [vmem:[%s7 + $0x64] sm:$0xf]
        %v2288 = vld [vmem:[%s7 + $0x68] sm:$0xf]
        %v2289 = vld [vmem:[%s7 + $0x6c] sm:$0xf]
        %v2290 = vld [vmem:[%s7 + $0x70] sm:$0xf]
        %v2291 = vld [vmem:[%s7 + $0x74] sm:$0xf]
        %v2292 = vld [vmem:[%s7 + $0x78] sm:$0xf]
        %v2293 = vld [vmem:[%s7 + $0x7c] sm:$0xf]
        %v2294 = vld [vmem:[%s7 + $0x80] sm:$0xf]
        %v2295 = vld [vmem:[%s7 + $0x84] sm:$0xf]
        %v2296 = vld [vmem:[%s7 + $0x88] sm:$0xf]
        %v2297 = vld [vmem:[%s7 + $0x8c] sm:$0xf]
        %v2298 = vld [vmem:[%s7 + $0x90] sm:$0xf]
        %v2299 = vld [vmem:[%s7 + $0x94] sm:$0xf]
        %v2300 = vld [vmem:[%s7 + $0x98] sm:$0xf]
        %v2301 = vld [vmem:[%s7 + $0x9c] sm:$0xf]
        %v2302 = vld [vmem:[%s7 + $0xa0] sm:$0xf]
        %v2303 = vld [vmem:[%s7 + $0xa4] sm:$0xf]
        %v2304 = vld [vmem:[%s7 + $0xa8] sm:$0xf]
        %v2305 = vld [vmem:[%s7 + $0xac] sm:$0xf]
        %v2306 = vld [vmem:[%s7 + $0xb0] sm:$0xf]
        %v2307 = vld [vmem:[%s7 + $0xb4] sm:$0xf]
        %v2308 = vld [vmem:[%s7 + $0xb8] sm:$0xf]
        %v2309 = vld [vmem:[%s7 + $0xbc] sm:$0xf]
        %v2310 = vld [vmem:[%s7 + $0xc0] sm:$0xf]
        %v2311 = vld [vmem:[%s7 + $0xc4] sm:$0xf]
        %v2312 = vld [vmem:[%s7 + $0xc8] sm:$0xf]
        %v2313 = vld [vmem:[%s7 + $0xcc] sm:$0xf]
        %v2314 = vld [vmem:[%s7 + $0xd0] sm:$0xf]
        %v2315 = vld [vmem:[%s7 + $0xd4] sm:$0xf]
        %v2316 = vld [vmem:[%s7 + $0xd8] sm:$0xf]
        %v2317 = vld [vmem:[%s7 + $0xdc] sm:$0xf]
        %v2318 = vld [vmem:[%s7 + $0xe0] sm:$0xf]
        %v2319 = vld [vmem:[%s7 + $0xe4] sm:$0xf]
        %v2320 = vld [vmem:[%s7 + $0xe8] sm:$0xf]
        %v2321 = vld [vmem:[%s7 + $0xec] sm:$0xf]
        %v2322 = vld [vmem:[%s7 + $0xf0] sm:$0xf]
        %v2323 = vld [vmem:[%s7 + $0xf4] sm:$0xf]
        %v2324 = vld [vmem:[%s7 + $0xf8] sm:$0xf]
        %v2325 = vld [vmem:[%s7 + $0xfc] sm:$0xf]
        %v2326 = vld [vmem:[%s7 + $0x100] sm:$0xf]
        %v2327 = vld [vmem:[%s7 + $0x104] sm:$0xf]
        %v2328 = vld [vmem:[%s7 + $0x108] sm:$0xf]
        %v2329 = vld [vmem:[%s7 + $0x10c] sm:$0xf]
        %v2330 = vld [vmem:[%s7 + $0x110] sm:$0xf]
        %v2331 = vld [vmem:[%s7 + $0x114] sm:$0xf]
        %v2332 = vld [vmem:[%s7 + $0x118] sm:$0xf]
        %v2333 = vld [vmem:[%s7 + $0x11c] sm:$0xf]
        %v2334 = vld [vmem:[%s7 + $0x120] sm:$0xf]
        %v2335 = vld [vmem:[%s7 + $0x124] sm:$0xf]
        %v2336 = vld [vmem:[%s7 + $0x128] sm:$0xf]
        %v2337 = vld [vmem:[%s7 + $0x12c] sm:$0xf]
        %v2338 = vld [vmem:[%s7 + $0x130] sm:$0xf]
        %v2339 = vld [vmem:[%s7 + $0x134] sm:$0xf]
        %v2340 = vld [vmem:[%s7 + $0x138] sm:$0xf]
        %v2341 = vld [vmem:[%s7 + $0x13c] sm:$0xf]
        %v2342 = vld [vmem:[%s7 + $0x140] sm:$0xf]
        %v2343 = vld [vmem:[%s7 + $0x144] sm:$0xf]
        %v2344 = vld [vmem:[%s7 + $0x148] sm:$0xf]
        %v2345 = vld [vmem:[%s7 + $0x14c] sm:$0xf]
        %v2346 = vld [vmem:[%s7 + $0x150] sm:$0xf]
        %v2347 = vld [vmem:[%s7 + $0x154] sm:$0xf]
        %v2348 = vld [vmem:[%s7 + $0x158] sm:$0xf]
        %v2349 = vld [vmem:[%s7 + $0x15c] sm:$0xf]
        %v2350 = vld [vmem:[%s7 + $0x160] sm:$0xf]
        %v2351 = vld [vmem:[%s7 + $0x164] sm:$0xf]
        %v2352 = vld [vmem:[%s7 + $0x168] sm:$0xf]
        %v2353 = vld [vmem:[%s7 + $0x16c] sm:$0xf]
        %v2354 = vld [vmem:[%s7 + $0x170] sm:$0xf]
        %v2355 = vld [vmem:[%s7 + $0x174] sm:$0xf]
        %v2356 = vld [vmem:[%s7 + $0x178] sm:$0xf]
        %v2357 = vld [vmem:[%s7 + $0x17c] sm:$0xf]
        %v2358 = vld [vmem:[%s7 + $0x180] sm:$0xf]
        %v2359 = vld [vmem:[%s7 + $0x184] sm:$0xf]
        %v2360 = vld [vmem:[%s7 + $0x188] sm:$0xf]
        %v2361 = vld [vmem:[%s7 + $0x18c] sm:$0xf]
        %v2362 = vld [vmem:[%s7 + $0x190] sm:$0xf]
        %v2363 = vld [vmem:[%s7 + $0x194] sm:$0xf]
        %v2364 = vld [vmem:[%s7 + $0x198] sm:$0xf]
        %v2365 = vld [vmem:[%s7 + $0x19c] sm:$0xf]
        %v2366 = vld [vmem:[%s7 + $0x1a0] sm:$0xf]
        %v2367 = vld [vmem:[%s7 + $0x1a4] sm:$0xf]
        %v2368 = vld [vmem:[%s7 + $0x1a8] sm:$0xf]
        %v2369 = vld [vmem:[%s7 + $0x1ac] sm:$0xf]
        %v2370 = vld [vmem:[%s7 + $0x1b0] sm:$0xf]
        %v2371 = vld [vmem:[%s7 + $0x1b4] sm:$0xf]
        %v2372 = vld [vmem:[%s7 + $0x1b8] sm:$0xf]
        %v2373 = vld [vmem:[%s7 + $0x1bc] sm:$0xf]
        %v2374 = vld [vmem:[%s7 + $0x1c0] sm:$0xf]
        %v2375 = vld [vmem:[%s7 + $0x1c4] sm:$0xf]
        %v2376 = vld [vmem:[%s7 + $0x1c8] sm:$0xf]
        %v2377 = vld [vmem:[%s7 + $0x1cc] sm:$0xf]
        %v2378 = vld [vmem:[%s7 + $0x1d0] sm:$0xf]
        %v2379 = vld [vmem:[%s7 + $0x1d4] sm:$0xf]
        %v2380 = vld [vmem:[%s7 + $0x1d8] sm:$0xf]
        %v2381 = vld [vmem:[%s7 + $0x1dc] sm:$0xf]
        %v2382 = vld [vmem:[%s7 + $0x1e0] sm:$0xf]
        %v2383 = vld [vmem:[%s7 + $0x1e4] sm:$0xf]
        %v2384 = vld [vmem:[%s7 + $0x1e8] sm:$0xf]
        %v2385 = vld [vmem:[%s7 + $0x1ec] sm:$0xf]
        %v2386 = vld [vmem:[%s7 + $0x1f0] sm:$0xf]
        %v2387 = vld [vmem:[%s7 + $0x1f4] sm:$0xf]
        %v2388 = vld [vmem:[%s7 + $0x1f8] sm:$0xf]
        %v2389 = vld [vmem:[%s7 + $0x1fc] sm:$0xf]
        %v2518 = vunpack.c.l.b16 %v2262
        %v2519 = vunpack.c.l.b16 %v2263
        %v2520 = vunpack.c.l.b16 %v2264
        %v2521 = vunpack.c.l.b16 %v2265
        %v2522 = vunpack.c.l.b16 %v2266
        %v2523 = vunpack.c.l.b16 %v2267
        %v2524 = vunpack.c.l.b16 %v2268
        %v2525 = vunpack.c.l.b16 %v2269
        %v2526 = vunpack.c.l.b16 %v2270
        %v2527 = vunpack.c.l.b16 %v2271
        %v2528 = vunpack.c.l.b16 %v2272
        %v2529 = vunpack.c.l.b16 %v2273
        %v2530 = vunpack.c.l.b16 %v2274
        %v2531 = vunpack.c.l.b16 %v2275
        %v2532 = vunpack.c.l.b16 %v2276
        %v2533 = vunpack.c.l.b16 %v2277
        %v2534 = vunpack.c.l.b16 %v2278
        %v2535 = vunpack.c.l.b16 %v2279
        %v2536 = vunpack.c.l.b16 %v2280
        %v2537 = vunpack.c.l.b16 %v2281
        %v2538 = vunpack.c.l.b16 %v2282
        %v2539 = vunpack.c.l.b16 %v2283
        %v2540 = vunpack.c.l.b16 %v2284
        %v2541 = vunpack.c.l.b16 %v2285
        %v2542 = vunpack.c.l.b16 %v2286
        %v2543 = vunpack.c.l.b16 %v2287
        %v2544 = vunpack.c.l.b16 %v2288
        %v2545 = vunpack.c.l.b16 %v2289
        %v2546 = vunpack.c.l.b16 %v2290
        %v2547 = vunpack.c.l.b16 %v2291
        %v2548 = vunpack.c.l.b16 %v2292
        %v2549 = vunpack.c.l.b16 %v2293
        %v2550 = vunpack.c.l.b16 %v2294
        %v2551 = vunpack.c.l.b16 %v2295
        %v2552 = vunpack.c.l.b16 %v2296
        %v2553 = vunpack.c.l.b16 %v2297
        %v2554 = vunpack.c.l.b16 %v2298
        %v2555 = vunpack.c.l.b16 %v2299
        %v2556 = vunpack.c.l.b16 %v2300
        %v2557 = vunpack.c.l.b16 %v2301
        %v2558 = vunpack.c.l.b16 %v2302
        %v2559 = vunpack.c.l.b16 %v2303
        %v2560 = vunpack.c.l.b16 %v2304
        %v2561 = vunpack.c.l.b16 %v2305
        %v2562 = vunpack.c.l.b16 %v2306
        %v2563 = vunpack.c.l.b16 %v2307
        %v2564 = vunpack.c.l.b16 %v2308
        %v2565 = vunpack.c.l.b16 %v2309
        %v2566 = vunpack.c.l.b16 %v2310
        %v2567 = vunpack.c.l.b16 %v2311
        %v2568 = vunpack.c.l.b16 %v2312
        %v2569 = vunpack.c.l.b16 %v2313
        %v2570 = vunpack.c.l.b16 %v2314
        %v2571 = vunpack.c.l.b16 %v2315
        %v2572 = vunpack.c.l.b16 %v2316
        %v2573 = vunpack.c.l.b16 %v2317
        %v2574 = vunpack.c.l.b16 %v2318
        %v2575 = vunpack.c.l.b16 %v2319
        %v2576 = vunpack.c.l.b16 %v2320
        %v2577 = vunpack.c.l.b16 %v2321
        %v2578 = vunpack.c.l.b16 %v2322
        %v2579 = vunpack.c.l.b16 %v2323
        %v2580 = vunpack.c.l.b16 %v2324
        %v2581 = vunpack.c.l.b16 %v2325
        %v2582 = vunpack.c.l.b16 %v2326
        %v2583 = vunpack.c.l.b16 %v2327
        %v2584 = vunpack.c.l.b16 %v2328
        %v2585 = vunpack.c.l.b16 %v2329
        %v2586 = vunpack.c.l.b16 %v2330
        %v2587 = vunpack.c.l.b16 %v2331
        %v2588 = vunpack.c.l.b16 %v2332
        %v2589 = vunpack.c.l.b16 %v2333
        %v2590 = vunpack.c.l.b16 %v2334
        %v2591 = vunpack.c.l.b16 %v2335
        %v2592 = vunpack.c.l.b16 %v2336
        %v2593 = vunpack.c.l.b16 %v2337
        %v2594 = vunpack.c.l.b16 %v2338
        %v2595 = vunpack.c.l.b16 %v2339
        %v2596 = vunpack.c.l.b16 %v2340
        %v2597 = vunpack.c.l.b16 %v2341
        %v2598 = vunpack.c.l.b16 %v2342
        %v2599 = vunpack.c.l.b16 %v2343
        %v2600 = vunpack.c.l.b16 %v2344
        %v2601 = vunpack.c.l.b16 %v2345
        %v2602 = vunpack.c.l.b16 %v2346
        %v2603 = vunpack.c.l.b16 %v2347
        %v2604 = vunpack.c.l.b16 %v2348
        %v2605 = vunpack.c.l.b16 %v2349
        %v2606 = vunpack.c.l.b16 %v2350
        %v2607 = vunpack.c.l.b16 %v2351
        %v2608 = vunpack.c.l.b16 %v2352
        %v2609 = vunpack.c.l.b16 %v2353
        %v2610 = vunpack.c.l.b16 %v2354
        %v2611 = vunpack.c.l.b16 %v2355
        %v2612 = vunpack.c.l.b16 %v2356
        %v2613 = vunpack.c.l.b16 %v2357
        %v2614 = vunpack.c.l.b16 %v2358
        %v2615 = vunpack.c.l.b16 %v2359
        %v2616 = vunpack.c.l.b16 %v2360
        %v2617 = vunpack.c.l.b16 %v2361
        %v2618 = vunpack.c.l.b16 %v2362
        %v2619 = vunpack.c.l.b16 %v2363
        %v2620 = vunpack.c.l.b16 %v2364
        %v2621 = vunpack.c.l.b16 %v2365
        %v2622 = vunpack.c.l.b16 %v2366
        %v2623 = vunpack.c.l.b16 %v2367
        %v2624 = vunpack.c.l.b16 %v2368
        %v2625 = vunpack.c.l.b16 %v2369
        %v2626 = vunpack.c.l.b16 %v2370
        %v2627 = vunpack.c.l.b16 %v2371
        %v2628 = vunpack.c.l.b16 %v2372
        %v2629 = vunpack.c.l.b16 %v2373
        %v2630 = vunpack.c.l.b16 %v2374
        %v2631 = vunpack.c.l.b16 %v2375
        %v2632 = vunpack.c.l.b16 %v2376
        %v2633 = vunpack.c.l.b16 %v2377
        %v2634 = vunpack.c.l.b16 %v2378
        %v2635 = vunpack.c.l.b16 %v2379
        %v2636 = vunpack.c.l.b16 %v2380
        %v2637 = vunpack.c.l.b16 %v2381
        %v2638 = vunpack.c.l.b16 %v2382
        %v2639 = vunpack.c.l.b16 %v2383
        %v2640 = vunpack.c.l.b16 %v2384
        %v2641 = vunpack.c.l.b16 %v2385
        %v2642 = vunpack.c.l.b16 %v2386
        %v2643 = vunpack.c.l.b16 %v2387
        %v2644 = vunpack.c.l.b16 %v2388
        %v2645 = vunpack.c.l.b16 %v2389
        %v2646 = vpack.c.b16 %v2519, %v2518
        %v2647 = vpack.c.b16 %v2521, %v2520
        %v2648 = vpack.c.b16 %v2523, %v2522
        %v2649 = vpack.c.b16 %v2525, %v2524
        %v2650 = vpack.c.b16 %v2527, %v2526
        %v2651 = vpack.c.b16 %v2529, %v2528
        %v2652 = vpack.c.b16 %v2531, %v2530
        %v2653 = vpack.c.b16 %v2533, %v2532
        %v2654 = vpack.c.b16 %v2535, %v2534
        %v2655 = vpack.c.b16 %v2537, %v2536
        %v2656 = vpack.c.b16 %v2539, %v2538
        %v2657 = vpack.c.b16 %v2541, %v2540
        %v2658 = vpack.c.b16 %v2543, %v2542
        %v2659 = vpack.c.b16 %v2545, %v2544
        %v2660 = vpack.c.b16 %v2547, %v2546
        %v2661 = vpack.c.b16 %v2549, %v2548
        %v2662 = vpack.c.b16 %v2551, %v2550
        %v2663 = vpack.c.b16 %v2553, %v2552
        %v2664 = vpack.c.b16 %v2555, %v2554
        %v2665 = vpack.c.b16 %v2557, %v2556
        %v2666 = vpack.c.b16 %v2559, %v2558
        %v2667 = vpack.c.b16 %v2561, %v2560
        %v2668 = vpack.c.b16 %v2563, %v2562
        %v2669 = vpack.c.b16 %v2565, %v2564
        %v2670 = vpack.c.b16 %v2567, %v2566
        %v2671 = vpack.c.b16 %v2569, %v2568
        %v2672 = vpack.c.b16 %v2571, %v2570
        %v2673 = vpack.c.b16 %v2573, %v2572
        %v2674 = vpack.c.b16 %v2575, %v2574
        %v2675 = vpack.c.b16 %v2577, %v2576
        %v2676 = vpack.c.b16 %v2579, %v2578
        %v2677 = vpack.c.b16 %v2581, %v2580
        %v2678 = vpack.c.b16 %v2583, %v2582
        %v2679 = vpack.c.b16 %v2585, %v2584
        %v2680 = vpack.c.b16 %v2587, %v2586
        %v2681 = vpack.c.b16 %v2589, %v2588
        %v2682 = vpack.c.b16 %v2591, %v2590
        %v2683 = vpack.c.b16 %v2593, %v2592
        %v2684 = vpack.c.b16 %v2595, %v2594
        %v2685 = vpack.c.b16 %v2597, %v2596
        %v2686 = vpack.c.b16 %v2599, %v2598
        %v2687 = vpack.c.b16 %v2601, %v2600
        %v2688 = vpack.c.b16 %v2603, %v2602
        %v2689 = vpack.c.b16 %v2605, %v2604
        %v2690 = vpack.c.b16 %v2607, %v2606
        %v2691 = vpack.c.b16 %v2609, %v2608
        %v2692 = vpack.c.b16 %v2611, %v2610
        %v2693 = vpack.c.b16 %v2613, %v2612
        %v2694 = vpack.c.b16 %v2615, %v2614
        %v2695 = vpack.c.b16 %v2617, %v2616
        %v2696 = vpack.c.b16 %v2619, %v2618
        %v2697 = vpack.c.b16 %v2621, %v2620
        %v2698 = vpack.c.b16 %v2623, %v2622
        %v2699 = vpack.c.b16 %v2625, %v2624
        %v2700 = vpack.c.b16 %v2627, %v2626
        %v2701 = vpack.c.b16 %v2629, %v2628
        %v2702 = vpack.c.b16 %v2631, %v2630
        %v2703 = vpack.c.b16 %v2633, %v2632
        %v2704 = vpack.c.b16 %v2635, %v2634
        %v2705 = vpack.c.b16 %v2637, %v2636
        %v2706 = vpack.c.b16 %v2639, %v2638
        %v2707 = vpack.c.b16 %v2641, %v2640
        %v2708 = vpack.c.b16 %v2643, %v2642
        %v2709 = vpack.c.b16 %v2645, %v2644
        %2774 = vmatprep.subr.bf16.mxu0 0
        %2775 = vmatpush1.bf16.msra.mxu0 %v2646
        %2776 = vmatprep.subr.bf16.mxu0 0
        %2777 = vmatpush1.bf16.msra.mxu0 %v2647
        %2778 = vmatprep.subr.bf16.mxu0 0
        %2779 = vmatpush1.bf16.msra.mxu0 %v2648
        %2780 = vmatprep.subr.bf16.mxu0 0
        %2781 = vmatpush1.bf16.msra.mxu0 %v2649
        %2782 = vmatprep.subr.bf16.mxu0 0
        %2783 = vmatpush1.bf16.msra.mxu0 %v2650
        %2784 = vmatprep.subr.bf16.mxu0 0
        %2785 = vmatpush1.bf16.msra.mxu0 %v2651
        %2786 = vmatprep.subr.bf16.mxu0 0
        %2787 = vmatpush1.bf16.msra.mxu0 %v2652
        %2788 = vmatprep.subr.bf16.mxu0 0
        %2789 = vmatpush1.bf16.msra.mxu0 %v2653
        %2790 = vmatprep.subr.bf16.mxu0 0
        %2791 = vmatpush1.bf16.msra.mxu0 %v2654
        %2792 = vmatprep.subr.bf16.mxu0 0
        %2793 = vmatpush1.bf16.msra.mxu0 %v2655
        %2794 = vmatprep.subr.bf16.mxu0 0
        %2795 = vmatpush1.bf16.msra.mxu0 %v2656
        %2796 = vmatprep.subr.bf16.mxu0 0
        %2797 = vmatpush1.bf16.msra.mxu0 %v2657
        %2798 = vmatprep.subr.bf16.mxu0 0
        %2799 = vmatpush1.bf16.msra.mxu0 %v2658
        %2800 = vmatprep.subr.bf16.mxu0 0
        %2801 = vmatpush1.bf16.msra.mxu0 %v2659
        %2802 = vmatprep.subr.bf16.mxu0 0
        %2803 = vmatpush1.bf16.msra.mxu0 %v2660
        %2804 = vmatprep.subr.bf16.mxu0 0
        %2805 = vmatpush1.bf16.msra.mxu0 %v2661
        %2806 = vmatprep.mubr.bf16.mxu0 %v2255
        %2807 = vmatmul.mubr.bf16.gmra.mrb[0].mxu0 %v2254
        %v2808 = vpop.f32.mrb[0].mxu0
        %v2809 = vadd.f32 0.0, %v2808
        %v2810 = vpop.f32.mrb[0].mxu0
        %v2811 = vpop.f32.mrb[0].mxu0
        %v2812 = vadd.f32 0.0, %v2811
        %v2813 = vpop.f32.mrb[0].mxu0
        %2814 = vdwg.mxu0
        %2815 = vmatprep.subr.bf16.mxu0 0
        %2816 = vmatpush1.bf16.msra.mxu0 %v2662
        %2817 = vmatprep.subr.bf16.mxu0 0
        %2818 = vmatpush1.bf16.msra.mxu0 %v2663
        %2819 = vmatprep.subr.bf16.mxu0 0
        %2820 = vmatpush1.bf16.msra.mxu0 %v2664
        %2821 = vmatprep.subr.bf16.mxu0 0
        %2822 = vmatpush1.bf16.msra.mxu0 %v2665
        %2823 = vmatprep.subr.bf16.mxu0 0
        %2824 = vmatpush1.bf16.msra.mxu0 %v2666
        %2825 = vmatprep.subr.bf16.mxu0 0
        %2826 = vmatpush1.bf16.msra.mxu0 %v2667
        %2827 = vmatprep.subr.bf16.mxu0 0
        %2828 = vmatpush1.bf16.msra.mxu0 %v2668
        %2829 = vmatprep.subr.bf16.mxu0 0
        %2830 = vmatpush1.bf16.msra.mxu0 %v2669
        %2831 = vmatprep.subr.bf16.mxu0 0
        %2832 = vmatpush1.bf16.msra.mxu0 %v2670
        %2833 = vmatprep.subr.bf16.mxu0 0
        %2834 = vmatpush1.bf16.msra.mxu0 %v2671
        %2835 = vmatprep.subr.bf16.mxu0 0
        %2836 = vmatpush1.bf16.msra.mxu0 %v2672
        %2837 = vmatprep.subr.bf16.mxu0 0
        %2838 = vmatpush1.bf16.msra.mxu0 %v2673
        %2839 = vmatprep.subr.bf16.mxu0 0
        %2840 = vmatpush1.bf16.msra.mxu0 %v2674
        %2841 = vmatprep.subr.bf16.mxu0 0
        %2842 = vmatpush1.bf16.msra.mxu0 %v2675
        %2843 = vmatprep.subr.bf16.mxu0 0
        %2844 = vmatpush1.bf16.msra.mxu0 %v2676
        %2845 = vmatprep.subr.bf16.mxu0 0
        %2846 = vmatpush1.bf16.msra.mxu0 %v2677
        %2847 = vmatprep.mubr.bf16.mxu0 %v2257
        %2848 = vmatmul.mubr.bf16.gmra.mrb[0].mxu0 %v2256
        %v2849 = vpop.f32.mrb[0].mxu0
        %v2850 = vadd.f32 %v2809, %v2849
        %v2851 = vpop.f32.mrb[0].mxu0
        %v2852 = vpop.f32.mrb[0].mxu0
        %v2853 = vadd.f32 %v2812, %v2852
        %v2854 = vpop.f32.mrb[0].mxu0
        %2855 = vdwg.mxu0
        %2856 = vmatprep.subr.bf16.mxu0 0
        %2857 = vmatpush1.bf16.msra.mxu0 %v2678
        %2858 = vmatprep.subr.bf16.mxu0 0
        %2859 = vmatpush1.bf16.msra.mxu0 %v2679
        %2860 = vmatprep.subr.bf16.mxu0 0
        %2861 = vmatpush1.bf16.msra.mxu0 %v2680
        %2862 = vmatprep.subr.bf16.mxu0 0
        %2863 = vmatpush1.bf16.msra.mxu0 %v2681
        %2864 = vmatprep.subr.bf16.mxu0 0
        %2865 = vmatpush1.bf16.msra.mxu0 %v2682
        %2866 = vmatprep.subr.bf16.mxu0 0
        %2867 = vmatpush1.bf16.msra.mxu0 %v2683
        %2868 = vmatprep.subr.bf16.mxu0 0
        %2869 = vmatpush1.bf16.msra.mxu0 %v2684
        %2870 = vmatprep.subr.bf16.mxu0 0
        %2871 = vmatpush1.bf16.msra.mxu0 %v2685
        %2872 = vmatprep.subr.bf16.mxu0 0
        %2873 = vmatpush1.bf16.msra.mxu0 %v2686
        %2874 = vmatprep.subr.bf16.mxu0 0
        %2875 = vmatpush1.bf16.msra.mxu0 %v2687
        %2876 = vmatprep.subr.bf16.mxu0 0
        %2877 = vmatpush1.bf16.msra.mxu0 %v2688
        %2878 = vmatprep.subr.bf16.mxu0 0
        %2879 = vmatpush1.bf16.msra.mxu0 %v2689
        %2880 = vmatprep.subr.bf16.mxu0 0
        %2881 = vmatpush1.bf16.msra.mxu0 %v2690
        %2882 = vmatprep.subr.bf16.mxu0 0
        %2883 = vmatpush1.bf16.msra.mxu0 %v2691
        %2884 = vmatprep.subr.bf16.mxu0 0
        %2885 = vmatpush1.bf16.msra.mxu0 %v2692
        %2886 = vmatprep.subr.bf16.mxu0 0
        %2887 = vmatpush1.bf16.msra.mxu0 %v2693
        %2888 = vmatprep.mubr.bf16.mxu0 %v2259
        %2889 = vmatmul.mubr.bf16.gmra.mrb[0].mxu0 %v2258
        %v2890 = vpop.f32.mrb[0].mxu0
        %v2891 = vadd.f32 %v2850, %v2890
        %v2892 = vpop.f32.mrb[0].mxu0
        %v2893 = vpop.f32.mrb[0].mxu0
        %v2894 = vadd.f32 %v2853, %v2893
        %v2895 = vpop.f32.mrb[0].mxu0
        %2896 = vdwg.mxu0
        %2897 = vmatprep.subr.bf16.mxu0 0
        %2898 = vmatpush1.bf16.msra.mxu0 %v2694
        %2899 = vmatprep.subr.bf16.mxu0 0
        %2900 = vmatpush1.bf16.msra.mxu0 %v2695
        %2901 = vmatprep.subr.bf16.mxu0 0
        %2902 = vmatpush1.bf16.msra.mxu0 %v2696
        %2903 = vmatprep.subr.bf16.mxu0 0
        %2904 = vmatpush1.bf16.msra.mxu0 %v2697
        %2905 = vmatprep.subr.bf16.mxu0 0
        %2906 = vmatpush1.bf16.msra.mxu0 %v2698
        %2907 = vmatprep.subr.bf16.mxu0 0
        %2908 = vmatpush1.bf16.msra.mxu0 %v2699
        %2909 = vmatprep.subr.bf16.mxu0 0
        %2910 = vmatpush1.bf16.msra.mxu0 %v2700
        %2911 = vmatprep.subr.bf16.mxu0 0
        %2912 = vmatpush1.bf16.msra.mxu0 %v2701
        %2913 = vmatprep.subr.bf16.mxu0 0
        %2914 = vmatpush1.bf16.msra.mxu0 %v2702
        %2915 = vmatprep.subr.bf16.mxu0 0
        %2916 = vmatpush1.bf16.msra.mxu0 %v2703
        %2917 = vmatprep.subr.bf16.mxu0 0
        %2918 = vmatpush1.bf16.msra.mxu0 %v2704
        %2919 = vmatprep.subr.bf16.mxu0 0
        %2920 = vmatpush1.bf16.msra.mxu0 %v2705
        %2921 = vmatprep.subr.bf16.mxu0 0
        %2922 = vmatpush1.bf16.msra.mxu0 %v2706
        %2923 = vmatprep.subr.bf16.mxu0 0
        %2924 = vmatpush1.bf16.msra.mxu0 %v2707
        %2925 = vmatprep.subr.bf16.mxu0 0
        %2926 = vmatpush1.bf16.msra.mxu0 %v2708
        %2927 = vmatprep.subr.bf16.mxu0 0
        %2928 = vmatpush1.bf16.msra.mxu0 %v2709
        %2929 = vmatprep.mubr.bf16.mxu0 %v2261
        %2930 = vmatmul.mubr.bf16.gmra.mrb[0].mxu0 %v2260
        %v2931 = vpop.f32.mrb[0].mxu0
        %v2932 = vadd.f32 %v2891, %v2931
        %v2933 = vpop.f32.mrb[0].mxu0
        %v2934 = vpop.f32.mrb[0].mxu0
        %v2935 = vadd.f32 %v2894, %v2934
        %v2936 = vpop.f32.mrb[0].mxu0
        %2937 = vdwg.mxu0
        %v2938 = vadd.f32 %v1476, %v2932
        %v2939 = vadd.f32 %v1479, %v2935
        %s2940 = scalar_lea.vmem %s488, 8 [#allocation2]
        %v2941 = vld [vmem:[%s2940] sm:$0xf]
        %v2942 = vld [vmem:[%s2940 + $0x4] sm:$0xf]
        %v2945 = vunpack.c.l.b16 %v2941
        %v2946 = vunpack.c.l.b16 %v2942
        %v2947 = vpack.c.b16 %v2946, %v2945
        %v2949 = vsel %vm1529, %v2947, 0
        %2951 = vmatprep.subr.bf16.mxu0 %v1514
        %2952 = vmatpush1.bf16.msra.mxu0 %v1513
        %2953 = vmatprep.subr.bf16.mxu0 0
        %2954 = vmatpush1.bf16.msra.mxu0 0
        %2955 = vmatprep.subr.bf16.mxu0 0
        %2956 = vmatpush1.bf16.msra.mxu0 0
        %2957 = vmatprep.subr.bf16.mxu0 0
        %2958 = vmatpush1.bf16.msra.mxu0 0
        %2959 = vmatprep.subr.bf16.mxu0 0
        %2960 = vmatpush1.bf16.msra.mxu0 0
        %2961 = vmatprep.subr.bf16.mxu0 0
        %2962 = vmatpush1.bf16.msra.mxu0 0
        %2963 = vmatprep.subr.bf16.mxu0 0
        %2964 = vmatpush1.bf16.msra.mxu0 0
        %2965 = vmatprep.subr.bf16.mxu0 0
        %2966 = vmatpush1.bf16.msra.mxu0 0
        %2967 = vmatprep.subr.bf16.mxu0 0
        %2968 = vmatpush1.bf16.msra.mxu0 0
        %2969 = vmatprep.subr.bf16.mxu0 0
        %2970 = vmatpush1.bf16.msra.mxu0 0
        %2971 = vmatprep.subr.bf16.mxu0 0
        %2972 = vmatpush1.bf16.msra.mxu0 0
        %2973 = vmatprep.subr.bf16.mxu0 0
        %2974 = vmatpush1.bf16.msra.mxu0 0
        %2975 = vmatprep.subr.bf16.mxu0 0
        %2976 = vmatpush1.bf16.msra.mxu0 0
        %2977 = vmatprep.subr.bf16.mxu0 0
        %2978 = vmatpush1.bf16.msra.mxu0 0
        %2979 = vmatprep.subr.bf16.mxu0 0
        %2980 = vmatpush1.bf16.msra.mxu0 0
        %2981 = vmatprep.subr.bf16.mxu0 0
        %2982 = vmatpush1.bf16.msra.mxu0 0
        %2983 = vmatprep.mubr.bf16.mxu0 0
        %2984 = vmatmul.mubr.bf16.gmra.mrb[0].mxu0 %v2949
        %v2985 = vpop.f32.mrb[0].mxu0
        %v2986 = vadd.f32 0.0, %v2985
        %v2987 = vpop.f32.mrb[0].mxu0
        %v2988 = vadd.f32 0.0, %v2987
        %v2989 = vpop.f32.mrb[0].mxu0
        %v2990 = vadd.f32 0.0, %v2989
        %v2991 = vpop.f32.mrb[0].mxu0
        %v2992 = vadd.f32 0.0, %v2991
        %2993 = vdwg.mxu0
        %2994 = vmatprep.subr.bf16.mxu0 %v1516
        %2995 = vmatpush1.bf16.msra.mxu0 %v1515
        %2996 = vmatprep.subr.bf16.mxu0 0
        %2997 = vmatpush1.bf16.msra.mxu0 0
        %2998 = vmatprep.subr.bf16.mxu0 0
        %2999 = vmatpush1.bf16.msra.mxu0 0
        %3000 = vmatprep.subr.bf16.mxu0 0
        %3001 = vmatpush1.bf16.msra.mxu0 0
        %3002 = vmatprep.subr.bf16.mxu0 0
        %3003 = vmatpush1.bf16.msra.mxu0 0
        %3004 = vmatprep.subr.bf16.mxu0 0
        %3005 = vmatpush1.bf16.msra.mxu0 0
        %3006 = vmatprep.subr.bf16.mxu0 0
        %3007 = vmatpush1.bf16.msra.mxu0 0
        %3008 = vmatprep.subr.bf16.mxu0 0
        %3009 = vmatpush1.bf16.msra.mxu0 0
        %3010 = vmatprep.subr.bf16.mxu0 0
        %3011 = vmatpush1.bf16.msra.mxu0 0
        %3012 = vmatprep.subr.bf16.mxu0 0
        %3013 = vmatpush1.bf16.msra.mxu0 0
        %3014 = vmatprep.subr.bf16.mxu0 0
        %3015 = vmatpush1.bf16.msra.mxu0 0
        %3016 = vmatprep.subr.bf16.mxu0 0
        %3017 = vmatpush1.bf16.msra.mxu0 0
        %3018 = vmatprep.subr.bf16.mxu0 0
        %3019 = vmatpush1.bf16.msra.mxu0 0
        %3020 = vmatprep.subr.bf16.mxu0 0
        %3021 = vmatpush1.bf16.msra.mxu0 0
        %3022 = vmatprep.subr.bf16.mxu0 0
        %3023 = vmatpush1.bf16.msra.mxu0 0
        %3024 = vmatprep.subr.bf16.mxu0 0
        %3025 = vmatpush1.bf16.msra.mxu0 0
        %3026 = vmatprep.mubr.bf16.mxu0 0
        %3027 = vmatmul.mubr.bf16.gmra.mrb[0].mxu0 %v2949
        %v3028 = vpop.f32.mrb[0].mxu0
        %v3029 = vadd.f32 0.0, %v3028
        %v3030 = vpop.f32.mrb[0].mxu0
        %v3031 = vadd.f32 0.0, %v3030
        %v3032 = vpop.f32.mrb[0].mxu0
        %v3033 = vadd.f32 0.0, %v3032
        %v3034 = vpop.f32.mrb[0].mxu0
        %v3035 = vadd.f32 0.0, %v3034
        %3036 = vdwg.mxu0
        %3037 = vmatprep.subr.bf16.mxu0 %v1518
        %3038 = vmatpush1.bf16.msra.mxu0 %v1517
        %3039 = vmatprep.subr.bf16.mxu0 0
        %3040 = vmatpush1.bf16.msra.mxu0 0
        %3041 = vmatprep.subr.bf16.mxu0 0
        %3042 = vmatpush1.bf16.msra.mxu0 0
        %3043 = vmatprep.subr.bf16.mxu0 0
        %3044 = vmatpush1.bf16.msra.mxu0 0
        %3045 = vmatprep.subr.bf16.mxu0 0
        %3046 = vmatpush1.bf16.msra.mxu0 0
        %3047 = vmatprep.subr.bf16.mxu0 0
        %3048 = vmatpush1.bf16.msra.mxu0 0
        %3049 = vmatprep.subr.bf16.mxu0 0
        %3050 = vmatpush1.bf16.msra.mxu0 0
        %3051 = vmatprep.subr.bf16.mxu0 0
        %3052 = vmatpush1.bf16.msra.mxu0 0
        %3053 = vmatprep.subr.bf16.mxu0 0
        %3054 = vmatpush1.bf16.msra.mxu0 0
        %3055 = vmatprep.subr.bf16.mxu0 0
        %3056 = vmatpush1.bf16.msra.mxu0 0
        %3057 = vmatprep.subr.bf16.mxu0 0
        %3058 = vmatpush1.bf16.msra.mxu0 0
        %3059 = vmatprep.subr.bf16.mxu0 0
        %3060 = vmatpush1.bf16.msra.mxu0 0
        %3061 = vmatprep.subr.bf16.mxu0 0
        %3062 = vmatpush1.bf16.msra.mxu0 0
        %3063 = vmatprep.subr.bf16.mxu0 0
        %3064 = vmatpush1.bf16.msra.mxu0 0
        %3065 = vmatprep.subr.bf16.mxu0 0
        %3066 = vmatpush1.bf16.msra.mxu0 0
        %3067 = vmatprep.subr.bf16.mxu0 0
        %3068 = vmatpush1.bf16.msra.mxu0 0
        %3069 = vmatprep.mubr.bf16.mxu0 0
        %3070 = vmatmul.mubr.bf16.gmra.mrb[0].mxu0 %v2949
        %v3071 = vpop.f32.mrb[0].mxu0
        %v3072 = vadd.f32 0.0, %v3071
        %v3073 = vpop.f32.mrb[0].mxu0
        %v3074 = vadd.f32 0.0, %v3073
        %v3075 = vpop.f32.mrb[0].mxu0
        %v3076 = vadd.f32 0.0, %v3075
        %v3077 = vpop.f32.mrb[0].mxu0
        %v3078 = vadd.f32 0.0, %v3077
        %3079 = vdwg.mxu0
        %3080 = vmatprep.subr.bf16.mxu0 %v1520
        %3081 = vmatpush1.bf16.msra.mxu0 %v1519
        %3082 = vmatprep.subr.bf16.mxu0 0
        %3083 = vmatpush1.bf16.msra.mxu0 0
        %3084 = vmatprep.subr.bf16.mxu0 0
        %3085 = vmatpush1.bf16.msra.mxu0 0
        %3086 = vmatprep.subr.bf16.mxu0 0
        %3087 = vmatpush1.bf16.msra.mxu0 0
        %3088 = vmatprep.subr.bf16.mxu0 0
        %3089 = vmatpush1.bf16.msra.mxu0 0
        %3090 = vmatprep.subr.bf16.mxu0 0
        %3091 = vmatpush1.bf16.msra.mxu0 0
        %3092 = vmatprep.subr.bf16.mxu0 0
        %3093 = vmatpush1.bf16.msra.mxu0 0
        %3094 = vmatprep.subr.bf16.mxu0 0
        %3095 = vmatpush1.bf16.msra.mxu0 0
        %3096 = vmatprep.subr.bf16.mxu0 0
        %3097 = vmatpush1.bf16.msra.mxu0 0
        %3098 = vmatprep.subr.bf16.mxu0 0
        %3099 = vmatpush1.bf16.msra.mxu0 0
        %3100 = vmatprep.subr.bf16.mxu0 0
        %3101 = vmatpush1.bf16.msra.mxu0 0
        %3102 = vmatprep.subr.bf16.mxu0 0
        %3103 = vmatpush1.bf16.msra.mxu0 0
        %3104 = vmatprep.subr.bf16.mxu0 0
        %3105 = vmatpush1.bf16.msra.mxu0 0
        %3106 = vmatprep.subr.bf16.mxu0 0
        %3107 = vmatpush1.bf16.msra.mxu0 0
        %3108 = vmatprep.subr.bf16.mxu0 0
        %3109 = vmatpush1.bf16.msra.mxu0 0
        %3110 = vmatprep.subr.bf16.mxu0 0
        %3111 = vmatpush1.bf16.msra.mxu0 0
        %3112 = vmatprep.mubr.bf16.mxu0 0
        %3113 = vmatmul.mubr.bf16.gmra.mrb[0].mxu0 %v2949
        %v3114 = vpop.f32.mrb[0].mxu0
        %v3115 = vadd.f32 0.0, %v3114
        %v3116 = vpop.f32.mrb[0].mxu0
        %v3117 = vadd.f32 0.0, %v3116
        %v3118 = vpop.f32.mrb[0].mxu0
        %v3119 = vadd.f32 0.0, %v3118
        %v3120 = vpop.f32.mrb[0].mxu0
        %v3121 = vadd.f32 0.0, %v3120
        %3122 = vdwg.mxu0
        %3123 = vmatprep.subr.bf16.mxu0 %v1898
        %3124 = vmatpush1.bf16.msra.mxu0 %v1897
        %3125 = vmatprep.subr.bf16.mxu0 %v1906
        %3126 = vmatpush1.bf16.msra.mxu0 %v1905
        %3127 = vmatprep.subr.bf16.mxu0 %v1914
        %3128 = vmatpush1.bf16.msra.mxu0 %v1913
        %3129 = vmatprep.subr.bf16.mxu0 %v1922
        %3130 = vmatpush1.bf16.msra.mxu0 %v1921
        %3131 = vmatprep.subr.bf16.mxu0 %v1930
        %3132 = vmatpush1.bf16.msra.mxu0 %v1929
        %3133 = vmatprep.subr.bf16.mxu0 %v1938
        %3134 = vmatpush1.bf16.msra.mxu0 %v1937
        %3135 = vmatprep.subr.bf16.mxu0 %v1946
        %3136 = vmatpush1.bf16.msra.mxu0 %v1945
        %3137 = vmatprep.subr.bf16.mxu0 %v1954
        %3138 = vmatpush1.bf16.msra.mxu0 %v1953
        %3139 = vmatprep.subr.bf16.mxu0 0
        %3140 = vmatpush1.bf16.msra.mxu0 0
        %3141 = vmatprep.subr.bf16.mxu0 0
        %3142 = vmatpush1.bf16.msra.mxu0 0
        %3143 = vmatprep.subr.bf16.mxu0 0
        %3144 = vmatpush1.bf16.msra.mxu0 0
        %3145 = vmatprep.subr.bf16.mxu0 0
        %3146 = vmatpush1.bf16.msra.mxu0 0
        %3147 = vmatprep.subr.bf16.mxu0 0
        %3148 = vmatpush1.bf16.msra.mxu0 0
        %3149 = vmatprep.subr.bf16.mxu0 0
        %3150 = vmatpush1.bf16.msra.mxu0 0
        %3151 = vmatprep.subr.bf16.mxu0 0
        %3152 = vmatpush1.bf16.msra.mxu0 0
        %3153 = vmatprep.subr.bf16.mxu0 0
        %3154 = vmatpush1.bf16.msra.mxu0 0
        %3155 = vmatprep.mubr.bf16.mxu0 0
        %3156 = vmatmul.mubr.bf16.gmra.mrb[0].mxu0 %v1315
        %v3157 = vpop.f32.mrb[0].mxu0
        %v3158 = vadd.f32 %v2986, %v3157
        %v3159 = vpop.f32.mrb[0].mxu0
        %v3160 = vadd.f32 %v2988, %v3159
        %v3161 = vpop.f32.mrb[0].mxu0
        %v3162 = vadd.f32 %v2990, %v3161
        %v3163 = vpop.f32.mrb[0].mxu0
        %v3164 = vadd.f32 %v2992, %v3163
        %3165 = vdwg.mxu0
        %3166 = vmatprep.subr.bf16.mxu0 %v1900
        %3167 = vmatpush1.bf16.msra.mxu0 %v1899
        %3168 = vmatprep.subr.bf16.mxu0 %v1908
        %3169 = vmatpush1.bf16.msra.mxu0 %v1907
        %3170 = vmatprep.subr.bf16.mxu0 %v1916
        %3171 = vmatpush1.bf16.msra.mxu0 %v1915
        %3172 = vmatprep.subr.bf16.mxu0 %v1924
        %3173 = vmatpush1.bf16.msra.mxu0 %v1923
        %3174 = vmatprep.subr.bf16.mxu0 %v1932
        %3175 = vmatpush1.bf16.msra.mxu0 %v1931
        %3176 = vmatprep.subr.bf16.mxu0 %v1940
        %3177 = vmatpush1.bf16.msra.mxu0 %v1939
        %3178 = vmatprep.subr.bf16.mxu0 %v1948
        %3179 = vmatpush1.bf16.msra.mxu0 %v1947
        %3180 = vmatprep.subr.bf16.mxu0 %v1956
        %3181 = vmatpush1.bf16.msra.mxu0 %v1955
        %3182 = vmatprep.subr.bf16.mxu0 0
        %3183 = vmatpush1.bf16.msra.mxu0 0
        %3184 = vmatprep.subr.bf16.mxu0 0
        %3185 = vmatpush1.bf16.msra.mxu0 0
        %3186 = vmatprep.subr.bf16.mxu0 0
        %3187 = vmatpush1.bf16.msra.mxu0 0
        %3188 = vmatprep.subr.bf16.mxu0 0
        %3189 = vmatpush1.bf16.msra.mxu0 0
        %3190 = vmatprep.subr.bf16.mxu0 0
        %3191 = vmatpush1.bf16.msra.mxu0 0
        %3192 = vmatprep.subr.bf16.mxu0 0
        %3193 = vmatpush1.bf16.msra.mxu0 0
        %3194 = vmatprep.subr.bf16.mxu0 0
        %3195 = vmatpush1.bf16.msra.mxu0 0
        %3196 = vmatprep.subr.bf16.mxu0 0
        %3197 = vmatpush1.bf16.msra.mxu0 0
        %3198 = vmatprep.mubr.bf16.mxu0 0
        %3199 = vmatmul.mubr.bf16.gmra.mrb[0].mxu0 %v1315
        %v3200 = vpop.f32.mrb[0].mxu0
        %v3201 = vadd.f32 %v3029, %v3200
        %v3202 = vpop.f32.mrb[0].mxu0
        %v3203 = vadd.f32 %v3031, %v3202
        %v3204 = vpop.f32.mrb[0].mxu0
        %v3205 = vadd.f32 %v3033, %v3204
        %v3206 = vpop.f32.mrb[0].mxu0
        %v3207 = vadd.f32 %v3035, %v3206
        %3208 = vdwg.mxu0
        %3209 = vmatprep.subr.bf16.mxu0 %v1902
        %3210 = vmatpush1.bf16.msra.mxu0 %v1901
        %3211 = vmatprep.subr.bf16.mxu0 %v1910
        %3212 = vmatpush1.bf16.msra.mxu0 %v1909
        %3213 = vmatprep.subr.bf16.mxu0 %v1918
        %3214 = vmatpush1.bf16.msra.mxu0 %v1917
        %3215 = vmatprep.subr.bf16.mxu0 %v1926
        %3216 = vmatpush1.bf16.msra.mxu0 %v1925
        %3217 = vmatprep.subr.bf16.mxu0 %v1934
        %3218 = vmatpush1.bf16.msra.mxu0 %v1933
        %3219 = vmatprep.subr.bf16.mxu0 %v1942
        %3220 = vmatpush1.bf16.msra.mxu0 %v1941
        %3221 = vmatprep.subr.bf16.mxu0 %v1950
        %3222 = vmatpush1.bf16.msra.mxu0 %v1949
        %3223 = vmatprep.subr.bf16.mxu0 %v1958
        %3224 = vmatpush1.bf16.msra.mxu0 %v1957
        %3225 = vmatprep.subr.bf16.mxu0 0
        %3226 = vmatpush1.bf16.msra.mxu0 0
        %3227 = vmatprep.subr.bf16.mxu0 0
        %3228 = vmatpush1.bf16.msra.mxu0 0
        %3229 = vmatprep.subr.bf16.mxu0 0
        %3230 = vmatpush1.bf16.msra.mxu0 0
        %3231 = vmatprep.subr.bf16.mxu0 0
        %3232 = vmatpush1.bf16.msra.mxu0 0
        %3233 = vmatprep.subr.bf16.mxu0 0
        %3234 = vmatpush1.bf16.msra.mxu0 0
        %3235 = vmatprep.subr.bf16.mxu0 0
        %3236 = vmatpush1.bf16.msra.mxu0 0
        %3237 = vmatprep.subr.bf16.mxu0 0
        %3238 = vmatpush1.bf16.msra.mxu0 0
        %3239 = vmatprep.subr.bf16.mxu0 0
        %3240 = vmatpush1.bf16.msra.mxu0 0
        %3241 = vmatprep.mubr.bf16.mxu0 0
        %3242 = vmatmul.mubr.bf16.gmra.mrb[0].mxu0 %v1315
        %v3243 = vpop.f32.mrb[0].mxu0
        %v3244 = vadd.f32 %v3072, %v3243
        %v3245 = vpop.f32.mrb[0].mxu0
        %v3246 = vadd.f32 %v3074, %v3245
        %v3247 = vpop.f32.mrb[0].mxu0
        %v3248 = vadd.f32 %v3076, %v3247
        %v3249 = vpop.f32.mrb[0].mxu0
        %v3250 = vadd.f32 %v3078, %v3249
        %3251 = vdwg.mxu0
        %3252 = vmatprep.subr.bf16.mxu0 %v1904
        %3253 = vmatpush1.bf16.msra.mxu0 %v1903
        %3254 = vmatprep.subr.bf16.mxu0 %v1912
        %3255 = vmatpush1.bf16.msra.mxu0 %v1911
        %3256 = vmatprep.subr.bf16.mxu0 %v1920
        %3257 = vmatpush1.bf16.msra.mxu0 %v1919
        %3258 = vmatprep.subr.bf16.mxu0 %v1928
        %3259 = vmatpush1.bf16.msra.mxu0 %v1927
        %3260 = vmatprep.subr.bf16.mxu0 %v1936
        %3261 = vmatpush1.bf16.msra.mxu0 %v1935
        %3262 = vmatprep.subr.bf16.mxu0 %v1944
        %3263 = vmatpush1.bf16.msra.mxu0 %v1943
        %3264 = vmatprep.subr.bf16.mxu0 %v1952
        %3265 = vmatpush1.bf16.msra.mxu0 %v1951
        %3266 = vmatprep.subr.bf16.mxu0 %v1960
        %3267 = vmatpush1.bf16.msra.mxu0 %v1959
        %3268 = vmatprep.subr.bf16.mxu0 0
        %3269 = vmatpush1.bf16.msra.mxu0 0
        %3270 = vmatprep.subr.bf16.mxu0 0
        %3271 = vmatpush1.bf16.msra.mxu0 0
        %3272 = vmatprep.subr.bf16.mxu0 0
        %3273 = vmatpush1.bf16.msra.mxu0 0
        %3274 = vmatprep.subr.bf16.mxu0 0
        %3275 = vmatpush1.bf16.msra.mxu0 0
        %3276 = vmatprep.subr.bf16.mxu0 0
        %3277 = vmatpush1.bf16.msra.mxu0 0
        %3278 = vmatprep.subr.bf16.mxu0 0
        %3279 = vmatpush1.bf16.msra.mxu0 0
        %3280 = vmatprep.subr.bf16.mxu0 0
        %3281 = vmatpush1.bf16.msra.mxu0 0
        %3282 = vmatprep.subr.bf16.mxu0 0
        %3283 = vmatpush1.bf16.msra.mxu0 0
        %3284 = vmatprep.mubr.bf16.mxu0 0
        %3285 = vmatmul.mubr.bf16.gmra.mrb[0].mxu0 %v1315
        %v3286 = vpop.f32.mrb[0].mxu0
        %v3287 = vadd.f32 %v3115, %v3286
        %v3288 = vpop.f32.mrb[0].mxu0
        %v3289 = vadd.f32 %v3117, %v3288
        %v3290 = vpop.f32.mrb[0].mxu0
        %v3291 = vadd.f32 %v3119, %v3290
        %v3292 = vpop.f32.mrb[0].mxu0
        %v3293 = vadd.f32 %v3121, %v3292
        %3294 = vdwg.mxu0
        %v3295 = vadd.f32 %v3158, %v2201
        %v3296 = vadd.f32 %v3160, %v2205
        %v3297 = vadd.f32 %v3201, %v2209
        %v3298 = vadd.f32 %v3203, %v2213
        %v3299 = vadd.f32 %v3244, %v2217
        %v3300 = vadd.f32 %v3246, %v2221
        %v3301 = vadd.f32 %v3287, %v2225
        %v3302 = vadd.f32 %v3289, %v2229
        %v3303 = vadd.f32 %v3162, %v2201
        %v3304 = vadd.f32 %v3164, %v2205
        %v3305 = vadd.f32 %v3205, %v2209
        %v3306 = vadd.f32 %v3207, %v2213
        %v3307 = vadd.f32 %v3248, %v2217
        %v3308 = vadd.f32 %v3250, %v2221
        %v3309 = vadd.f32 %v3291, %v2225
        %v3310 = vadd.f32 %v3293, %v2229
        %v3311 = vpack.c.bf16 %v3303, %v3295
        %v3312 = vpack.c.bf16 %v3304, %v3296
        %v3313 = vpack.c.bf16 %v3305, %v3297
        %v3314 = vpack.c.bf16 %v3306, %v3298
        %v3315 = vpack.c.bf16 %v3307, %v3299
        %v3316 = vpack.c.bf16 %v3308, %v3300
        %v3317 = vpack.c.bf16 %v3309, %v3301
        %v3318 = vpack.c.bf16 %v3310, %v3302
        %s3319 = scalar_lea.vmem %s7, 512
        %v3320 = vld [vmem:[%s3319] sm:$0xf]
        %v3321 = vld [vmem:[%s3319 + $0x4] sm:$0xf]
        %v3322 = vld [vmem:[%s3319 + $0x8] sm:$0xf]
        %v3323 = vld [vmem:[%s3319 + $0xc] sm:$0xf]
        %v3324 = vld [vmem:[%s3319 + $0x10] sm:$0xf]
        %v3325 = vld [vmem:[%s3319 + $0x14] sm:$0xf]
        %v3326 = vld [vmem:[%s3319 + $0x18] sm:$0xf]
        %v3327 = vld [vmem:[%s3319 + $0x1c] sm:$0xf]
        %v3328 = vld [vmem:[%s3319 + $0x20] sm:$0xf]
        %v3329 = vld [vmem:[%s3319 + $0x24] sm:$0xf]
        %v3330 = vld [vmem:[%s3319 + $0x28] sm:$0xf]
        %v3331 = vld [vmem:[%s3319 + $0x2c] sm:$0xf]
        %v3332 = vld [vmem:[%s3319 + $0x30] sm:$0xf]
        %v3333 = vld [vmem:[%s3319 + $0x34] sm:$0xf]
        %v3334 = vld [vmem:[%s3319 + $0x38] sm:$0xf]
        %v3335 = vld [vmem:[%s3319 + $0x3c] sm:$0xf]
        %v3336 = vld [vmem:[%s3319 + $0x40] sm:$0xf]
        %v3337 = vld [vmem:[%s3319 + $0x44] sm:$0xf]
        %v3338 = vld [vmem:[%s3319 + $0x48] sm:$0xf]
        %v3339 = vld [vmem:[%s3319 + $0x4c] sm:$0xf]
        %v3340 = vld [vmem:[%s3319 + $0x50] sm:$0xf]
        %v3341 = vld [vmem:[%s3319 + $0x54] sm:$0xf]
        %v3342 = vld [vmem:[%s3319 + $0x58] sm:$0xf]
        %v3343 = vld [vmem:[%s3319 + $0x5c] sm:$0xf]
        %v3344 = vld [vmem:[%s3319 + $0x60] sm:$0xf]
        %v3345 = vld [vmem:[%s3319 + $0x64] sm:$0xf]
        %v3346 = vld [vmem:[%s3319 + $0x68] sm:$0xf]
        %v3347 = vld [vmem:[%s3319 + $0x6c] sm:$0xf]
        %v3348 = vld [vmem:[%s3319 + $0x70] sm:$0xf]
        %v3349 = vld [vmem:[%s3319 + $0x74] sm:$0xf]
        %v3350 = vld [vmem:[%s3319 + $0x78] sm:$0xf]
        %v3351 = vld [vmem:[%s3319 + $0x7c] sm:$0xf]
        %v3352 = vld [vmem:[%s3319 + $0x80] sm:$0xf]
        %v3353 = vld [vmem:[%s3319 + $0x84] sm:$0xf]
        %v3354 = vld [vmem:[%s3319 + $0x88] sm:$0xf]
        %v3355 = vld [vmem:[%s3319 + $0x8c] sm:$0xf]
        %v3356 = vld [vmem:[%s3319 + $0x90] sm:$0xf]
        %v3357 = vld [vmem:[%s3319 + $0x94] sm:$0xf]
        %v3358 = vld [vmem:[%s3319 + $0x98] sm:$0xf]
        %v3359 = vld [vmem:[%s3319 + $0x9c] sm:$0xf]
        %v3360 = vld [vmem:[%s3319 + $0xa0] sm:$0xf]
        %v3361 = vld [vmem:[%s3319 + $0xa4] sm:$0xf]
        %v3362 = vld [vmem:[%s3319 + $0xa8] sm:$0xf]
        %v3363 = vld [vmem:[%s3319 + $0xac] sm:$0xf]
        %v3364 = vld [vmem:[%s3319 + $0xb0] sm:$0xf]
        %v3365 = vld [vmem:[%s3319 + $0xb4] sm:$0xf]
        %v3366 = vld [vmem:[%s3319 + $0xb8] sm:$0xf]
        %v3367 = vld [vmem:[%s3319 + $0xbc] sm:$0xf]
        %v3368 = vld [vmem:[%s3319 + $0xc0] sm:$0xf]
        %v3369 = vld [vmem:[%s3319 + $0xc4] sm:$0xf]
        %v3370 = vld [vmem:[%s3319 + $0xc8] sm:$0xf]
        %v3371 = vld [vmem:[%s3319 + $0xcc] sm:$0xf]
        %v3372 = vld [vmem:[%s3319 + $0xd0] sm:$0xf]
        %v3373 = vld [vmem:[%s3319 + $0xd4] sm:$0xf]
        %v3374 = vld [vmem:[%s3319 + $0xd8] sm:$0xf]
        %v3375 = vld [vmem:[%s3319 + $0xdc] sm:$0xf]
        %v3376 = vld [vmem:[%s3319 + $0xe0] sm:$0xf]
        %v3377 = vld [vmem:[%s3319 + $0xe4] sm:$0xf]
        %v3378 = vld [vmem:[%s3319 + $0xe8] sm:$0xf]
        %v3379 = vld [vmem:[%s3319 + $0xec] sm:$0xf]
        %v3380 = vld [vmem:[%s3319 + $0xf0] sm:$0xf]
        %v3381 = vld [vmem:[%s3319 + $0xf4] sm:$0xf]
        %v3382 = vld [vmem:[%s3319 + $0xf8] sm:$0xf]
        %v3383 = vld [vmem:[%s3319 + $0xfc] sm:$0xf]
        %v3384 = vld [vmem:[%s3319 + $0x100] sm:$0xf]
        %v3385 = vld [vmem:[%s3319 + $0x104] sm:$0xf]
        %v3386 = vld [vmem:[%s3319 + $0x108] sm:$0xf]
        %v3387 = vld [vmem:[%s3319 + $0x10c] sm:$0xf]
        %v3388 = vld [vmem:[%s3319 + $0x110] sm:$0xf]
        %v3389 = vld [vmem:[%s3319 + $0x114] sm:$0xf]
        %v3390 = vld [vmem:[%s3319 + $0x118] sm:$0xf]
        %v3391 = vld [vmem:[%s3319 + $0x11c] sm:$0xf]
        %v3392 = vld [vmem:[%s3319 + $0x120] sm:$0xf]
        %v3393 = vld [vmem:[%s3319 + $0x124] sm:$0xf]
        %v3394 = vld [vmem:[%s3319 + $0x128] sm:$0xf]
        %v3395 = vld [vmem:[%s3319 + $0x12c] sm:$0xf]
        %v3396 = vld [vmem:[%s3319 + $0x130] sm:$0xf]
        %v3397 = vld [vmem:[%s3319 + $0x134] sm:$0xf]
        %v3398 = vld [vmem:[%s3319 + $0x138] sm:$0xf]
        %v3399 = vld [vmem:[%s3319 + $0x13c] sm:$0xf]
        %v3400 = vld [vmem:[%s3319 + $0x140] sm:$0xf]
        %v3401 = vld [vmem:[%s3319 + $0x144] sm:$0xf]
        %v3402 = vld [vmem:[%s3319 + $0x148] sm:$0xf]
        %v3403 = vld [vmem:[%s3319 + $0x14c] sm:$0xf]
        %v3404 = vld [vmem:[%s3319 + $0x150] sm:$0xf]
        %v3405 = vld [vmem:[%s3319 + $0x154] sm:$0xf]
        %v3406 = vld [vmem:[%s3319 + $0x158] sm:$0xf]
        %v3407 = vld [vmem:[%s3319 + $0x15c] sm:$0xf]
        %v3408 = vld [vmem:[%s3319 + $0x160] sm:$0xf]
        %v3409 = vld [vmem:[%s3319 + $0x164] sm:$0xf]
        %v3410 = vld [vmem:[%s3319 + $0x168] sm:$0xf]
        %v3411 = vld [vmem:[%s3319 + $0x16c] sm:$0xf]
        %v3412 = vld [vmem:[%s3319 + $0x170] sm:$0xf]
        %v3413 = vld [vmem:[%s3319 + $0x174] sm:$0xf]
        %v3414 = vld [vmem:[%s3319 + $0x178] sm:$0xf]
        %v3415 = vld [vmem:[%s3319 + $0x17c] sm:$0xf]
        %v3416 = vld [vmem:[%s3319 + $0x180] sm:$0xf]
        %v3417 = vld [vmem:[%s3319 + $0x184] sm:$0xf]
        %v3418 = vld [vmem:[%s3319 + $0x188] sm:$0xf]
        %v3419 = vld [vmem:[%s3319 + $0x18c] sm:$0xf]
        %v3420 = vld [vmem:[%s3319 + $0x190] sm:$0xf]
        %v3421 = vld [vmem:[%s3319 + $0x194] sm:$0xf]
        %v3422 = vld [vmem:[%s3319 + $0x198] sm:$0xf]
        %v3423 = vld [vmem:[%s3319 + $0x19c] sm:$0xf]
        %v3424 = vld [vmem:[%s3319 + $0x1a0] sm:$0xf]
        %v3425 = vld [vmem:[%s3319 + $0x1a4] sm:$0xf]
        %v3426 = vld [vmem:[%s3319 + $0x1a8] sm:$0xf]
        %v3427 = vld [vmem:[%s3319 + $0x1ac] sm:$0xf]
        %v3428 = vld [vmem:[%s3319 + $0x1b0] sm:$0xf]
        %v3429 = vld [vmem:[%s3319 + $0x1b4] sm:$0xf]
        %v3430 = vld [vmem:[%s3319 + $0x1b8] sm:$0xf]
        %v3431 = vld [vmem:[%s3319 + $0x1bc] sm:$0xf]
        %v3432 = vld [vmem:[%s3319 + $0x1c0] sm:$0xf]
        %v3433 = vld [vmem:[%s3319 + $0x1c4] sm:$0xf]
        %v3434 = vld [vmem:[%s3319 + $0x1c8] sm:$0xf]
        %v3435 = vld [vmem:[%s3319 + $0x1cc] sm:$0xf]
        %v3436 = vld [vmem:[%s3319 + $0x1d0] sm:$0xf]
        %v3437 = vld [vmem:[%s3319 + $0x1d4] sm:$0xf]
        %v3438 = vld [vmem:[%s3319 + $0x1d8] sm:$0xf]
        %v3439 = vld [vmem:[%s3319 + $0x1dc] sm:$0xf]
        %v3440 = vld [vmem:[%s3319 + $0x1e0] sm:$0xf]
        %v3441 = vld [vmem:[%s3319 + $0x1e4] sm:$0xf]
        %v3442 = vld [vmem:[%s3319 + $0x1e8] sm:$0xf]
        %v3443 = vld [vmem:[%s3319 + $0x1ec] sm:$0xf]
        %v3444 = vld [vmem:[%s3319 + $0x1f0] sm:$0xf]
        %v3445 = vld [vmem:[%s3319 + $0x1f4] sm:$0xf]
        %v3446 = vld [vmem:[%s3319 + $0x1f8] sm:$0xf]
        %v3447 = vld [vmem:[%s3319 + $0x1fc] sm:$0xf]
        %v3576 = vunpack.c.l.b16 %v3320
        %v3577 = vunpack.c.l.b16 %v3321
        %v3578 = vunpack.c.l.b16 %v3322
        %v3579 = vunpack.c.l.b16 %v3323
        %v3580 = vunpack.c.l.b16 %v3324
        %v3581 = vunpack.c.l.b16 %v3325
        %v3582 = vunpack.c.l.b16 %v3326
        %v3583 = vunpack.c.l.b16 %v3327
        %v3584 = vunpack.c.l.b16 %v3328
        %v3585 = vunpack.c.l.b16 %v3329
        %v3586 = vunpack.c.l.b16 %v3330
        %v3587 = vunpack.c.l.b16 %v3331
        %v3588 = vunpack.c.l.b16 %v3332
        %v3589 = vunpack.c.l.b16 %v3333
        %v3590 = vunpack.c.l.b16 %v3334
        %v3591 = vunpack.c.l.b16 %v3335
        %v3592 = vunpack.c.l.b16 %v3336
        %v3593 = vunpack.c.l.b16 %v3337
        %v3594 = vunpack.c.l.b16 %v3338
        %v3595 = vunpack.c.l.b16 %v3339
        %v3596 = vunpack.c.l.b16 %v3340
        %v3597 = vunpack.c.l.b16 %v3341
        %v3598 = vunpack.c.l.b16 %v3342
        %v3599 = vunpack.c.l.b16 %v3343
        %v3600 = vunpack.c.l.b16 %v3344
        %v3601 = vunpack.c.l.b16 %v3345
        %v3602 = vunpack.c.l.b16 %v3346
        %v3603 = vunpack.c.l.b16 %v3347
        %v3604 = vunpack.c.l.b16 %v3348
        %v3605 = vunpack.c.l.b16 %v3349
        %v3606 = vunpack.c.l.b16 %v3350
        %v3607 = vunpack.c.l.b16 %v3351
        %v3608 = vunpack.c.l.b16 %v3352
        %v3609 = vunpack.c.l.b16 %v3353
        %v3610 = vunpack.c.l.b16 %v3354
        %v3611 = vunpack.c.l.b16 %v3355
        %v3612 = vunpack.c.l.b16 %v3356
        %v3613 = vunpack.c.l.b16 %v3357
        %v3614 = vunpack.c.l.b16 %v3358
        %v3615 = vunpack.c.l.b16 %v3359
        %v3616 = vunpack.c.l.b16 %v3360
        %v3617 = vunpack.c.l.b16 %v3361
        %v3618 = vunpack.c.l.b16 %v3362
        %v3619 = vunpack.c.l.b16 %v3363
        %v3620 = vunpack.c.l.b16 %v3364
        %v3621 = vunpack.c.l.b16 %v3365
        %v3622 = vunpack.c.l.b16 %v3366
        %v3623 = vunpack.c.l.b16 %v3367
        %v3624 = vunpack.c.l.b16 %v3368
        %v3625 = vunpack.c.l.b16 %v3369
        %v3626 = vunpack.c.l.b16 %v3370
        %v3627 = vunpack.c.l.b16 %v3371
        %v3628 = vunpack.c.l.b16 %v3372
        %v3629 = vunpack.c.l.b16 %v3373
        %v3630 = vunpack.c.l.b16 %v3374
        %v3631 = vunpack.c.l.b16 %v3375
        %v3632 = vunpack.c.l.b16 %v3376
        %v3633 = vunpack.c.l.b16 %v3377
        %v3634 = vunpack.c.l.b16 %v3378
        %v3635 = vunpack.c.l.b16 %v3379
        %v3636 = vunpack.c.l.b16 %v3380
        %v3637 = vunpack.c.l.b16 %v3381
        %v3638 = vunpack.c.l.b16 %v3382
        %v3639 = vunpack.c.l.b16 %v3383
        %v3640 = vunpack.c.l.b16 %v3384
        %v3641 = vunpack.c.l.b16 %v3385
        %v3642 = vunpack.c.l.b16 %v3386
        %v3643 = vunpack.c.l.b16 %v3387
        %v3644 = vunpack.c.l.b16 %v3388
        %v3645 = vunpack.c.l.b16 %v3389
        %v3646 = vunpack.c.l.b16 %v3390
        %v3647 = vunpack.c.l.b16 %v3391
        %v3648 = vunpack.c.l.b16 %v3392
        %v3649 = vunpack.c.l.b16 %v3393
        %v3650 = vunpack.c.l.b16 %v3394
        %v3651 = vunpack.c.l.b16 %v3395
        %v3652 = vunpack.c.l.b16 %v3396
        %v3653 = vunpack.c.l.b16 %v3397
        %v3654 = vunpack.c.l.b16 %v3398
        %v3655 = vunpack.c.l.b16 %v3399
        %v3656 = vunpack.c.l.b16 %v3400
        %v3657 = vunpack.c.l.b16 %v3401
        %v3658 = vunpack.c.l.b16 %v3402
        %v3659 = vunpack.c.l.b16 %v3403
        %v3660 = vunpack.c.l.b16 %v3404
        %v3661 = vunpack.c.l.b16 %v3405
        %v3662 = vunpack.c.l.b16 %v3406
        %v3663 = vunpack.c.l.b16 %v3407
        %v3664 = vunpack.c.l.b16 %v3408
        %v3665 = vunpack.c.l.b16 %v3409
        %v3666 = vunpack.c.l.b16 %v3410
        %v3667 = vunpack.c.l.b16 %v3411
        %v3668 = vunpack.c.l.b16 %v3412
        %v3669 = vunpack.c.l.b16 %v3413
        %v3670 = vunpack.c.l.b16 %v3414
        %v3671 = vunpack.c.l.b16 %v3415
        %v3672 = vunpack.c.l.b16 %v3416
        %v3673 = vunpack.c.l.b16 %v3417
        %v3674 = vunpack.c.l.b16 %v3418
        %v3675 = vunpack.c.l.b16 %v3419
        %v3676 = vunpack.c.l.b16 %v3420
        %v3677 = vunpack.c.l.b16 %v3421
        %v3678 = vunpack.c.l.b16 %v3422
        %v3679 = vunpack.c.l.b16 %v3423
        %v3680 = vunpack.c.l.b16 %v3424
        %v3681 = vunpack.c.l.b16 %v3425
        %v3682 = vunpack.c.l.b16 %v3426
        %v3683 = vunpack.c.l.b16 %v3427
        %v3684 = vunpack.c.l.b16 %v3428
        %v3685 = vunpack.c.l.b16 %v3429
        %v3686 = vunpack.c.l.b16 %v3430
        %v3687 = vunpack.c.l.b16 %v3431
        %v3688 = vunpack.c.l.b16 %v3432
        %v3689 = vunpack.c.l.b16 %v3433
        %v3690 = vunpack.c.l.b16 %v3434
        %v3691 = vunpack.c.l.b16 %v3435
        %v3692 = vunpack.c.l.b16 %v3436
        %v3693 = vunpack.c.l.b16 %v3437
        %v3694 = vunpack.c.l.b16 %v3438
        %v3695 = vunpack.c.l.b16 %v3439
        %v3696 = vunpack.c.l.b16 %v3440
        %v3697 = vunpack.c.l.b16 %v3441
        %v3698 = vunpack.c.l.b16 %v3442
        %v3699 = vunpack.c.l.b16 %v3443
        %v3700 = vunpack.c.l.b16 %v3444
        %v3701 = vunpack.c.l.b16 %v3445
        %v3702 = vunpack.c.l.b16 %v3446
        %v3703 = vunpack.c.l.b16 %v3447
        %v3704 = vpack.c.b16 %v3577, %v3576
        %v3705 = vpack.c.b16 %v3579, %v3578
        %v3706 = vpack.c.b16 %v3581, %v3580
        %v3707 = vpack.c.b16 %v3583, %v3582
        %v3708 = vpack.c.b16 %v3585, %v3584
        %v3709 = vpack.c.b16 %v3587, %v3586
        %v3710 = vpack.c.b16 %v3589, %v3588
        %v3711 = vpack.c.b16 %v3591, %v3590
        %v3712 = vpack.c.b16 %v3593, %v3592
        %v3713 = vpack.c.b16 %v3595, %v3594
        %v3714 = vpack.c.b16 %v3597, %v3596
        %v3715 = vpack.c.b16 %v3599, %v3598
        %v3716 = vpack.c.b16 %v3601, %v3600
        %v3717 = vpack.c.b16 %v3603, %v3602
        %v3718 = vpack.c.b16 %v3605, %v3604
        %v3719 = vpack.c.b16 %v3607, %v3606
        %v3720 = vpack.c.b16 %v3609, %v3608
        %v3721 = vpack.c.b16 %v3611, %v3610
        %v3722 = vpack.c.b16 %v3613, %v3612
        %v3723 = vpack.c.b16 %v3615, %v3614
        %v3724 = vpack.c.b16 %v3617, %v3616
        %v3725 = vpack.c.b16 %v3619, %v3618
        %v3726 = vpack.c.b16 %v3621, %v3620
        %v3727 = vpack.c.b16 %v3623, %v3622
        %v3728 = vpack.c.b16 %v3625, %v3624
        %v3729 = vpack.c.b16 %v3627, %v3626
        %v3730 = vpack.c.b16 %v3629, %v3628
        %v3731 = vpack.c.b16 %v3631, %v3630
        %v3732 = vpack.c.b16 %v3633, %v3632
        %v3733 = vpack.c.b16 %v3635, %v3634
        %v3734 = vpack.c.b16 %v3637, %v3636
        %v3735 = vpack.c.b16 %v3639, %v3638
        %v3736 = vpack.c.b16 %v3641, %v3640
        %v3737 = vpack.c.b16 %v3643, %v3642
        %v3738 = vpack.c.b16 %v3645, %v3644
        %v3739 = vpack.c.b16 %v3647, %v3646
        %v3740 = vpack.c.b16 %v3649, %v3648
        %v3741 = vpack.c.b16 %v3651, %v3650
        %v3742 = vpack.c.b16 %v3653, %v3652
        %v3743 = vpack.c.b16 %v3655, %v3654
        %v3744 = vpack.c.b16 %v3657, %v3656
        %v3745 = vpack.c.b16 %v3659, %v3658
        %v3746 = vpack.c.b16 %v3661, %v3660
        %v3747 = vpack.c.b16 %v3663, %v3662
        %v3748 = vpack.c.b16 %v3665, %v3664
        %v3749 = vpack.c.b16 %v3667, %v3666
        %v3750 = vpack.c.b16 %v3669, %v3668
        %v3751 = vpack.c.b16 %v3671, %v3670
        %v3752 = vpack.c.b16 %v3673, %v3672
        %v3753 = vpack.c.b16 %v3675, %v3674
        %v3754 = vpack.c.b16 %v3677, %v3676
        %v3755 = vpack.c.b16 %v3679, %v3678
        %v3756 = vpack.c.b16 %v3681, %v3680
        %v3757 = vpack.c.b16 %v3683, %v3682
        %v3758 = vpack.c.b16 %v3685, %v3684
        %v3759 = vpack.c.b16 %v3687, %v3686
        %v3760 = vpack.c.b16 %v3689, %v3688
        %v3761 = vpack.c.b16 %v3691, %v3690
        %v3762 = vpack.c.b16 %v3693, %v3692
        %v3763 = vpack.c.b16 %v3695, %v3694
        %v3764 = vpack.c.b16 %v3697, %v3696
        %v3765 = vpack.c.b16 %v3699, %v3698
        %v3766 = vpack.c.b16 %v3701, %v3700
        %v3767 = vpack.c.b16 %v3703, %v3702
        %3832 = vmatprep.subr.bf16.mxu0 0
        %3833 = vmatpush1.bf16.msra.mxu0 %v3704
        %3834 = vmatprep.subr.bf16.mxu0 0
        %3835 = vmatpush1.bf16.msra.mxu0 %v3705
        %3836 = vmatprep.subr.bf16.mxu0 0
        %3837 = vmatpush1.bf16.msra.mxu0 %v3706
        %3838 = vmatprep.subr.bf16.mxu0 0
        %3839 = vmatpush1.bf16.msra.mxu0 %v3707
        %3840 = vmatprep.subr.bf16.mxu0 0
        %3841 = vmatpush1.bf16.msra.mxu0 %v3708
        %3842 = vmatprep.subr.bf16.mxu0 0
        %3843 = vmatpush1.bf16.msra.mxu0 %v3709
        %3844 = vmatprep.subr.bf16.mxu0 0
        %3845 = vmatpush1.bf16.msra.mxu0 %v3710
        %3846 = vmatprep.subr.bf16.mxu0 0
        %3847 = vmatpush1.bf16.msra.mxu0 %v3711
        %3848 = vmatprep.subr.bf16.mxu0 0
        %3849 = vmatpush1.bf16.msra.mxu0 %v3712
        %3850 = vmatprep.subr.bf16.mxu0 0
        %3851 = vmatpush1.bf16.msra.mxu0 %v3713
        %3852 = vmatprep.subr.bf16.mxu0 0
        %3853 = vmatpush1.bf16.msra.mxu0 %v3714
        %3854 = vmatprep.subr.bf16.mxu0 0
        %3855 = vmatpush1.bf16.msra.mxu0 %v3715
        %3856 = vmatprep.subr.bf16.mxu0 0
        %3857 = vmatpush1.bf16.msra.mxu0 %v3716
        %3858 = vmatprep.subr.bf16.mxu0 0
        %3859 = vmatpush1.bf16.msra.mxu0 %v3717
        %3860 = vmatprep.subr.bf16.mxu0 0
        %3861 = vmatpush1.bf16.msra.mxu0 %v3718
        %3862 = vmatprep.subr.bf16.mxu0 0
        %3863 = vmatpush1.bf16.msra.mxu0 %v3719
        %3864 = vmatprep.mubr.bf16.mxu0 %v3312
        %3865 = vmatmul.mubr.bf16.gmra.mrb[0].mxu0 %v3311
        %v3866 = vpop.f32.mrb[0].mxu0
        %v3867 = vadd.f32 0.0, %v3866
        %v3868 = vpop.f32.mrb[0].mxu0
        %v3869 = vpop.f32.mrb[0].mxu0
        %v3870 = vadd.f32 0.0, %v3869
        %v3871 = vpop.f32.mrb[0].mxu0
        %3872 = vdwg.mxu0
        %3873 = vmatprep.subr.bf16.mxu0 0
        %3874 = vmatpush1.bf16.msra.mxu0 %v3720
        %3875 = vmatprep.subr.bf16.mxu0 0
        %3876 = vmatpush1.bf16.msra.mxu0 %v3721
        %3877 = vmatprep.subr.bf16.mxu0 0
        %3878 = vmatpush1.bf16.msra.mxu0 %v3722
        %3879 = vmatprep.subr.bf16.mxu0 0
        %3880 = vmatpush1.bf16.msra.mxu0 %v3723
        %3881 = vmatprep.subr.bf16.mxu0 0
        %3882 = vmatpush1.bf16.msra.mxu0 %v3724
        %3883 = vmatprep.subr.bf16.mxu0 0
        %3884 = vmatpush1.bf16.msra.mxu0 %v3725
        %3885 = vmatprep.subr.bf16.mxu0 0
        %3886 = vmatpush1.bf16.msra.mxu0 %v3726
        %3887 = vmatprep.subr.bf16.mxu0 0
        %3888 = vmatpush1.bf16.msra.mxu0 %v3727
        %3889 = vmatprep.subr.bf16.mxu0 0
        %3890 = vmatpush1.bf16.msra.mxu0 %v3728
        %3891 = vmatprep.subr.bf16.mxu0 0
        %3892 = vmatpush1.bf16.msra.mxu0 %v3729
        %3893 = vmatprep.subr.bf16.mxu0 0
        %3894 = vmatpush1.bf16.msra.mxu0 %v3730
        %3895 = vmatprep.subr.bf16.mxu0 0
        %3896 = vmatpush1.bf16.msra.mxu0 %v3731
        %3897 = vmatprep.subr.bf16.mxu0 0
        %3898 = vmatpush1.bf16.msra.mxu0 %v3732
        %3899 = vmatprep.subr.bf16.mxu0 0
        %3900 = vmatpush1.bf16.msra.mxu0 %v3733
        %3901 = vmatprep.subr.bf16.mxu0 0
        %3902 = vmatpush1.bf16.msra.mxu0 %v3734
        %3903 = vmatprep.subr.bf16.mxu0 0
        %3904 = vmatpush1.bf16.msra.mxu0 %v3735
        %3905 = vmatprep.mubr.bf16.mxu0 %v3314
        %3906 = vmatmul.mubr.bf16.gmra.mrb[0].mxu0 %v3313
        %v3907 = vpop.f32.mrb[0].mxu0
        %v3908 = vadd.f32 %v3867, %v3907
        %v3909 = vpop.f32.mrb[0].mxu0
        %v3910 = vpop.f32.mrb[0].mxu0
        %v3911 = vadd.f32 %v3870, %v3910
        %v3912 = vpop.f32.mrb[0].mxu0
        %3913 = vdwg.mxu0
        %3914 = vmatprep.subr.bf16.mxu0 0
        %3915 = vmatpush1.bf16.msra.mxu0 %v3736
        %3916 = vmatprep.subr.bf16.mxu0 0
        %3917 = vmatpush1.bf16.msra.mxu0 %v3737
        %3918 = vmatprep.subr.bf16.mxu0 0
        %3919 = vmatpush1.bf16.msra.mxu0 %v3738
        %3920 = vmatprep.subr.bf16.mxu0 0
        %3921 = vmatpush1.bf16.msra.mxu0 %v3739
        %3922 = vmatprep.subr.bf16.mxu0 0
        %3923 = vmatpush1.bf16.msra.mxu0 %v3740
        %3924 = vmatprep.subr.bf16.mxu0 0
        %3925 = vmatpush1.bf16.msra.mxu0 %v3741
        %3926 = vmatprep.subr.bf16.mxu0 0
        %3927 = vmatpush1.bf16.msra.mxu0 %v3742
        %3928 = vmatprep.subr.bf16.mxu0 0
        %3929 = vmatpush1.bf16.msra.mxu0 %v3743
        %3930 = vmatprep.subr.bf16.mxu0 0
        %3931 = vmatpush1.bf16.msra.mxu0 %v3744
        %3932 = vmatprep.subr.bf16.mxu0 0
        %3933 = vmatpush1.bf16.msra.mxu0 %v3745
        %3934 = vmatprep.subr.bf16.mxu0 0
        %3935 = vmatpush1.bf16.msra.mxu0 %v3746
        %3936 = vmatprep.subr.bf16.mxu0 0
        %3937 = vmatpush1.bf16.msra.mxu0 %v3747
        %3938 = vmatprep.subr.bf16.mxu0 0
        %3939 = vmatpush1.bf16.msra.mxu0 %v3748
        %3940 = vmatprep.subr.bf16.mxu0 0
        %3941 = vmatpush1.bf16.msra.mxu0 %v3749
        %3942 = vmatprep.subr.bf16.mxu0 0
        %3943 = vmatpush1.bf16.msra.mxu0 %v3750
        %3944 = vmatprep.subr.bf16.mxu0 0
        %3945 = vmatpush1.bf16.msra.mxu0 %v3751
        %3946 = vmatprep.mubr.bf16.mxu0 %v3316
        %3947 = vmatmul.mubr.bf16.gmra.mrb[0].mxu0 %v3315
        %v3948 = vpop.f32.mrb[0].mxu0
        %v3949 = vadd.f32 %v3908, %v3948
        %v3950 = vpop.f32.mrb[0].mxu0
        %v3951 = vpop.f32.mrb[0].mxu0
        %v3952 = vadd.f32 %v3911, %v3951
        %v3953 = vpop.f32.mrb[0].mxu0
        %3954 = vdwg.mxu0
        %3955 = vmatprep.subr.bf16.mxu0 0
        %3956 = vmatpush1.bf16.msra.mxu0 %v3752
        %3957 = vmatprep.subr.bf16.mxu0 0
        %3958 = vmatpush1.bf16.msra.mxu0 %v3753
        %3959 = vmatprep.subr.bf16.mxu0 0
        %3960 = vmatpush1.bf16.msra.mxu0 %v3754
        %3961 = vmatprep.subr.bf16.mxu0 0
        %3962 = vmatpush1.bf16.msra.mxu0 %v3755
        %3963 = vmatprep.subr.bf16.mxu0 0
        %3964 = vmatpush1.bf16.msra.mxu0 %v3756
        %3965 = vmatprep.subr.bf16.mxu0 0
        %3966 = vmatpush1.bf16.msra.mxu0 %v3757
        %3967 = vmatprep.subr.bf16.mxu0 0
        %3968 = vmatpush1.bf16.msra.mxu0 %v3758
        %3969 = vmatprep.subr.bf16.mxu0 0
        %3970 = vmatpush1.bf16.msra.mxu0 %v3759
        %3971 = vmatprep.subr.bf16.mxu0 0
        %3972 = vmatpush1.bf16.msra.mxu0 %v3760
        %3973 = vmatprep.subr.bf16.mxu0 0
        %3974 = vmatpush1.bf16.msra.mxu0 %v3761
        %3975 = vmatprep.subr.bf16.mxu0 0
        %3976 = vmatpush1.bf16.msra.mxu0 %v3762
        %3977 = vmatprep.subr.bf16.mxu0 0
        %3978 = vmatpush1.bf16.msra.mxu0 %v3763
        %3979 = vmatprep.subr.bf16.mxu0 0
        %3980 = vmatpush1.bf16.msra.mxu0 %v3764
        %3981 = vmatprep.subr.bf16.mxu0 0
        %3982 = vmatpush1.bf16.msra.mxu0 %v3765
        %3983 = vmatprep.subr.bf16.mxu0 0
        %3984 = vmatpush1.bf16.msra.mxu0 %v3766
        %3985 = vmatprep.subr.bf16.mxu0 0
        %3986 = vmatpush1.bf16.msra.mxu0 %v3767
        %3987 = vmatprep.mubr.bf16.mxu0 %v3318
        %3988 = vmatmul.mubr.bf16.gmra.mrb[0].mxu0 %v3317
        %v3989 = vpop.f32.mrb[0].mxu0
        %v3990 = vadd.f32 %v3949, %v3989
        %v3991 = vpop.f32.mrb[0].mxu0
        %v3992 = vpop.f32.mrb[0].mxu0
        %v3993 = vadd.f32 %v3952, %v3992
        %v3994 = vpop.f32.mrb[0].mxu0
        %3995 = vdwg.mxu0
        %v3996 = vadd.f32 %v2938, %v3990
        %v3997 = vadd.f32 %v2939, %v3993
        %s3998 = scalar_lea.vmem %s488, 16 [#allocation2]
        %v3999 = vld [vmem:[%s3998] sm:$0xf]
        %v4000 = vld [vmem:[%s3998 + $0x4] sm:$0xf]
        %v4003 = vunpack.c.l.b16 %v3999
        %v4004 = vunpack.c.l.b16 %v4000
        %v4005 = vpack.c.b16 %v4004, %v4003
        %v4007 = vsel %vm1529, %v4005, 0
        %4009 = vmatprep.subr.bf16.mxu0 %v1514
        %4010 = vmatpush1.bf16.msra.mxu0 %v1513
        %4011 = vmatprep.subr.bf16.mxu0 0
        %4012 = vmatpush1.bf16.msra.mxu0 0
        %4013 = vmatprep.subr.bf16.mxu0 0
        %4014 = vmatpush1.bf16.msra.mxu0 0
        %4015 = vmatprep.subr.bf16.mxu0 0
        %4016 = vmatpush1.bf16.msra.mxu0 0
        %4017 = vmatprep.subr.bf16.mxu0 0
        %4018 = vmatpush1.bf16.msra.mxu0 0
        %4019 = vmatprep.subr.bf16.mxu0 0
        %4020 = vmatpush1.bf16.msra.mxu0 0
        %4021 = vmatprep.subr.bf16.mxu0 0
        %4022 = vmatpush1.bf16.msra.mxu0 0
        %4023 = vmatprep.subr.bf16.mxu0 0
        %4024 = vmatpush1.bf16.msra.mxu0 0
        %4025 = vmatprep.subr.bf16.mxu0 0
        %4026 = vmatpush1.bf16.msra.mxu0 0
        %4027 = vmatprep.subr.bf16.mxu0 0
        %4028 = vmatpush1.bf16.msra.mxu0 0
        %4029 = vmatprep.subr.bf16.mxu0 0
        %4030 = vmatpush1.bf16.msra.mxu0 0
        %4031 = vmatprep.subr.bf16.mxu0 0
        %4032 = vmatpush1.bf16.msra.mxu0 0
        %4033 = vmatprep.subr.bf16.mxu0 0
        %4034 = vmatpush1.bf16.msra.mxu0 0
        %4035 = vmatprep.subr.bf16.mxu0 0
        %4036 = vmatpush1.bf16.msra.mxu0 0
        %4037 = vmatprep.subr.bf16.mxu0 0
        %4038 = vmatpush1.bf16.msra.mxu0 0
        %4039 = vmatprep.subr.bf16.mxu0 0
        %4040 = vmatpush1.bf16.msra.mxu0 0
        %4041 = vmatprep.mubr.bf16.mxu0 0
        %4042 = vmatmul.mubr.bf16.gmra.mrb[0].mxu0 %v4007
        %v4043 = vpop.f32.mrb[0].mxu0
        %v4044 = vadd.f32 0.0, %v4043
        %v4045 = vpop.f32.mrb[0].mxu0
        %v4046 = vadd.f32 0.0, %v4045
        %v4047 = vpop.f32.mrb[0].mxu0
        %v4048 = vadd.f32 0.0, %v4047
        %v4049 = vpop.f32.mrb[0].mxu0
        %v4050 = vadd.f32 0.0, %v4049
        %4051 = vdwg.mxu0
        %4052 = vmatprep.subr.bf16.mxu0 %v1516
        %4053 = vmatpush1.bf16.msra.mxu0 %v1515
        %4054 = vmatprep.subr.bf16.mxu0 0
        %4055 = vmatpush1.bf16.msra.mxu0 0
        %4056 = vmatprep.subr.bf16.mxu0 0
        %4057 = vmatpush1.bf16.msra.mxu0 0
        %4058 = vmatprep.subr.bf16.mxu0 0
        %4059 = vmatpush1.bf16.msra.mxu0 0
        %4060 = vmatprep.subr.bf16.mxu0 0
        %4061 = vmatpush1.bf16.msra.mxu0 0
        %4062 = vmatprep.subr.bf16.mxu0 0
        %4063 = vmatpush1.bf16.msra.mxu0 0
        %4064 = vmatprep.subr.bf16.mxu0 0
        %4065 = vmatpush1.bf16.msra.mxu0 0
        %4066 = vmatprep.subr.bf16.mxu0 0
        %4067 = vmatpush1.bf16.msra.mxu0 0
        %4068 = vmatprep.subr.bf16.mxu0 0
        %4069 = vmatpush1.bf16.msra.mxu0 0
        %4070 = vmatprep.subr.bf16.mxu0 0
        %4071 = vmatpush1.bf16.msra.mxu0 0
        %4072 = vmatprep.subr.bf16.mxu0 0
        %4073 = vmatpush1.bf16.msra.mxu0 0
        %4074 = vmatprep.subr.bf16.mxu0 0
        %4075 = vmatpush1.bf16.msra.mxu0 0
        %4076 = vmatprep.subr.bf16.mxu0 0
        %4077 = vmatpush1.bf16.msra.mxu0 0
        %4078 = vmatprep.subr.bf16.mxu0 0
        %4079 = vmatpush1.bf16.msra.mxu0 0
        %4080 = vmatprep.subr.bf16.mxu0 0
        %4081 = vmatpush1.bf16.msra.mxu0 0
        %4082 = vmatprep.subr.bf16.mxu0 0
        %4083 = vmatpush1.bf16.msra.mxu0 0
        %4084 = vmatprep.mubr.bf16.mxu0 0
        %4085 = vmatmul.mubr.bf16.gmra.mrb[0].mxu0 %v4007
        %v4086 = vpop.f32.mrb[0].mxu0
        %v4087 = vadd.f32 0.0, %v4086
        %v4088 = vpop.f32.mrb[0].mxu0
        %v4089 = vadd.f32 0.0, %v4088
        %v4090 = vpop.f32.mrb[0].mxu0
        %v4091 = vadd.f32 0.0, %v4090
        %v4092 = vpop.f32.mrb[0].mxu0
        %v4093 = vadd.f32 0.0, %v4092
        %4094 = vdwg.mxu0
        %4095 = vmatprep.subr.bf16.mxu0 %v1518
        %4096 = vmatpush1.bf16.msra.mxu0 %v1517
        %4097 = vmatprep.subr.bf16.mxu0 0
        %4098 = vmatpush1.bf16.msra.mxu0 0
        %4099 = vmatprep.subr.bf16.mxu0 0
        %4100 = vmatpush1.bf16.msra.mxu0 0
        %4101 = vmatprep.subr.bf16.mxu0 0
        %4102 = vmatpush1.bf16.msra.mxu0 0
        %4103 = vmatprep.subr.bf16.mxu0 0
        %4104 = vmatpush1.bf16.msra.mxu0 0
        %4105 = vmatprep.subr.bf16.mxu0 0
        %4106 = vmatpush1.bf16.msra.mxu0 0
        %4107 = vmatprep.subr.bf16.mxu0 0
        %4108 = vmatpush1.bf16.msra.mxu0 0
        %4109 = vmatprep.subr.bf16.mxu0 0
        %4110 = vmatpush1.bf16.msra.mxu0 0
        %4111 = vmatprep.subr.bf16.mxu0 0
        %4112 = vmatpush1.bf16.msra.mxu0 0
        %4113 = vmatprep.subr.bf16.mxu0 0
        %4114 = vmatpush1.bf16.msra.mxu0 0
        %4115 = vmatprep.subr.bf16.mxu0 0
        %4116 = vmatpush1.bf16.msra.mxu0 0
        %4117 = vmatprep.subr.bf16.mxu0 0
        %4118 = vmatpush1.bf16.msra.mxu0 0
        %4119 = vmatprep.subr.bf16.mxu0 0
        %4120 = vmatpush1.bf16.msra.mxu0 0
        %4121 = vmatprep.subr.bf16.mxu0 0
        %4122 = vmatpush1.bf16.msra.mxu0 0
        %4123 = vmatprep.subr.bf16.mxu0 0
        %4124 = vmatpush1.bf16.msra.mxu0 0
        %4125 = vmatprep.subr.bf16.mxu0 0
        %4126 = vmatpush1.bf16.msra.mxu0 0
        %4127 = vmatprep.mubr.bf16.mxu0 0
        %4128 = vmatmul.mubr.bf16.gmra.mrb[0].mxu0 %v4007
        %v4129 = vpop.f32.mrb[0].mxu0
        %v4130 = vadd.f32 0.0, %v4129
        %v4131 = vpop.f32.mrb[0].mxu0
        %v4132 = vadd.f32 0.0, %v4131
        %v4133 = vpop.f32.mrb[0].mxu0
        %v4134 = vadd.f32 0.0, %v4133
        %v4135 = vpop.f32.mrb[0].mxu0
        %v4136 = vadd.f32 0.0, %v4135
        %4137 = vdwg.mxu0
        %4138 = vmatprep.subr.bf16.mxu0 %v1520
        %4139 = vmatpush1.bf16.msra.mxu0 %v1519
        %4140 = vmatprep.subr.bf16.mxu0 0
        %4141 = vmatpush1.bf16.msra.mxu0 0
        %4142 = vmatprep.subr.bf16.mxu0 0
        %4143 = vmatpush1.bf16.msra.mxu0 0
        %4144 = vmatprep.subr.bf16.mxu0 0
        %4145 = vmatpush1.bf16.msra.mxu0 0
        %4146 = vmatprep.subr.bf16.mxu0 0
        %4147 = vmatpush1.bf16.msra.mxu0 0
        %4148 = vmatprep.subr.bf16.mxu0 0
        %4149 = vmatpush1.bf16.msra.mxu0 0
        %4150 = vmatprep.subr.bf16.mxu0 0
        %4151 = vmatpush1.bf16.msra.mxu0 0
        %4152 = vmatprep.subr.bf16.mxu0 0
        %4153 = vmatpush1.bf16.msra.mxu0 0
        %4154 = vmatprep.subr.bf16.mxu0 0
        %4155 = vmatpush1.bf16.msra.mxu0 0
        %4156 = vmatprep.subr.bf16.mxu0 0
        %4157 = vmatpush1.bf16.msra.mxu0 0
        %4158 = vmatprep.subr.bf16.mxu0 0
        %4159 = vmatpush1.bf16.msra.mxu0 0
        %4160 = vmatprep.subr.bf16.mxu0 0
        %4161 = vmatpush1.bf16.msra.mxu0 0
        %4162 = vmatprep.subr.bf16.mxu0 0
        %4163 = vmatpush1.bf16.msra.mxu0 0
        %4164 = vmatprep.subr.bf16.mxu0 0
        %4165 = vmatpush1.bf16.msra.mxu0 0
        %4166 = vmatprep.subr.bf16.mxu0 0
        %4167 = vmatpush1.bf16.msra.mxu0 0
        %4168 = vmatprep.subr.bf16.mxu0 0
        %4169 = vmatpush1.bf16.msra.mxu0 0
        %4170 = vmatprep.mubr.bf16.mxu0 0
        %4171 = vmatmul.mubr.bf16.gmra.mrb[0].mxu0 %v4007
        %v4172 = vpop.f32.mrb[0].mxu0
        %v4173 = vadd.f32 0.0, %v4172
        %v4174 = vpop.f32.mrb[0].mxu0
        %v4175 = vadd.f32 0.0, %v4174
        %v4176 = vpop.f32.mrb[0].mxu0
        %v4177 = vadd.f32 0.0, %v4176
        %v4178 = vpop.f32.mrb[0].mxu0
        %v4179 = vadd.f32 0.0, %v4178
        %4180 = vdwg.mxu0
        %4181 = vmatprep.subr.bf16.mxu0 %v1898
        %4182 = vmatpush1.bf16.msra.mxu0 %v1897
        %4183 = vmatprep.subr.bf16.mxu0 %v1906
        %4184 = vmatpush1.bf16.msra.mxu0 %v1905
        %4185 = vmatprep.subr.bf16.mxu0 %v1914
        %4186 = vmatpush1.bf16.msra.mxu0 %v1913
        %4187 = vmatprep.subr.bf16.mxu0 %v1922
        %4188 = vmatpush1.bf16.msra.mxu0 %v1921
        %4189 = vmatprep.subr.bf16.mxu0 %v1930
        %4190 = vmatpush1.bf16.msra.mxu0 %v1929
        %4191 = vmatprep.subr.bf16.mxu0 %v1938
        %4192 = vmatpush1.bf16.msra.mxu0 %v1937
        %4193 = vmatprep.subr.bf16.mxu0 %v1946
        %4194 = vmatpush1.bf16.msra.mxu0 %v1945
        %4195 = vmatprep.subr.bf16.mxu0 %v1954
        %4196 = vmatpush1.bf16.msra.mxu0 %v1953
        %4197 = vmatprep.subr.bf16.mxu0 0
        %4198 = vmatpush1.bf16.msra.mxu0 0
        %4199 = vmatprep.subr.bf16.mxu0 0
        %4200 = vmatpush1.bf16.msra.mxu0 0
        %4201 = vmatprep.subr.bf16.mxu0 0
        %4202 = vmatpush1.bf16.msra.mxu0 0
        %4203 = vmatprep.subr.bf16.mxu0 0
        %4204 = vmatpush1.bf16.msra.mxu0 0
        %4205 = vmatprep.subr.bf16.mxu0 0
        %4206 = vmatpush1.bf16.msra.mxu0 0
        %4207 = vmatprep.subr.bf16.mxu0 0
        %4208 = vmatpush1.bf16.msra.mxu0 0
        %4209 = vmatprep.subr.bf16.mxu0 0
        %4210 = vmatpush1.bf16.msra.mxu0 0
        %4211 = vmatprep.subr.bf16.mxu0 0
        %4212 = vmatpush1.bf16.msra.mxu0 0
        %4213 = vmatprep.mubr.bf16.mxu0 0
        %4214 = vmatmul.mubr.bf16.gmra.mrb[0].mxu0 %v1316
        %v4215 = vpop.f32.mrb[0].mxu0
        %v4216 = vadd.f32 %v4044, %v4215
        %v4217 = vpop.f32.mrb[0].mxu0
        %v4218 = vadd.f32 %v4046, %v4217
        %v4219 = vpop.f32.mrb[0].mxu0
        %v4220 = vadd.f32 %v4048, %v4219
        %v4221 = vpop.f32.mrb[0].mxu0
        %v4222 = vadd.f32 %v4050, %v4221
        %4223 = vdwg.mxu0
        %4224 = vmatprep.subr.bf16.mxu0 %v1900
        %4225 = vmatpush1.bf16.msra.mxu0 %v1899
        %4226 = vmatprep.subr.bf16.mxu0 %v1908
        %4227 = vmatpush1.bf16.msra.mxu0 %v1907
        %4228 = vmatprep.subr.bf16.mxu0 %v1916
        %4229 = vmatpush1.bf16.msra.mxu0 %v1915
        %4230 = vmatprep.subr.bf16.mxu0 %v1924
        %4231 = vmatpush1.bf16.msra.mxu0 %v1923
        %4232 = vmatprep.subr.bf16.mxu0 %v1932
        %4233 = vmatpush1.bf16.msra.mxu0 %v1931
        %4234 = vmatprep.subr.bf16.mxu0 %v1940
        %4235 = vmatpush1.bf16.msra.mxu0 %v1939
        %4236 = vmatprep.subr.bf16.mxu0 %v1948
        %4237 = vmatpush1.bf16.msra.mxu0 %v1947
        %4238 = vmatprep.subr.bf16.mxu0 %v1956
        %4239 = vmatpush1.bf16.msra.mxu0 %v1955
        %4240 = vmatprep.subr.bf16.mxu0 0
        %4241 = vmatpush1.bf16.msra.mxu0 0
        %4242 = vmatprep.subr.bf16.mxu0 0
        %4243 = vmatpush1.bf16.msra.mxu0 0
        %4244 = vmatprep.subr.bf16.mxu0 0
        %4245 = vmatpush1.bf16.msra.mxu0 0
        %4246 = vmatprep.subr.bf16.mxu0 0
        %4247 = vmatpush1.bf16.msra.mxu0 0
        %4248 = vmatprep.subr.bf16.mxu0 0
        %4249 = vmatpush1.bf16.msra.mxu0 0
        %4250 = vmatprep.subr.bf16.mxu0 0
        %4251 = vmatpush1.bf16.msra.mxu0 0
        %4252 = vmatprep.subr.bf16.mxu0 0
        %4253 = vmatpush1.bf16.msra.mxu0 0
        %4254 = vmatprep.subr.bf16.mxu0 0
        %4255 = vmatpush1.bf16.msra.mxu0 0
        %4256 = vmatprep.mubr.bf16.mxu0 0
        %4257 = vmatmul.mubr.bf16.gmra.mrb[0].mxu0 %v1316
        %v4258 = vpop.f32.mrb[0].mxu0
        %v4259 = vadd.f32 %v4087, %v4258
        %v4260 = vpop.f32.mrb[0].mxu0
        %v4261 = vadd.f32 %v4089, %v4260
        %v4262 = vpop.f32.mrb[0].mxu0
        %v4263 = vadd.f32 %v4091, %v4262
        %v4264 = vpop.f32.mrb[0].mxu0
        %v4265 = vadd.f32 %v4093, %v4264
        %4266 = vdwg.mxu0
        %4267 = vmatprep.subr.bf16.mxu0 %v1902
        %4268 = vmatpush1.bf16.msra.mxu0 %v1901
        %4269 = vmatprep.subr.bf16.mxu0 %v1910
        %4270 = vmatpush1.bf16.msra.mxu0 %v1909
        %4271 = vmatprep.subr.bf16.mxu0 %v1918
        %4272 = vmatpush1.bf16.msra.mxu0 %v1917
        %4273 = vmatprep.subr.bf16.mxu0 %v1926
        %4274 = vmatpush1.bf16.msra.mxu0 %v1925
        %4275 = vmatprep.subr.bf16.mxu0 %v1934
        %4276 = vmatpush1.bf16.msra.mxu0 %v1933
        %4277 = vmatprep.subr.bf16.mxu0 %v1942
        %4278 = vmatpush1.bf16.msra.mxu0 %v1941
        %4279 = vmatprep.subr.bf16.mxu0 %v1950
        %4280 = vmatpush1.bf16.msra.mxu0 %v1949
        %4281 = vmatprep.subr.bf16.mxu0 %v1958
        %4282 = vmatpush1.bf16.msra.mxu0 %v1957
        %4283 = vmatprep.subr.bf16.mxu0 0
        %4284 = vmatpush1.bf16.msra.mxu0 0
        %4285 = vmatprep.subr.bf16.mxu0 0
        %4286 = vmatpush1.bf16.msra.mxu0 0
        %4287 = vmatprep.subr.bf16.mxu0 0
        %4288 = vmatpush1.bf16.msra.mxu0 0
        %4289 = vmatprep.subr.bf16.mxu0 0
        %4290 = vmatpush1.bf16.msra.mxu0 0
        %4291 = vmatprep.subr.bf16.mxu0 0
        %4292 = vmatpush1.bf16.msra.mxu0 0
        %4293 = vmatprep.subr.bf16.mxu0 0
        %4294 = vmatpush1.bf16.msra.mxu0 0
        %4295 = vmatprep.subr.bf16.mxu0 0
        %4296 = vmatpush1.bf16.msra.mxu0 0
        %4297 = vmatprep.subr.bf16.mxu0 0
        %4298 = vmatpush1.bf16.msra.mxu0 0
        %4299 = vmatprep.mubr.bf16.mxu0 0
        %4300 = vmatmul.mubr.bf16.gmra.mrb[0].mxu0 %v1316
        %v4301 = vpop.f32.mrb[0].mxu0
        %v4302 = vadd.f32 %v4130, %v4301
        %v4303 = vpop.f32.mrb[0].mxu0
        %v4304 = vadd.f32 %v4132, %v4303
        %v4305 = vpop.f32.mrb[0].mxu0
        %v4306 = vadd.f32 %v4134, %v4305
        %v4307 = vpop.f32.mrb[0].mxu0
        %v4308 = vadd.f32 %v4136, %v4307
        %4309 = vdwg.mxu0
        %4310 = vmatprep.subr.bf16.mxu0 %v1904
        %4311 = vmatpush1.bf16.msra.mxu0 %v1903
        %4312 = vmatprep.subr.bf16.mxu0 %v1912
        %4313 = vmatpush1.bf16.msra.mxu0 %v1911
        %4314 = vmatprep.subr.bf16.mxu0 %v1920
        %4315 = vmatpush1.bf16.msra.mxu0 %v1919
        %4316 = vmatprep.subr.bf16.mxu0 %v1928
        %4317 = vmatpush1.bf16.msra.mxu0 %v1927
        %4318 = vmatprep.subr.bf16.mxu0 %v1936
        %4319 = vmatpush1.bf16.msra.mxu0 %v1935
        %4320 = vmatprep.subr.bf16.mxu0 %v1944
        %4321 = vmatpush1.bf16.msra.mxu0 %v1943
        %4322 = vmatprep.subr.bf16.mxu0 %v1952
        %4323 = vmatpush1.bf16.msra.mxu0 %v1951
        %4324 = vmatprep.subr.bf16.mxu0 %v1960
        %4325 = vmatpush1.bf16.msra.mxu0 %v1959
        %4326 = vmatprep.subr.bf16.mxu0 0
        %4327 = vmatpush1.bf16.msra.mxu0 0
        %4328 = vmatprep.subr.bf16.mxu0 0
        %4329 = vmatpush1.bf16.msra.mxu0 0
        %4330 = vmatprep.subr.bf16.mxu0 0
        %4331 = vmatpush1.bf16.msra.mxu0 0
        %4332 = vmatprep.subr.bf16.mxu0 0
        %4333 = vmatpush1.bf16.msra.mxu0 0
        %4334 = vmatprep.subr.bf16.mxu0 0
        %4335 = vmatpush1.bf16.msra.mxu0 0
        %4336 = vmatprep.subr.bf16.mxu0 0
        %4337 = vmatpush1.bf16.msra.mxu0 0
        %4338 = vmatprep.subr.bf16.mxu0 0
        %4339 = vmatpush1.bf16.msra.mxu0 0
        %4340 = vmatprep.subr.bf16.mxu0 0
        %4341 = vmatpush1.bf16.msra.mxu0 0
        %4342 = vmatprep.mubr.bf16.mxu0 0
        %4343 = vmatmul.mubr.bf16.gmra.mrb[0].mxu0 %v1316
        %v4344 = vpop.f32.mrb[0].mxu0
        %v4345 = vadd.f32 %v4173, %v4344
        %v4346 = vpop.f32.mrb[0].mxu0
        %v4347 = vadd.f32 %v4175, %v4346
        %v4348 = vpop.f32.mrb[0].mxu0
        %v4349 = vadd.f32 %v4177, %v4348
        %v4350 = vpop.f32.mrb[0].mxu0
        %v4351 = vadd.f32 %v4179, %v4350
        %4352 = vdwg.mxu0
        %v4353 = vadd.f32 %v4216, %v2201
        %v4354 = vadd.f32 %v4218, %v2205
        %v4355 = vadd.f32 %v4259, %v2209
        %v4356 = vadd.f32 %v4261, %v2213
        %v4357 = vadd.f32 %v4302, %v2217
        %v4358 = vadd.f32 %v4304, %v2221
        %v4359 = vadd.f32 %v4345, %v2225
        %v4360 = vadd.f32 %v4347, %v2229
        %v4361 = vadd.f32 %v4220, %v2201
        %v4362 = vadd.f32 %v4222, %v2205
        %v4363 = vadd.f32 %v4263, %v2209
        %v4364 = vadd.f32 %v4265, %v2213
        %v4365 = vadd.f32 %v4306, %v2217
        %v4366 = vadd.f32 %v4308, %v2221
        %v4367 = vadd.f32 %v4349, %v2225
        %v4368 = vadd.f32 %v4351, %v2229
        %v4369 = vpack.c.bf16 %v4361, %v4353
        %v4370 = vpack.c.bf16 %v4362, %v4354
        %v4371 = vpack.c.bf16 %v4363, %v4355
        %v4372 = vpack.c.bf16 %v4364, %v4356
        %v4373 = vpack.c.bf16 %v4365, %v4357
        %v4374 = vpack.c.bf16 %v4366, %v4358
        %v4375 = vpack.c.bf16 %v4367, %v4359
        %v4376 = vpack.c.bf16 %v4368, %v4360
        %s4377 = scalar_lea.vmem %s7, 1024
        %v4378 = vld [vmem:[%s4377] sm:$0xf]
        %v4379 = vld [vmem:[%s4377 + $0x4] sm:$0xf]
        %v4380 = vld [vmem:[%s4377 + $0x8] sm:$0xf]
        %v4381 = vld [vmem:[%s4377 + $0xc] sm:$0xf]
        %v4382 = vld [vmem:[%s4377 + $0x10] sm:$0xf]
        %v4383 = vld [vmem:[%s4377 + $0x14] sm:$0xf]
        %v4384 = vld [vmem:[%s4377 + $0x18] sm:$0xf]
        %v4385 = vld [vmem:[%s4377 + $0x1c] sm:$0xf]
        %v4386 = vld [vmem:[%s4377 + $0x20] sm:$0xf]
        %v4387 = vld [vmem:[%s4377 + $0x24] sm:$0xf]
        %v4388 = vld [vmem:[%s4377 + $0x28] sm:$0xf]
        %v4389 = vld [vmem:[%s4377 + $0x2c] sm:$0xf]
        %v4390 = vld [vmem:[%s4377 + $0x30] sm:$0xf]
        %v4391 = vld [vmem:[%s4377 + $0x34] sm:$0xf]
        %v4392 = vld [vmem:[%s4377 + $0x38] sm:$0xf]
        %v4393 = vld [vmem:[%s4377 + $0x3c] sm:$0xf]
        %v4394 = vld [vmem:[%s4377 + $0x40] sm:$0xf]
        %v4395 = vld [vmem:[%s4377 + $0x44] sm:$0xf]
        %v4396 = vld [vmem:[%s4377 + $0x48] sm:$0xf]
        %v4397 = vld [vmem:[%s4377 + $0x4c] sm:$0xf]
        %v4398 = vld [vmem:[%s4377 + $0x50] sm:$0xf]
        %v4399 = vld [vmem:[%s4377 + $0x54] sm:$0xf]
        %v4400 = vld [vmem:[%s4377 + $0x58] sm:$0xf]
        %v4401 = vld [vmem:[%s4377 + $0x5c] sm:$0xf]
        %v4402 = vld [vmem:[%s4377 + $0x60] sm:$0xf]
        %v4403 = vld [vmem:[%s4377 + $0x64] sm:$0xf]
        %v4404 = vld [vmem:[%s4377 + $0x68] sm:$0xf]
        %v4405 = vld [vmem:[%s4377 + $0x6c] sm:$0xf]
        %v4406 = vld [vmem:[%s4377 + $0x70] sm:$0xf]
        %v4407 = vld [vmem:[%s4377 + $0x74] sm:$0xf]
        %v4408 = vld [vmem:[%s4377 + $0x78] sm:$0xf]
        %v4409 = vld [vmem:[%s4377 + $0x7c] sm:$0xf]
        %v4410 = vld [vmem:[%s4377 + $0x80] sm:$0xf]
        %v4411 = vld [vmem:[%s4377 + $0x84] sm:$0xf]
        %v4412 = vld [vmem:[%s4377 + $0x88] sm:$0xf]
        %v4413 = vld [vmem:[%s4377 + $0x8c] sm:$0xf]
        %v4414 = vld [vmem:[%s4377 + $0x90] sm:$0xf]
        %v4415 = vld [vmem:[%s4377 + $0x94] sm:$0xf]
        %v4416 = vld [vmem:[%s4377 + $0x98] sm:$0xf]
        %v4417 = vld [vmem:[%s4377 + $0x9c] sm:$0xf]
        %v4418 = vld [vmem:[%s4377 + $0xa0] sm:$0xf]
        %v4419 = vld [vmem:[%s4377 + $0xa4] sm:$0xf]
        %v4420 = vld [vmem:[%s4377 + $0xa8] sm:$0xf]
        %v4421 = vld [vmem:[%s4377 + $0xac] sm:$0xf]
        %v4422 = vld [vmem:[%s4377 + $0xb0] sm:$0xf]
        %v4423 = vld [vmem:[%s4377 + $0xb4] sm:$0xf]
        %v4424 = vld [vmem:[%s4377 + $0xb8] sm:$0xf]
        %v4425 = vld [vmem:[%s4377 + $0xbc] sm:$0xf]
        %v4426 = vld [vmem:[%s4377 + $0xc0] sm:$0xf]
        %v4427 = vld [vmem:[%s4377 + $0xc4] sm:$0xf]
        %v4428 = vld [vmem:[%s4377 + $0xc8] sm:$0xf]
        %v4429 = vld [vmem:[%s4377 + $0xcc] sm:$0xf]
        %v4430 = vld [vmem:[%s4377 + $0xd0] sm:$0xf]
        %v4431 = vld [vmem:[%s4377 + $0xd4] sm:$0xf]
        %v4432 = vld [vmem:[%s4377 + $0xd8] sm:$0xf]
        %v4433 = vld [vmem:[%s4377 + $0xdc] sm:$0xf]
        %v4434 = vld [vmem:[%s4377 + $0xe0] sm:$0xf]
        %v4435 = vld [vmem:[%s4377 + $0xe4] sm:$0xf]
        %v4436 = vld [vmem:[%s4377 + $0xe8] sm:$0xf]
        %v4437 = vld [vmem:[%s4377 + $0xec] sm:$0xf]
        %v4438 = vld [vmem:[%s4377 + $0xf0] sm:$0xf]
        %v4439 = vld [vmem:[%s4377 + $0xf4] sm:$0xf]
        %v4440 = vld [vmem:[%s4377 + $0xf8] sm:$0xf]
        %v4441 = vld [vmem:[%s4377 + $0xfc] sm:$0xf]
        %v4442 = vld [vmem:[%s4377 + $0x100] sm:$0xf]
        %v4443 = vld [vmem:[%s4377 + $0x104] sm:$0xf]
        %v4444 = vld [vmem:[%s4377 + $0x108] sm:$0xf]
        %v4445 = vld [vmem:[%s4377 + $0x10c] sm:$0xf]
        %v4446 = vld [vmem:[%s4377 + $0x110] sm:$0xf]
        %v4447 = vld [vmem:[%s4377 + $0x114] sm:$0xf]
        %v4448 = vld [vmem:[%s4377 + $0x118] sm:$0xf]
        %v4449 = vld [vmem:[%s4377 + $0x11c] sm:$0xf]
        %v4450 = vld [vmem:[%s4377 + $0x120] sm:$0xf]
        %v4451 = vld [vmem:[%s4377 + $0x124] sm:$0xf]
        %v4452 = vld [vmem:[%s4377 + $0x128] sm:$0xf]
        %v4453 = vld [vmem:[%s4377 + $0x12c] sm:$0xf]
        %v4454 = vld [vmem:[%s4377 + $0x130] sm:$0xf]
        %v4455 = vld [vmem:[%s4377 + $0x134] sm:$0xf]
        %v4456 = vld [vmem:[%s4377 + $0x138] sm:$0xf]
        %v4457 = vld [vmem:[%s4377 + $0x13c] sm:$0xf]
        %v4458 = vld [vmem:[%s4377 + $0x140] sm:$0xf]
        %v4459 = vld [vmem:[%s4377 + $0x144] sm:$0xf]
        %v4460 = vld [vmem:[%s4377 + $0x148] sm:$0xf]
        %v4461 = vld [vmem:[%s4377 + $0x14c] sm:$0xf]
        %v4462 = vld [vmem:[%s4377 + $0x150] sm:$0xf]
        %v4463 = vld [vmem:[%s4377 + $0x154] sm:$0xf]
        %v4464 = vld [vmem:[%s4377 + $0x158] sm:$0xf]
        %v4465 = vld [vmem:[%s4377 + $0x15c] sm:$0xf]
        %v4466 = vld [vmem:[%s4377 + $0x160] sm:$0xf]
        %v4467 = vld [vmem:[%s4377 + $0x164] sm:$0xf]
        %v4468 = vld [vmem:[%s4377 + $0x168] sm:$0xf]
        %v4469 = vld [vmem:[%s4377 + $0x16c] sm:$0xf]
        %v4470 = vld [vmem:[%s4377 + $0x170] sm:$0xf]
        %v4471 = vld [vmem:[%s4377 + $0x174] sm:$0xf]
        %v4472 = vld [vmem:[%s4377 + $0x178] sm:$0xf]
        %v4473 = vld [vmem:[%s4377 + $0x17c] sm:$0xf]
        %v4474 = vld [vmem:[%s4377 + $0x180] sm:$0xf]
        %v4475 = vld [vmem:[%s4377 + $0x184] sm:$0xf]
        %v4476 = vld [vmem:[%s4377 + $0x188] sm:$0xf]
        %v4477 = vld [vmem:[%s4377 + $0x18c] sm:$0xf]
        %v4478 = vld [vmem:[%s4377 + $0x190] sm:$0xf]
        %v4479 = vld [vmem:[%s4377 + $0x194] sm:$0xf]
        %v4480 = vld [vmem:[%s4377 + $0x198] sm:$0xf]
        %v4481 = vld [vmem:[%s4377 + $0x19c] sm:$0xf]
        %v4482 = vld [vmem:[%s4377 + $0x1a0] sm:$0xf]
        %v4483 = vld [vmem:[%s4377 + $0x1a4] sm:$0xf]
        %v4484 = vld [vmem:[%s4377 + $0x1a8] sm:$0xf]
        %v4485 = vld [vmem:[%s4377 + $0x1ac] sm:$0xf]
        %v4486 = vld [vmem:[%s4377 + $0x1b0] sm:$0xf]
        %v4487 = vld [vmem:[%s4377 + $0x1b4] sm:$0xf]
        %v4488 = vld [vmem:[%s4377 + $0x1b8] sm:$0xf]
        %v4489 = vld [vmem:[%s4377 + $0x1bc] sm:$0xf]
        %v4490 = vld [vmem:[%s4377 + $0x1c0] sm:$0xf]
        %v4491 = vld [vmem:[%s4377 + $0x1c4] sm:$0xf]
        %v4492 = vld [vmem:[%s4377 + $0x1c8] sm:$0xf]
        %v4493 = vld [vmem:[%s4377 + $0x1cc] sm:$0xf]
        %v4494 = vld [vmem:[%s4377 + $0x1d0] sm:$0xf]
        %v4495 = vld [vmem:[%s4377 + $0x1d4] sm:$0xf]
        %v4496 = vld [vmem:[%s4377 + $0x1d8] sm:$0xf]
        %v4497 = vld [vmem:[%s4377 + $0x1dc] sm:$0xf]
        %v4498 = vld [vmem:[%s4377 + $0x1e0] sm:$0xf]
        %v4499 = vld [vmem:[%s4377 + $0x1e4] sm:$0xf]
        %v4500 = vld [vmem:[%s4377 + $0x1e8] sm:$0xf]
        %v4501 = vld [vmem:[%s4377 + $0x1ec] sm:$0xf]
        %v4502 = vld [vmem:[%s4377 + $0x1f0] sm:$0xf]
        %v4503 = vld [vmem:[%s4377 + $0x1f4] sm:$0xf]
        %v4504 = vld [vmem:[%s4377 + $0x1f8] sm:$0xf]
        %v4505 = vld [vmem:[%s4377 + $0x1fc] sm:$0xf]
        %v4634 = vunpack.c.l.b16 %v4378
        %v4635 = vunpack.c.l.b16 %v4379
        %v4636 = vunpack.c.l.b16 %v4380
        %v4637 = vunpack.c.l.b16 %v4381
        %v4638 = vunpack.c.l.b16 %v4382
        %v4639 = vunpack.c.l.b16 %v4383
        %v4640 = vunpack.c.l.b16 %v4384
        %v4641 = vunpack.c.l.b16 %v4385
        %v4642 = vunpack.c.l.b16 %v4386
        %v4643 = vunpack.c.l.b16 %v4387
        %v4644 = vunpack.c.l.b16 %v4388
        %v4645 = vunpack.c.l.b16 %v4389
        %v4646 = vunpack.c.l.b16 %v4390
        %v4647 = vunpack.c.l.b16 %v4391
        %v4648 = vunpack.c.l.b16 %v4392
        %v4649 = vunpack.c.l.b16 %v4393
        %v4650 = vunpack.c.l.b16 %v4394
        %v4651 = vunpack.c.l.b16 %v4395
        %v4652 = vunpack.c.l.b16 %v4396
        %v4653 = vunpack.c.l.b16 %v4397
        %v4654 = vunpack.c.l.b16 %v4398
        %v4655 = vunpack.c.l.b16 %v4399
        %v4656 = vunpack.c.l.b16 %v4400
        %v4657 = vunpack.c.l.b16 %v4401
        %v4658 = vunpack.c.l.b16 %v4402
        %v4659 = vunpack.c.l.b16 %v4403
        %v4660 = vunpack.c.l.b16 %v4404
        %v4661 = vunpack.c.l.b16 %v4405
        %v4662 = vunpack.c.l.b16 %v4406
        %v4663 = vunpack.c.l.b16 %v4407
        %v4664 = vunpack.c.l.b16 %v4408
        %v4665 = vunpack.c.l.b16 %v4409
        %v4666 = vunpack.c.l.b16 %v4410
        %v4667 = vunpack.c.l.b16 %v4411
        %v4668 = vunpack.c.l.b16 %v4412
        %v4669 = vunpack.c.l.b16 %v4413
        %v4670 = vunpack.c.l.b16 %v4414
        %v4671 = vunpack.c.l.b16 %v4415
        %v4672 = vunpack.c.l.b16 %v4416
        %v4673 = vunpack.c.l.b16 %v4417
        %v4674 = vunpack.c.l.b16 %v4418
        %v4675 = vunpack.c.l.b16 %v4419
        %v4676 = vunpack.c.l.b16 %v4420
        %v4677 = vunpack.c.l.b16 %v4421
        %v4678 = vunpack.c.l.b16 %v4422
        %v4679 = vunpack.c.l.b16 %v4423
        %v4680 = vunpack.c.l.b16 %v4424
        %v4681 = vunpack.c.l.b16 %v4425
        %v4682 = vunpack.c.l.b16 %v4426
        %v4683 = vunpack.c.l.b16 %v4427
        %v4684 = vunpack.c.l.b16 %v4428
        %v4685 = vunpack.c.l.b16 %v4429
        %v4686 = vunpack.c.l.b16 %v4430
        %v4687 = vunpack.c.l.b16 %v4431
        %v4688 = vunpack.c.l.b16 %v4432
        %v4689 = vunpack.c.l.b16 %v4433
        %v4690 = vunpack.c.l.b16 %v4434
        %v4691 = vunpack.c.l.b16 %v4435
        %v4692 = vunpack.c.l.b16 %v4436
        %v4693 = vunpack.c.l.b16 %v4437
        %v4694 = vunpack.c.l.b16 %v4438
        %v4695 = vunpack.c.l.b16 %v4439
        %v4696 = vunpack.c.l.b16 %v4440
        %v4697 = vunpack.c.l.b16 %v4441
        %v4698 = vunpack.c.l.b16 %v4442
        %v4699 = vunpack.c.l.b16 %v4443
        %v4700 = vunpack.c.l.b16 %v4444
        %v4701 = vunpack.c.l.b16 %v4445
        %v4702 = vunpack.c.l.b16 %v4446
        %v4703 = vunpack.c.l.b16 %v4447
        %v4704 = vunpack.c.l.b16 %v4448
        %v4705 = vunpack.c.l.b16 %v4449
        %v4706 = vunpack.c.l.b16 %v4450
        %v4707 = vunpack.c.l.b16 %v4451
        %v4708 = vunpack.c.l.b16 %v4452
        %v4709 = vunpack.c.l.b16 %v4453
        %v4710 = vunpack.c.l.b16 %v4454
        %v4711 = vunpack.c.l.b16 %v4455
        %v4712 = vunpack.c.l.b16 %v4456
        %v4713 = vunpack.c.l.b16 %v4457
        %v4714 = vunpack.c.l.b16 %v4458
        %v4715 = vunpack.c.l.b16 %v4459
        %v4716 = vunpack.c.l.b16 %v4460
        %v4717 = vunpack.c.l.b16 %v4461
        %v4718 = vunpack.c.l.b16 %v4462
        %v4719 = vunpack.c.l.b16 %v4463
        %v4720 = vunpack.c.l.b16 %v4464
        %v4721 = vunpack.c.l.b16 %v4465
        %v4722 = vunpack.c.l.b16 %v4466
        %v4723 = vunpack.c.l.b16 %v4467
        %v4724 = vunpack.c.l.b16 %v4468
        %v4725 = vunpack.c.l.b16 %v4469
        %v4726 = vunpack.c.l.b16 %v4470
        %v4727 = vunpack.c.l.b16 %v4471
        %v4728 = vunpack.c.l.b16 %v4472
        %v4729 = vunpack.c.l.b16 %v4473
        %v4730 = vunpack.c.l.b16 %v4474
        %v4731 = vunpack.c.l.b16 %v4475
        %v4732 = vunpack.c.l.b16 %v4476
        %v4733 = vunpack.c.l.b16 %v4477
        %v4734 = vunpack.c.l.b16 %v4478
        %v4735 = vunpack.c.l.b16 %v4479
        %v4736 = vunpack.c.l.b16 %v4480
        %v4737 = vunpack.c.l.b16 %v4481
        %v4738 = vunpack.c.l.b16 %v4482
        %v4739 = vunpack.c.l.b16 %v4483
        %v4740 = vunpack.c.l.b16 %v4484
        %v4741 = vunpack.c.l.b16 %v4485
        %v4742 = vunpack.c.l.b16 %v4486
        %v4743 = vunpack.c.l.b16 %v4487
        %v4744 = vunpack.c.l.b16 %v4488
        %v4745 = vunpack.c.l.b16 %v4489
        %v4746 = vunpack.c.l.b16 %v4490
        %v4747 = vunpack.c.l.b16 %v4491
        %v4748 = vunpack.c.l.b16 %v4492
        %v4749 = vunpack.c.l.b16 %v4493
        %v4750 = vunpack.c.l.b16 %v4494
        %v4751 = vunpack.c.l.b16 %v4495
        %v4752 = vunpack.c.l.b16 %v4496
        %v4753 = vunpack.c.l.b16 %v4497
        %v4754 = vunpack.c.l.b16 %v4498
        %v4755 = vunpack.c.l.b16 %v4499
        %v4756 = vunpack.c.l.b16 %v4500
        %v4757 = vunpack.c.l.b16 %v4501
        %v4758 = vunpack.c.l.b16 %v4502
        %v4759 = vunpack.c.l.b16 %v4503
        %v4760 = vunpack.c.l.b16 %v4504
        %v4761 = vunpack.c.l.b16 %v4505
        %v4762 = vpack.c.b16 %v4635, %v4634
        %v4763 = vpack.c.b16 %v4637, %v4636
        %v4764 = vpack.c.b16 %v4639, %v4638
        %v4765 = vpack.c.b16 %v4641, %v4640
        %v4766 = vpack.c.b16 %v4643, %v4642
        %v4767 = vpack.c.b16 %v4645, %v4644
        %v4768 = vpack.c.b16 %v4647, %v4646
        %v4769 = vpack.c.b16 %v4649, %v4648
        %v4770 = vpack.c.b16 %v4651, %v4650
        %v4771 = vpack.c.b16 %v4653, %v4652
        %v4772 = vpack.c.b16 %v4655, %v4654
        %v4773 = vpack.c.b16 %v4657, %v4656
        %v4774 = vpack.c.b16 %v4659, %v4658
        %v4775 = vpack.c.b16 %v4661, %v4660
        %v4776 = vpack.c.b16 %v4663, %v4662
        %v4777 = vpack.c.b16 %v4665, %v4664
        %v4778 = vpack.c.b16 %v4667, %v4666
        %v4779 = vpack.c.b16 %v4669, %v4668
        %v4780 = vpack.c.b16 %v4671, %v4670
        %v4781 = vpack.c.b16 %v4673, %v4672
        %v4782 = vpack.c.b16 %v4675, %v4674
        %v4783 = vpack.c.b16 %v4677, %v4676
        %v4784 = vpack.c.b16 %v4679, %v4678
        %v4785 = vpack.c.b16 %v4681, %v4680
        %v4786 = vpack.c.b16 %v4683, %v4682
        %v4787 = vpack.c.b16 %v4685, %v4684
        %v4788 = vpack.c.b16 %v4687, %v4686
        %v4789 = vpack.c.b16 %v4689, %v4688
        %v4790 = vpack.c.b16 %v4691, %v4690
        %v4791 = vpack.c.b16 %v4693, %v4692
        %v4792 = vpack.c.b16 %v4695, %v4694
        %v4793 = vpack.c.b16 %v4697, %v4696
        %v4794 = vpack.c.b16 %v4699, %v4698
        %v4795 = vpack.c.b16 %v4701, %v4700
        %v4796 = vpack.c.b16 %v4703, %v4702
        %v4797 = vpack.c.b16 %v4705, %v4704
        %v4798 = vpack.c.b16 %v4707, %v4706
        %v4799 = vpack.c.b16 %v4709, %v4708
        %v4800 = vpack.c.b16 %v4711, %v4710
        %v4801 = vpack.c.b16 %v4713, %v4712
        %v4802 = vpack.c.b16 %v4715, %v4714
        %v4803 = vpack.c.b16 %v4717, %v4716
        %v4804 = vpack.c.b16 %v4719, %v4718
        %v4805 = vpack.c.b16 %v4721, %v4720
        %v4806 = vpack.c.b16 %v4723, %v4722
        %v4807 = vpack.c.b16 %v4725, %v4724
        %v4808 = vpack.c.b16 %v4727, %v4726
        %v4809 = vpack.c.b16 %v4729, %v4728
        %v4810 = vpack.c.b16 %v4731, %v4730
        %v4811 = vpack.c.b16 %v4733, %v4732
        %v4812 = vpack.c.b16 %v4735, %v4734
        %v4813 = vpack.c.b16 %v4737, %v4736
        %v4814 = vpack.c.b16 %v4739, %v4738
        %v4815 = vpack.c.b16 %v4741, %v4740
        %v4816 = vpack.c.b16 %v4743, %v4742
        %v4817 = vpack.c.b16 %v4745, %v4744
        %v4818 = vpack.c.b16 %v4747, %v4746
        %v4819 = vpack.c.b16 %v4749, %v4748
        %v4820 = vpack.c.b16 %v4751, %v4750
        %v4821 = vpack.c.b16 %v4753, %v4752
        %v4822 = vpack.c.b16 %v4755, %v4754
        %v4823 = vpack.c.b16 %v4757, %v4756
        %v4824 = vpack.c.b16 %v4759, %v4758
        %v4825 = vpack.c.b16 %v4761, %v4760
        %4890 = vmatprep.subr.bf16.mxu0 0
        %4891 = vmatpush1.bf16.msra.mxu0 %v4762
        %4892 = vmatprep.subr.bf16.mxu0 0
        %4893 = vmatpush1.bf16.msra.mxu0 %v4763
        %4894 = vmatprep.subr.bf16.mxu0 0
        %4895 = vmatpush1.bf16.msra.mxu0 %v4764
        %4896 = vmatprep.subr.bf16.mxu0 0
        %4897 = vmatpush1.bf16.msra.mxu0 %v4765
        %4898 = vmatprep.subr.bf16.mxu0 0
        %4899 = vmatpush1.bf16.msra.mxu0 %v4766
        %4900 = vmatprep.subr.bf16.mxu0 0
        %4901 = vmatpush1.bf16.msra.mxu0 %v4767
        %4902 = vmatprep.subr.bf16.mxu0 0
        %4903 = vmatpush1.bf16.msra.mxu0 %v4768
        %4904 = vmatprep.subr.bf16.mxu0 0
        %4905 = vmatpush1.bf16.msra.mxu0 %v4769
        %4906 = vmatprep.subr.bf16.mxu0 0
        %4907 = vmatpush1.bf16.msra.mxu0 %v4770
        %4908 = vmatprep.subr.bf16.mxu0 0
        %4909 = vmatpush1.bf16.msra.mxu0 %v4771
        %4910 = vmatprep.subr.bf16.mxu0 0
        %4911 = vmatpush1.bf16.msra.mxu0 %v4772
        %4912 = vmatprep.subr.bf16.mxu0 0
        %4913 = vmatpush1.bf16.msra.mxu0 %v4773
        %4914 = vmatprep.subr.bf16.mxu0 0
        %4915 = vmatpush1.bf16.msra.mxu0 %v4774
        %4916 = vmatprep.subr.bf16.mxu0 0
        %4917 = vmatpush1.bf16.msra.mxu0 %v4775
        %4918 = vmatprep.subr.bf16.mxu0 0
        %4919 = vmatpush1.bf16.msra.mxu0 %v4776
        %4920 = vmatprep.subr.bf16.mxu0 0
        %4921 = vmatpush1.bf16.msra.mxu0 %v4777
        %4922 = vmatprep.mubr.bf16.mxu0 %v4370
        %4923 = vmatmul.mubr.bf16.gmra.mrb[0].mxu0 %v4369
        %v4924 = vpop.f32.mrb[0].mxu0
        %v4925 = vadd.f32 0.0, %v4924
        %v4926 = vpop.f32.mrb[0].mxu0
        %v4927 = vpop.f32.mrb[0].mxu0
        %v4928 = vadd.f32 0.0, %v4927
        %v4929 = vpop.f32.mrb[0].mxu0
        %4930 = vdwg.mxu0
        %4931 = vmatprep.subr.bf16.mxu0 0
        %4932 = vmatpush1.bf16.msra.mxu0 %v4778
        %4933 = vmatprep.subr.bf16.mxu0 0
        %4934 = vmatpush1.bf16.msra.mxu0 %v4779
        %4935 = vmatprep.subr.bf16.mxu0 0
        %4936 = vmatpush1.bf16.msra.mxu0 %v4780
        %4937 = vmatprep.subr.bf16.mxu0 0
        %4938 = vmatpush1.bf16.msra.mxu0 %v4781
        %4939 = vmatprep.subr.bf16.mxu0 0
        %4940 = vmatpush1.bf16.msra.mxu0 %v4782
        %4941 = vmatprep.subr.bf16.mxu0 0
        %4942 = vmatpush1.bf16.msra.mxu0 %v4783
        %4943 = vmatprep.subr.bf16.mxu0 0
        %4944 = vmatpush1.bf16.msra.mxu0 %v4784
        %4945 = vmatprep.subr.bf16.mxu0 0
        %4946 = vmatpush1.bf16.msra.mxu0 %v4785
        %4947 = vmatprep.subr.bf16.mxu0 0
        %4948 = vmatpush1.bf16.msra.mxu0 %v4786
        %4949 = vmatprep.subr.bf16.mxu0 0
        %4950 = vmatpush1.bf16.msra.mxu0 %v4787
        %4951 = vmatprep.subr.bf16.mxu0 0
        %4952 = vmatpush1.bf16.msra.mxu0 %v4788
        %4953 = vmatprep.subr.bf16.mxu0 0
        %4954 = vmatpush1.bf16.msra.mxu0 %v4789
        %4955 = vmatprep.subr.bf16.mxu0 0
        %4956 = vmatpush1.bf16.msra.mxu0 %v4790
        %4957 = vmatprep.subr.bf16.mxu0 0
        %4958 = vmatpush1.bf16.msra.mxu0 %v4791
        %4959 = vmatprep.subr.bf16.mxu0 0
        %4960 = vmatpush1.bf16.msra.mxu0 %v4792
        %4961 = vmatprep.subr.bf16.mxu0 0
        %4962 = vmatpush1.bf16.msra.mxu0 %v4793
        %4963 = vmatprep.mubr.bf16.mxu0 %v4372
        %4964 = vmatmul.mubr.bf16.gmra.mrb[0].mxu0 %v4371
        %v4965 = vpop.f32.mrb[0].mxu0
        %v4966 = vadd.f32 %v4925, %v4965
        %v4967 = vpop.f32.mrb[0].mxu0
        %v4968 = vpop.f32.mrb[0].mxu0
        %v4969 = vadd.f32 %v4928, %v4968
        %v4970 = vpop.f32.mrb[0].mxu0
        %4971 = vdwg.mxu0
        %4972 = vmatprep.subr.bf16.mxu0 0
        %4973 = vmatpush1.bf16.msra.mxu0 %v4794
        %4974 = vmatprep.subr.bf16.mxu0 0
        %4975 = vmatpush1.bf16.msra.mxu0 %v4795
        %4976 = vmatprep.subr.bf16.mxu0 0
        %4977 = vmatpush1.bf16.msra.mxu0 %v4796
        %4978 = vmatprep.subr.bf16.mxu0 0
        %4979 = vmatpush1.bf16.msra.mxu0 %v4797
        %4980 = vmatprep.subr.bf16.mxu0 0
        %4981 = vmatpush1.bf16.msra.mxu0 %v4798
        %4982 = vmatprep.subr.bf16.mxu0 0
        %4983 = vmatpush1.bf16.msra.mxu0 %v4799
        %4984 = vmatprep.subr.bf16.mxu0 0
        %4985 = vmatpush1.bf16.msra.mxu0 %v4800
        %4986 = vmatprep.subr.bf16.mxu0 0
        %4987 = vmatpush1.bf16.msra.mxu0 %v4801
        %4988 = vmatprep.subr.bf16.mxu0 0
        %4989 = vmatpush1.bf16.msra.mxu0 %v4802
        %4990 = vmatprep.subr.bf16.mxu0 0
        %4991 = vmatpush1.bf16.msra.mxu0 %v4803
        %4992 = vmatprep.subr.bf16.mxu0 0
        %4993 = vmatpush1.bf16.msra.mxu0 %v4804
        %4994 = vmatprep.subr.bf16.mxu0 0
        %4995 = vmatpush1.bf16.msra.mxu0 %v4805
        %4996 = vmatprep.subr.bf16.mxu0 0
        %4997 = vmatpush1.bf16.msra.mxu0 %v4806
        %4998 = vmatprep.subr.bf16.mxu0 0
        %4999 = vmatpush1.bf16.msra.mxu0 %v4807
        %5000 = vmatprep.subr.bf16.mxu0 0
        %5001 = vmatpush1.bf16.msra.mxu0 %v4808
        %5002 = vmatprep.subr.bf16.mxu0 0
        %5003 = vmatpush1.bf16.msra.mxu0 %v4809
        %5004 = vmatprep.mubr.bf16.mxu0 %v4374
        %5005 = vmatmul.mubr.bf16.gmra.mrb[0].mxu0 %v4373
        %v5006 = vpop.f32.mrb[0].mxu0
        %v5007 = vadd.f32 %v4966, %v5006
        %v5008 = vpop.f32.mrb[0].mxu0
        %v5009 = vpop.f32.mrb[0].mxu0
        %v5010 = vadd.f32 %v4969, %v5009
        %v5011 = vpop.f32.mrb[0].mxu0
        %5012 = vdwg.mxu0
        %5013 = vmatprep.subr.bf16.mxu0 0
        %5014 = vmatpush1.bf16.msra.mxu0 %v4810
        %5015 = vmatprep.subr.bf16.mxu0 0
        %5016 = vmatpush1.bf16.msra.mxu0 %v4811
        %5017 = vmatprep.subr.bf16.mxu0 0
        %5018 = vmatpush1.bf16.msra.mxu0 %v4812
        %5019 = vmatprep.subr.bf16.mxu0 0
        %5020 = vmatpush1.bf16.msra.mxu0 %v4813
        %5021 = vmatprep.subr.bf16.mxu0 0
        %5022 = vmatpush1.bf16.msra.mxu0 %v4814
        %5023 = vmatprep.subr.bf16.mxu0 0
        %5024 = vmatpush1.bf16.msra.mxu0 %v4815
        %5025 = vmatprep.subr.bf16.mxu0 0
        %5026 = vmatpush1.bf16.msra.mxu0 %v4816
        %5027 = vmatprep.subr.bf16.mxu0 0
        %5028 = vmatpush1.bf16.msra.mxu0 %v4817
        %5029 = vmatprep.subr.bf16.mxu0 0
        %5030 = vmatpush1.bf16.msra.mxu0 %v4818
        %5031 = vmatprep.subr.bf16.mxu0 0
        %5032 = vmatpush1.bf16.msra.mxu0 %v4819
        %5033 = vmatprep.subr.bf16.mxu0 0
        %5034 = vmatpush1.bf16.msra.mxu0 %v4820
        %5035 = vmatprep.subr.bf16.mxu0 0
        %5036 = vmatpush1.bf16.msra.mxu0 %v4821
        %5037 = vmatprep.subr.bf16.mxu0 0
        %5038 = vmatpush1.bf16.msra.mxu0 %v4822
        %5039 = vmatprep.subr.bf16.mxu0 0
        %5040 = vmatpush1.bf16.msra.mxu0 %v4823
        %5041 = vmatprep.subr.bf16.mxu0 0
        %5042 = vmatpush1.bf16.msra.mxu0 %v4824
        %5043 = vmatprep.subr.bf16.mxu0 0
        %5044 = vmatpush1.bf16.msra.mxu0 %v4825
        %5045 = vmatprep.mubr.bf16.mxu0 %v4376
        %5046 = vmatmul.mubr.bf16.gmra.mrb[0].mxu0 %v4375
        %v5047 = vpop.f32.mrb[0].mxu0
        %v5048 = vadd.f32 %v5007, %v5047
        %v5049 = vpop.f32.mrb[0].mxu0
        %v5050 = vpop.f32.mrb[0].mxu0
        %v5051 = vadd.f32 %v5010, %v5050
        %v5052 = vpop.f32.mrb[0].mxu0
        %5053 = vdwg.mxu0
        %v5054 = vadd.f32 %v3996, %v5048
        %v5055 = vadd.f32 %v3997, %v5051
        %s5056 = scalar_lea.vmem %s488, 24 [#allocation2]
        %v5057 = vld [vmem:[%s5056] sm:$0xf]
        %v5058 = vld [vmem:[%s5056 + $0x4] sm:$0xf]
        %v5061 = vunpack.c.l.b16 %v5057
        %v5062 = vunpack.c.l.b16 %v5058
        %v5063 = vpack.c.b16 %v5062, %v5061
        %v5065 = vsel %vm1529, %v5063, 0
        %5067 = vmatprep.subr.bf16.mxu0 %v1514
        %5068 = vmatpush1.bf16.msra.mxu0 %v1513
        %5069 = vmatprep.subr.bf16.mxu0 0
        %5070 = vmatpush1.bf16.msra.mxu0 0
        %5071 = vmatprep.subr.bf16.mxu0 0
        %5072 = vmatpush1.bf16.msra.mxu0 0
        %5073 = vmatprep.subr.bf16.mxu0 0
        %5074 = vmatpush1.bf16.msra.mxu0 0
        %5075 = vmatprep.subr.bf16.mxu0 0
        %5076 = vmatpush1.bf16.msra.mxu0 0
        %5077 = vmatprep.subr.bf16.mxu0 0
        %5078 = vmatpush1.bf16.msra.mxu0 0
        %5079 = vmatprep.subr.bf16.mxu0 0
        %5080 = vmatpush1.bf16.msra.mxu0 0
        %5081 = vmatprep.subr.bf16.mxu0 0
        %5082 = vmatpush1.bf16.msra.mxu0 0
        %5083 = vmatprep.subr.bf16.mxu0 0
        %5084 = vmatpush1.bf16.msra.mxu0 0
        %5085 = vmatprep.subr.bf16.mxu0 0
        %5086 = vmatpush1.bf16.msra.mxu0 0
        %5087 = vmatprep.subr.bf16.mxu0 0
        %5088 = vmatpush1.bf16.msra.mxu0 0
        %5089 = vmatprep.subr.bf16.mxu0 0
        %5090 = vmatpush1.bf16.msra.mxu0 0
        %5091 = vmatprep.subr.bf16.mxu0 0
        %5092 = vmatpush1.bf16.msra.mxu0 0
        %5093 = vmatprep.subr.bf16.mxu0 0
        %5094 = vmatpush1.bf16.msra.mxu0 0
        %5095 = vmatprep.subr.bf16.mxu0 0
        %5096 = vmatpush1.bf16.msra.mxu0 0
        %5097 = vmatprep.subr.bf16.mxu0 0
        %5098 = vmatpush1.bf16.msra.mxu0 0
        %5099 = vmatprep.mubr.bf16.mxu0 0
        %5100 = vmatmul.mubr.bf16.gmra.mrb[0].mxu0 %v5065
        %v5101 = vpop.f32.mrb[0].mxu0
        %v5102 = vadd.f32 0.0, %v5101
        %v5103 = vpop.f32.mrb[0].mxu0
        %v5104 = vadd.f32 0.0, %v5103
        %v5105 = vpop.f32.mrb[0].mxu0
        %v5106 = vadd.f32 0.0, %v5105
        %v5107 = vpop.f32.mrb[0].mxu0
        %v5108 = vadd.f32 0.0, %v5107
        %5109 = vdwg.mxu0
        %5110 = vmatprep.subr.bf16.mxu0 %v1516
        %5111 = vmatpush1.bf16.msra.mxu0 %v1515
        %5112 = vmatprep.subr.bf16.mxu0 0
        %5113 = vmatpush1.bf16.msra.mxu0 0
        %5114 = vmatprep.subr.bf16.mxu0 0
        %5115 = vmatpush1.bf16.msra.mxu0 0
        %5116 = vmatprep.subr.bf16.mxu0 0
        %5117 = vmatpush1.bf16.msra.mxu0 0
        %5118 = vmatprep.subr.bf16.mxu0 0
        %5119 = vmatpush1.bf16.msra.mxu0 0
        %5120 = vmatprep.subr.bf16.mxu0 0
        %5121 = vmatpush1.bf16.msra.mxu0 0
        %5122 = vmatprep.subr.bf16.mxu0 0
        %5123 = vmatpush1.bf16.msra.mxu0 0
        %5124 = vmatprep.subr.bf16.mxu0 0
        %5125 = vmatpush1.bf16.msra.mxu0 0
        %5126 = vmatprep.subr.bf16.mxu0 0
        %5127 = vmatpush1.bf16.msra.mxu0 0
        %5128 = vmatprep.subr.bf16.mxu0 0
        %5129 = vmatpush1.bf16.msra.mxu0 0
        %5130 = vmatprep.subr.bf16.mxu0 0
        %5131 = vmatpush1.bf16.msra.mxu0 0
        %5132 = vmatprep.subr.bf16.mxu0 0
        %5133 = vmatpush1.bf16.msra.mxu0 0
        %5134 = vmatprep.subr.bf16.mxu0 0
        %5135 = vmatpush1.bf16.msra.mxu0 0
        %5136 = vmatprep.subr.bf16.mxu0 0
        %5137 = vmatpush1.bf16.msra.mxu0 0
        %5138 = vmatprep.subr.bf16.mxu0 0
        %5139 = vmatpush1.bf16.msra.mxu0 0
        %5140 = vmatprep.subr.bf16.mxu0 0
        %5141 = vmatpush1.bf16.msra.mxu0 0
        %5142 = vmatprep.mubr.bf16.mxu0 0
        %5143 = vmatmul.mubr.bf16.gmra.mrb[0].mxu0 %v5065
        %v5144 = vpop.f32.mrb[0].mxu0
        %v5145 = vadd.f32 0.0, %v5144
        %v5146 = vpop.f32.mrb[0].mxu0
        %v5147 = vadd.f32 0.0, %v5146
        %v5148 = vpop.f32.mrb[0].mxu0
        %v5149 = vadd.f32 0.0, %v5148
        %v5150 = vpop.f32.mrb[0].mxu0
        %v5151 = vadd.f32 0.0, %v5150
        %5152 = vdwg.mxu0
        %5153 = vmatprep.subr.bf16.mxu0 %v1518
        %5154 = vmatpush1.bf16.msra.mxu0 %v1517
        %5155 = vmatprep.subr.bf16.mxu0 0
        %5156 = vmatpush1.bf16.msra.mxu0 0
        %5157 = vmatprep.subr.bf16.mxu0 0
        %5158 = vmatpush1.bf16.msra.mxu0 0
        %5159 = vmatprep.subr.bf16.mxu0 0
        %5160 = vmatpush1.bf16.msra.mxu0 0
        %5161 = vmatprep.subr.bf16.mxu0 0
        %5162 = vmatpush1.bf16.msra.mxu0 0
        %5163 = vmatprep.subr.bf16.mxu0 0
        %5164 = vmatpush1.bf16.msra.mxu0 0
        %5165 = vmatprep.subr.bf16.mxu0 0
        %5166 = vmatpush1.bf16.msra.mxu0 0
        %5167 = vmatprep.subr.bf16.mxu0 0
        %5168 = vmatpush1.bf16.msra.mxu0 0
        %5169 = vmatprep.subr.bf16.mxu0 0
        %5170 = vmatpush1.bf16.msra.mxu0 0
        %5171 = vmatprep.subr.bf16.mxu0 0
        %5172 = vmatpush1.bf16.msra.mxu0 0
        %5173 = vmatprep.subr.bf16.mxu0 0
        %5174 = vmatpush1.bf16.msra.mxu0 0
        %5175 = vmatprep.subr.bf16.mxu0 0
        %5176 = vmatpush1.bf16.msra.mxu0 0
        %5177 = vmatprep.subr.bf16.mxu0 0
        %5178 = vmatpush1.bf16.msra.mxu0 0
        %5179 = vmatprep.subr.bf16.mxu0 0
        %5180 = vmatpush1.bf16.msra.mxu0 0
        %5181 = vmatprep.subr.bf16.mxu0 0
        %5182 = vmatpush1.bf16.msra.mxu0 0
        %5183 = vmatprep.subr.bf16.mxu0 0
        %5184 = vmatpush1.bf16.msra.mxu0 0
        %5185 = vmatprep.mubr.bf16.mxu0 0
        %5186 = vmatmul.mubr.bf16.gmra.mrb[0].mxu0 %v5065
        %v5187 = vpop.f32.mrb[0].mxu0
        %v5188 = vadd.f32 0.0, %v5187
        %v5189 = vpop.f32.mrb[0].mxu0
        %v5190 = vadd.f32 0.0, %v5189
        %v5191 = vpop.f32.mrb[0].mxu0
        %v5192 = vadd.f32 0.0, %v5191
        %v5193 = vpop.f32.mrb[0].mxu0
        %v5194 = vadd.f32 0.0, %v5193
        %5195 = vdwg.mxu0
        %5196 = vmatprep.subr.bf16.mxu0 %v1520
        %5197 = vmatpush1.bf16.msra.mxu0 %v1519
        %5198 = vmatprep.subr.bf16.mxu0 0
        %5199 = vmatpush1.bf16.msra.mxu0 0
        %5200 = vmatprep.subr.bf16.mxu0 0
        %5201 = vmatpush1.bf16.msra.mxu0 0
        %5202 = vmatprep.subr.bf16.mxu0 0
        %5203 = vmatpush1.bf16.msra.mxu0 0
        %5204 = vmatprep.subr.bf16.mxu0 0
        %5205 = vmatpush1.bf16.msra.mxu0 0
        %5206 = vmatprep.subr.bf16.mxu0 0
        %5207 = vmatpush1.bf16.msra.mxu0 0
        %5208 = vmatprep.subr.bf16.mxu0 0
        %5209 = vmatpush1.bf16.msra.mxu0 0
        %5210 = vmatprep.subr.bf16.mxu0 0
        %5211 = vmatpush1.bf16.msra.mxu0 0
        %5212 = vmatprep.subr.bf16.mxu0 0
        %5213 = vmatpush1.bf16.msra.mxu0 0
        %5214 = vmatprep.subr.bf16.mxu0 0
        %5215 = vmatpush1.bf16.msra.mxu0 0
        %5216 = vmatprep.subr.bf16.mxu0 0
        %5217 = vmatpush1.bf16.msra.mxu0 0
        %5218 = vmatprep.subr.bf16.mxu0 0
        %5219 = vmatpush1.bf16.msra.mxu0 0
        %5220 = vmatprep.subr.bf16.mxu0 0
        %5221 = vmatpush1.bf16.msra.mxu0 0
        %5222 = vmatprep.subr.bf16.mxu0 0
        %5223 = vmatpush1.bf16.msra.mxu0 0
        %5224 = vmatprep.subr.bf16.mxu0 0
        %5225 = vmatpush1.bf16.msra.mxu0 0
        %5226 = vmatprep.subr.bf16.mxu0 0
        %5227 = vmatpush1.bf16.msra.mxu0 0
        %5228 = vmatprep.mubr.bf16.mxu0 0
        %5229 = vmatmul.mubr.bf16.gmra.mrb[0].mxu0 %v5065
        %v5230 = vpop.f32.mrb[0].mxu0
        %v5231 = vadd.f32 0.0, %v5230
        %v5232 = vpop.f32.mrb[0].mxu0
        %v5233 = vadd.f32 0.0, %v5232
        %v5234 = vpop.f32.mrb[0].mxu0
        %v5235 = vadd.f32 0.0, %v5234
        %v5236 = vpop.f32.mrb[0].mxu0
        %v5237 = vadd.f32 0.0, %v5236
        %5238 = vdwg.mxu0
        %5239 = vmatprep.subr.bf16.mxu0 %v1898
        %5240 = vmatpush1.bf16.msra.mxu0 %v1897
        %5241 = vmatprep.subr.bf16.mxu0 %v1906
        %5242 = vmatpush1.bf16.msra.mxu0 %v1905
        %5243 = vmatprep.subr.bf16.mxu0 %v1914
        %5244 = vmatpush1.bf16.msra.mxu0 %v1913
        %5245 = vmatprep.subr.bf16.mxu0 %v1922
        %5246 = vmatpush1.bf16.msra.mxu0 %v1921
        %5247 = vmatprep.subr.bf16.mxu0 %v1930
        %5248 = vmatpush1.bf16.msra.mxu0 %v1929
        %5249 = vmatprep.subr.bf16.mxu0 %v1938
        %5250 = vmatpush1.bf16.msra.mxu0 %v1937
        %5251 = vmatprep.subr.bf16.mxu0 %v1946
        %5252 = vmatpush1.bf16.msra.mxu0 %v1945
        %5253 = vmatprep.subr.bf16.mxu0 %v1954
        %5254 = vmatpush1.bf16.msra.mxu0 %v1953
        %5255 = vmatprep.subr.bf16.mxu0 0
        %5256 = vmatpush1.bf16.msra.mxu0 0
        %5257 = vmatprep.subr.bf16.mxu0 0
        %5258 = vmatpush1.bf16.msra.mxu0 0
        %5259 = vmatprep.subr.bf16.mxu0 0
        %5260 = vmatpush1.bf16.msra.mxu0 0
        %5261 = vmatprep.subr.bf16.mxu0 0
        %5262 = vmatpush1.bf16.msra.mxu0 0
        %5263 = vmatprep.subr.bf16.mxu0 0
        %5264 = vmatpush1.bf16.msra.mxu0 0
        %5265 = vmatprep.subr.bf16.mxu0 0
        %5266 = vmatpush1.bf16.msra.mxu0 0
        %5267 = vmatprep.subr.bf16.mxu0 0
        %5268 = vmatpush1.bf16.msra.mxu0 0
        %5269 = vmatprep.subr.bf16.mxu0 0
        %5270 = vmatpush1.bf16.msra.mxu0 0
        %5271 = vmatprep.mubr.bf16.mxu0 0
        %5272 = vmatmul.mubr.bf16.gmra.mrb[0].mxu0 %v1317
        %v5273 = vpop.f32.mrb[0].mxu0
        %v5274 = vadd.f32 %v5102, %v5273
        %v5275 = vpop.f32.mrb[0].mxu0
        %v5276 = vadd.f32 %v5104, %v5275
        %v5277 = vpop.f32.mrb[0].mxu0
        %v5278 = vadd.f32 %v5106, %v5277
        %v5279 = vpop.f32.mrb[0].mxu0
        %v5280 = vadd.f32 %v5108, %v5279
        %5281 = vdwg.mxu0
        %5282 = vmatprep.subr.bf16.mxu0 %v1900
        %5283 = vmatpush1.bf16.msra.mxu0 %v1899
        %5284 = vmatprep.subr.bf16.mxu0 %v1908
        %5285 = vmatpush1.bf16.msra.mxu0 %v1907
        %5286 = vmatprep.subr.bf16.mxu0 %v1916
        %5287 = vmatpush1.bf16.msra.mxu0 %v1915
        %5288 = vmatprep.subr.bf16.mxu0 %v1924
        %5289 = vmatpush1.bf16.msra.mxu0 %v1923
        %5290 = vmatprep.subr.bf16.mxu0 %v1932
        %5291 = vmatpush1.bf16.msra.mxu0 %v1931
        %5292 = vmatprep.subr.bf16.mxu0 %v1940
        %5293 = vmatpush1.bf16.msra.mxu0 %v1939
        %5294 = vmatprep.subr.bf16.mxu0 %v1948
        %5295 = vmatpush1.bf16.msra.mxu0 %v1947
        %5296 = vmatprep.subr.bf16.mxu0 %v1956
        %5297 = vmatpush1.bf16.msra.mxu0 %v1955
        %5298 = vmatprep.subr.bf16.mxu0 0
        %5299 = vmatpush1.bf16.msra.mxu0 0
        %5300 = vmatprep.subr.bf16.mxu0 0
        %5301 = vmatpush1.bf16.msra.mxu0 0
        %5302 = vmatprep.subr.bf16.mxu0 0
        %5303 = vmatpush1.bf16.msra.mxu0 0
        %5304 = vmatprep.subr.bf16.mxu0 0
        %5305 = vmatpush1.bf16.msra.mxu0 0
        %5306 = vmatprep.subr.bf16.mxu0 0
        %5307 = vmatpush1.bf16.msra.mxu0 0
        %5308 = vmatprep.subr.bf16.mxu0 0
        %5309 = vmatpush1.bf16.msra.mxu0 0
        %5310 = vmatprep.subr.bf16.mxu0 0
        %5311 = vmatpush1.bf16.msra.mxu0 0
        %5312 = vmatprep.subr.bf16.mxu0 0
        %5313 = vmatpush1.bf16.msra.mxu0 0
        %5314 = vmatprep.mubr.bf16.mxu0 0
        %5315 = vmatmul.mubr.bf16.gmra.mrb[0].mxu0 %v1317
        %v5316 = vpop.f32.mrb[0].mxu0
        %v5317 = vadd.f32 %v5145, %v5316
        %v5318 = vpop.f32.mrb[0].mxu0
        %v5319 = vadd.f32 %v5147, %v5318
        %v5320 = vpop.f32.mrb[0].mxu0
        %v5321 = vadd.f32 %v5149, %v5320
        %v5322 = vpop.f32.mrb[0].mxu0
        %v5323 = vadd.f32 %v5151, %v5322
        %5324 = vdwg.mxu0
        %5325 = vmatprep.subr.bf16.mxu0 %v1902
        %5326 = vmatpush1.bf16.msra.mxu0 %v1901
        %5327 = vmatprep.subr.bf16.mxu0 %v1910
        %5328 = vmatpush1.bf16.msra.mxu0 %v1909
        %5329 = vmatprep.subr.bf16.mxu0 %v1918
        %5330 = vmatpush1.bf16.msra.mxu0 %v1917
        %5331 = vmatprep.subr.bf16.mxu0 %v1926
        %5332 = vmatpush1.bf16.msra.mxu0 %v1925
        %5333 = vmatprep.subr.bf16.mxu0 %v1934
        %5334 = vmatpush1.bf16.msra.mxu0 %v1933
        %5335 = vmatprep.subr.bf16.mxu0 %v1942
        %5336 = vmatpush1.bf16.msra.mxu0 %v1941
        %5337 = vmatprep.subr.bf16.mxu0 %v1950
        %5338 = vmatpush1.bf16.msra.mxu0 %v1949
        %5339 = vmatprep.subr.bf16.mxu0 %v1958
        %5340 = vmatpush1.bf16.msra.mxu0 %v1957
        %5341 = vmatprep.subr.bf16.mxu0 0
        %5342 = vmatpush1.bf16.msra.mxu0 0
        %5343 = vmatprep.subr.bf16.mxu0 0
        %5344 = vmatpush1.bf16.msra.mxu0 0
        %5345 = vmatprep.subr.bf16.mxu0 0
        %5346 = vmatpush1.bf16.msra.mxu0 0
        %5347 = vmatprep.subr.bf16.mxu0 0
        %5348 = vmatpush1.bf16.msra.mxu0 0
        %5349 = vmatprep.subr.bf16.mxu0 0
        %5350 = vmatpush1.bf16.msra.mxu0 0
        %5351 = vmatprep.subr.bf16.mxu0 0
        %5352 = vmatpush1.bf16.msra.mxu0 0
        %5353 = vmatprep.subr.bf16.mxu0 0
        %5354 = vmatpush1.bf16.msra.mxu0 0
        %5355 = vmatprep.subr.bf16.mxu0 0
        %5356 = vmatpush1.bf16.msra.mxu0 0
        %5357 = vmatprep.mubr.bf16.mxu0 0
        %5358 = vmatmul.mubr.bf16.gmra.mrb[0].mxu0 %v1317
        %v5359 = vpop.f32.mrb[0].mxu0
        %v5360 = vadd.f32 %v5188, %v5359
        %v5361 = vpop.f32.mrb[0].mxu0
        %v5362 = vadd.f32 %v5190, %v5361
        %v5363 = vpop.f32.mrb[0].mxu0
        %v5364 = vadd.f32 %v5192, %v5363
        %v5365 = vpop.f32.mrb[0].mxu0
        %v5366 = vadd.f32 %v5194, %v5365
        %5367 = vdwg.mxu0
        %5368 = vmatprep.subr.bf16.mxu0 %v1904
        %5369 = vmatpush1.bf16.msra.mxu0 %v1903
        %5370 = vmatprep.subr.bf16.mxu0 %v1912
        %5371 = vmatpush1.bf16.msra.mxu0 %v1911
        %5372 = vmatprep.subr.bf16.mxu0 %v1920
        %5373 = vmatpush1.bf16.msra.mxu0 %v1919
        %5374 = vmatprep.subr.bf16.mxu0 %v1928
        %5375 = vmatpush1.bf16.msra.mxu0 %v1927
        %5376 = vmatprep.subr.bf16.mxu0 %v1936
        %5377 = vmatpush1.bf16.msra.mxu0 %v1935
        %5378 = vmatprep.subr.bf16.mxu0 %v1944
        %5379 = vmatpush1.bf16.msra.mxu0 %v1943
        %5380 = vmatprep.subr.bf16.mxu0 %v1952
        %5381 = vmatpush1.bf16.msra.mxu0 %v1951
        %5382 = vmatprep.subr.bf16.mxu0 %v1960
        %5383 = vmatpush1.bf16.msra.mxu0 %v1959
        %5384 = vmatprep.subr.bf16.mxu0 0
        %5385 = vmatpush1.bf16.msra.mxu0 0
        %5386 = vmatprep.subr.bf16.mxu0 0
        %5387 = vmatpush1.bf16.msra.mxu0 0
        %5388 = vmatprep.subr.bf16.mxu0 0
        %5389 = vmatpush1.bf16.msra.mxu0 0
        %5390 = vmatprep.subr.bf16.mxu0 0
        %5391 = vmatpush1.bf16.msra.mxu0 0
        %5392 = vmatprep.subr.bf16.mxu0 0
        %5393 = vmatpush1.bf16.msra.mxu0 0
        %5394 = vmatprep.subr.bf16.mxu0 0
        %5395 = vmatpush1.bf16.msra.mxu0 0
        %5396 = vmatprep.subr.bf16.mxu0 0
        %5397 = vmatpush1.bf16.msra.mxu0 0
        %5398 = vmatprep.subr.bf16.mxu0 0
        %5399 = vmatpush1.bf16.msra.mxu0 0
        %5400 = vmatprep.mubr.bf16.mxu0 0
        %5401 = vmatmul.mubr.bf16.gmra.mrb[0].mxu0 %v1317
        %v5402 = vpop.f32.mrb[0].mxu0
        %v5403 = vadd.f32 %v5231, %v5402
        %v5404 = vpop.f32.mrb[0].mxu0
        %v5405 = vadd.f32 %v5233, %v5404
        %v5406 = vpop.f32.mrb[0].mxu0
        %v5407 = vadd.f32 %v5235, %v5406
        %v5408 = vpop.f32.mrb[0].mxu0
        %v5409 = vadd.f32 %v5237, %v5408
        %5410 = vdwg.mxu0
        %v5411 = vadd.f32 %v5274, %v2201
        %v5412 = vadd.f32 %v5276, %v2205
        %v5413 = vadd.f32 %v5317, %v2209
        %v5414 = vadd.f32 %v5319, %v2213
        %v5415 = vadd.f32 %v5360, %v2217
        %v5416 = vadd.f32 %v5362, %v2221
        %v5417 = vadd.f32 %v5403, %v2225
        %v5418 = vadd.f32 %v5405, %v2229
        %v5419 = vadd.f32 %v5278, %v2201
        %v5420 = vadd.f32 %v5280, %v2205
        %v5421 = vadd.f32 %v5321, %v2209
        %v5422 = vadd.f32 %v5323, %v2213
        %v5423 = vadd.f32 %v5364, %v2217
        %v5424 = vadd.f32 %v5366, %v2221
        %v5425 = vadd.f32 %v5407, %v2225
        %v5426 = vadd.f32 %v5409, %v2229
        %v5427 = vpack.c.bf16 %v5419, %v5411
        %v5428 = vpack.c.bf16 %v5420, %v5412
        %v5429 = vpack.c.bf16 %v5421, %v5413
        %v5430 = vpack.c.bf16 %v5422, %v5414
        %v5431 = vpack.c.bf16 %v5423, %v5415
        %v5432 = vpack.c.bf16 %v5424, %v5416
        %v5433 = vpack.c.bf16 %v5425, %v5417
        %v5434 = vpack.c.bf16 %v5426, %v5418
        %s5435 = scalar_lea.vmem %s7, 1536
        %v5436 = vld [vmem:[%s5435] sm:$0xf]
        %v5437 = vld [vmem:[%s5435 + $0x4] sm:$0xf]
        %v5438 = vld [vmem:[%s5435 + $0x8] sm:$0xf]
        %v5439 = vld [vmem:[%s5435 + $0xc] sm:$0xf]
        %v5440 = vld [vmem:[%s5435 + $0x10] sm:$0xf]
        %v5441 = vld [vmem:[%s5435 + $0x14] sm:$0xf]
        %v5442 = vld [vmem:[%s5435 + $0x18] sm:$0xf]
        %v5443 = vld [vmem:[%s5435 + $0x1c] sm:$0xf]
        %v5444 = vld [vmem:[%s5435 + $0x20] sm:$0xf]
        %v5445 = vld [vmem:[%s5435 + $0x24] sm:$0xf]
        %v5446 = vld [vmem:[%s5435 + $0x28] sm:$0xf]
        %v5447 = vld [vmem:[%s5435 + $0x2c] sm:$0xf]
        %v5448 = vld [vmem:[%s5435 + $0x30] sm:$0xf]
        %v5449 = vld [vmem:[%s5435 + $0x34] sm:$0xf]
        %v5450 = vld [vmem:[%s5435 + $0x38] sm:$0xf]
        %v5451 = vld [vmem:[%s5435 + $0x3c] sm:$0xf]
        %v5452 = vld [vmem:[%s5435 + $0x40] sm:$0xf]
        %v5453 = vld [vmem:[%s5435 + $0x44] sm:$0xf]
        %v5454 = vld [vmem:[%s5435 + $0x48] sm:$0xf]
        %v5455 = vld [vmem:[%s5435 + $0x4c] sm:$0xf]
        %v5456 = vld [vmem:[%s5435 + $0x50] sm:$0xf]
        %v5457 = vld [vmem:[%s5435 + $0x54] sm:$0xf]
        %v5458 = vld [vmem:[%s5435 + $0x58] sm:$0xf]
        %v5459 = vld [vmem:[%s5435 + $0x5c] sm:$0xf]
        %v5460 = vld [vmem:[%s5435 + $0x60] sm:$0xf]
        %v5461 = vld [vmem:[%s5435 + $0x64] sm:$0xf]
        %v5462 = vld [vmem:[%s5435 + $0x68] sm:$0xf]
        %v5463 = vld [vmem:[%s5435 + $0x6c] sm:$0xf]
        %v5464 = vld [vmem:[%s5435 + $0x70] sm:$0xf]
        %v5465 = vld [vmem:[%s5435 + $0x74] sm:$0xf]
        %v5466 = vld [vmem:[%s5435 + $0x78] sm:$0xf]
        %v5467 = vld [vmem:[%s5435 + $0x7c] sm:$0xf]
        %v5468 = vld [vmem:[%s5435 + $0x80] sm:$0xf]
        %v5469 = vld [vmem:[%s5435 + $0x84] sm:$0xf]
        %v5470 = vld [vmem:[%s5435 + $0x88] sm:$0xf]
        %v5471 = vld [vmem:[%s5435 + $0x8c] sm:$0xf]
        %v5472 = vld [vmem:[%s5435 + $0x90] sm:$0xf]
        %v5473 = vld [vmem:[%s5435 + $0x94] sm:$0xf]
        %v5474 = vld [vmem:[%s5435 + $0x98] sm:$0xf]
        %v5475 = vld [vmem:[%s5435 + $0x9c] sm:$0xf]
        %v5476 = vld [vmem:[%s5435 + $0xa0] sm:$0xf]
        %v5477 = vld [vmem:[%s5435 + $0xa4] sm:$0xf]
        %v5478 = vld [vmem:[%s5435 + $0xa8] sm:$0xf]
        %v5479 = vld [vmem:[%s5435 + $0xac] sm:$0xf]
        %v5480 = vld [vmem:[%s5435 + $0xb0] sm:$0xf]
        %v5481 = vld [vmem:[%s5435 + $0xb4] sm:$0xf]
        %v5482 = vld [vmem:[%s5435 + $0xb8] sm:$0xf]
        %v5483 = vld [vmem:[%s5435 + $0xbc] sm:$0xf]
        %v5484 = vld [vmem:[%s5435 + $0xc0] sm:$0xf]
        %v5485 = vld [vmem:[%s5435 + $0xc4] sm:$0xf]
        %v5486 = vld [vmem:[%s5435 + $0xc8] sm:$0xf]
        %v5487 = vld [vmem:[%s5435 + $0xcc] sm:$0xf]
        %v5488 = vld [vmem:[%s5435 + $0xd0] sm:$0xf]
        %v5489 = vld [vmem:[%s5435 + $0xd4] sm:$0xf]
        %v5490 = vld [vmem:[%s5435 + $0xd8] sm:$0xf]
        %v5491 = vld [vmem:[%s5435 + $0xdc] sm:$0xf]
        %v5492 = vld [vmem:[%s5435 + $0xe0] sm:$0xf]
        %v5493 = vld [vmem:[%s5435 + $0xe4] sm:$0xf]
        %v5494 = vld [vmem:[%s5435 + $0xe8] sm:$0xf]
        %v5495 = vld [vmem:[%s5435 + $0xec] sm:$0xf]
        %v5496 = vld [vmem:[%s5435 + $0xf0] sm:$0xf]
        %v5497 = vld [vmem:[%s5435 + $0xf4] sm:$0xf]
        %v5498 = vld [vmem:[%s5435 + $0xf8] sm:$0xf]
        %v5499 = vld [vmem:[%s5435 + $0xfc] sm:$0xf]
        %v5500 = vld [vmem:[%s5435 + $0x100] sm:$0xf]
        %v5501 = vld [vmem:[%s5435 + $0x104] sm:$0xf]
        %v5502 = vld [vmem:[%s5435 + $0x108] sm:$0xf]
        %v5503 = vld [vmem:[%s5435 + $0x10c] sm:$0xf]
        %v5504 = vld [vmem:[%s5435 + $0x110] sm:$0xf]
        %v5505 = vld [vmem:[%s5435 + $0x114] sm:$0xf]
        %v5506 = vld [vmem:[%s5435 + $0x118] sm:$0xf]
        %v5507 = vld [vmem:[%s5435 + $0x11c] sm:$0xf]
        %v5508 = vld [vmem:[%s5435 + $0x120] sm:$0xf]
        %v5509 = vld [vmem:[%s5435 + $0x124] sm:$0xf]
        %v5510 = vld [vmem:[%s5435 + $0x128] sm:$0xf]
        %v5511 = vld [vmem:[%s5435 + $0x12c] sm:$0xf]
        %v5512 = vld [vmem:[%s5435 + $0x130] sm:$0xf]
        %v5513 = vld [vmem:[%s5435 + $0x134] sm:$0xf]
        %v5514 = vld [vmem:[%s5435 + $0x138] sm:$0xf]
        %v5515 = vld [vmem:[%s5435 + $0x13c] sm:$0xf]
        %v5516 = vld [vmem:[%s5435 + $0x140] sm:$0xf]
        %v5517 = vld [vmem:[%s5435 + $0x144] sm:$0xf]
        %v5518 = vld [vmem:[%s5435 + $0x148] sm:$0xf]
        %v5519 = vld [vmem:[%s5435 + $0x14c] sm:$0xf]
        %v5520 = vld [vmem:[%s5435 + $0x150] sm:$0xf]
        %v5521 = vld [vmem:[%s5435 + $0x154] sm:$0xf]
        %v5522 = vld [vmem:[%s5435 + $0x158] sm:$0xf]
        %v5523 = vld [vmem:[%s5435 + $0x15c] sm:$0xf]
        %v5524 = vld [vmem:[%s5435 + $0x160] sm:$0xf]
        %v5525 = vld [vmem:[%s5435 + $0x164] sm:$0xf]
        %v5526 = vld [vmem:[%s5435 + $0x168] sm:$0xf]
        %v5527 = vld [vmem:[%s5435 + $0x16c] sm:$0xf]
        %v5528 = vld [vmem:[%s5435 + $0x170] sm:$0xf]
        %v5529 = vld [vmem:[%s5435 + $0x174] sm:$0xf]
        %v5530 = vld [vmem:[%s5435 + $0x178] sm:$0xf]
        %v5531 = vld [vmem:[%s5435 + $0x17c] sm:$0xf]
        %v5532 = vld [vmem:[%s5435 + $0x180] sm:$0xf]
        %v5533 = vld [vmem:[%s5435 + $0x184] sm:$0xf]
        %v5534 = vld [vmem:[%s5435 + $0x188] sm:$0xf]
        %v5535 = vld [vmem:[%s5435 + $0x18c] sm:$0xf]
        %v5536 = vld [vmem:[%s5435 + $0x190] sm:$0xf]
        %v5537 = vld [vmem:[%s5435 + $0x194] sm:$0xf]
        %v5538 = vld [vmem:[%s5435 + $0x198] sm:$0xf]
        %v5539 = vld [vmem:[%s5435 + $0x19c] sm:$0xf]
        %v5540 = vld [vmem:[%s5435 + $0x1a0] sm:$0xf]
        %v5541 = vld [vmem:[%s5435 + $0x1a4] sm:$0xf]
        %v5542 = vld [vmem:[%s5435 + $0x1a8] sm:$0xf]
        %v5543 = vld [vmem:[%s5435 + $0x1ac] sm:$0xf]
        %v5544 = vld [vmem:[%s5435 + $0x1b0] sm:$0xf]
        %v5545 = vld [vmem:[%s5435 + $0x1b4] sm:$0xf]
        %v5546 = vld [vmem:[%s5435 + $0x1b8] sm:$0xf]
        %v5547 = vld [vmem:[%s5435 + $0x1bc] sm:$0xf]
        %v5548 = vld [vmem:[%s5435 + $0x1c0] sm:$0xf]
        %v5549 = vld [vmem:[%s5435 + $0x1c4] sm:$0xf]
        %v5550 = vld [vmem:[%s5435 + $0x1c8] sm:$0xf]
        %v5551 = vld [vmem:[%s5435 + $0x1cc] sm:$0xf]
        %v5552 = vld [vmem:[%s5435 + $0x1d0] sm:$0xf]
        %v5553 = vld [vmem:[%s5435 + $0x1d4] sm:$0xf]
        %v5554 = vld [vmem:[%s5435 + $0x1d8] sm:$0xf]
        %v5555 = vld [vmem:[%s5435 + $0x1dc] sm:$0xf]
        %v5556 = vld [vmem:[%s5435 + $0x1e0] sm:$0xf]
        %v5557 = vld [vmem:[%s5435 + $0x1e4] sm:$0xf]
        %v5558 = vld [vmem:[%s5435 + $0x1e8] sm:$0xf]
        %v5559 = vld [vmem:[%s5435 + $0x1ec] sm:$0xf]
        %v5560 = vld [vmem:[%s5435 + $0x1f0] sm:$0xf]
        %v5561 = vld [vmem:[%s5435 + $0x1f4] sm:$0xf]
        %v5562 = vld [vmem:[%s5435 + $0x1f8] sm:$0xf]
        %v5563 = vld [vmem:[%s5435 + $0x1fc] sm:$0xf]
        %v5692 = vunpack.c.l.b16 %v5436
        %v5693 = vunpack.c.l.b16 %v5437
        %v5694 = vunpack.c.l.b16 %v5438
        %v5695 = vunpack.c.l.b16 %v5439
        %v5696 = vunpack.c.l.b16 %v5440
        %v5697 = vunpack.c.l.b16 %v5441
        %v5698 = vunpack.c.l.b16 %v5442
        %v5699 = vunpack.c.l.b16 %v5443
        %v5700 = vunpack.c.l.b16 %v5444
        %v5701 = vunpack.c.l.b16 %v5445
        %v5702 = vunpack.c.l.b16 %v5446
        %v5703 = vunpack.c.l.b16 %v5447
        %v5704 = vunpack.c.l.b16 %v5448
        %v5705 = vunpack.c.l.b16 %v5449
        %v5706 = vunpack.c.l.b16 %v5450
        %v5707 = vunpack.c.l.b16 %v5451
        %v5708 = vunpack.c.l.b16 %v5452
        %v5709 = vunpack.c.l.b16 %v5453
        %v5710 = vunpack.c.l.b16 %v5454
        %v5711 = vunpack.c.l.b16 %v5455
        %v5712 = vunpack.c.l.b16 %v5456
        %v5713 = vunpack.c.l.b16 %v5457
        %v5714 = vunpack.c.l.b16 %v5458
        %v5715 = vunpack.c.l.b16 %v5459
        %v5716 = vunpack.c.l.b16 %v5460
        %v5717 = vunpack.c.l.b16 %v5461
        %v5718 = vunpack.c.l.b16 %v5462
        %v5719 = vunpack.c.l.b16 %v5463
        %v5720 = vunpack.c.l.b16 %v5464
        %v5721 = vunpack.c.l.b16 %v5465
        %v5722 = vunpack.c.l.b16 %v5466
        %v5723 = vunpack.c.l.b16 %v5467
        %v5724 = vunpack.c.l.b16 %v5468
        %v5725 = vunpack.c.l.b16 %v5469
        %v5726 = vunpack.c.l.b16 %v5470
        %v5727 = vunpack.c.l.b16 %v5471
        %v5728 = vunpack.c.l.b16 %v5472
        %v5729 = vunpack.c.l.b16 %v5473
        %v5730 = vunpack.c.l.b16 %v5474
        %v5731 = vunpack.c.l.b16 %v5475
        %v5732 = vunpack.c.l.b16 %v5476
        %v5733 = vunpack.c.l.b16 %v5477
        %v5734 = vunpack.c.l.b16 %v5478
        %v5735 = vunpack.c.l.b16 %v5479
        %v5736 = vunpack.c.l.b16 %v5480
        %v5737 = vunpack.c.l.b16 %v5481
        %v5738 = vunpack.c.l.b16 %v5482
        %v5739 = vunpack.c.l.b16 %v5483
        %v5740 = vunpack.c.l.b16 %v5484
        %v5741 = vunpack.c.l.b16 %v5485
        %v5742 = vunpack.c.l.b16 %v5486
        %v5743 = vunpack.c.l.b16 %v5487
        %v5744 = vunpack.c.l.b16 %v5488
        %v5745 = vunpack.c.l.b16 %v5489
        %v5746 = vunpack.c.l.b16 %v5490
        %v5747 = vunpack.c.l.b16 %v5491
        %v5748 = vunpack.c.l.b16 %v5492
        %v5749 = vunpack.c.l.b16 %v5493
        %v5750 = vunpack.c.l.b16 %v5494
        %v5751 = vunpack.c.l.b16 %v5495
        %v5752 = vunpack.c.l.b16 %v5496
        %v5753 = vunpack.c.l.b16 %v5497
        %v5754 = vunpack.c.l.b16 %v5498
        %v5755 = vunpack.c.l.b16 %v5499
        %v5756 = vunpack.c.l.b16 %v5500
        %v5757 = vunpack.c.l.b16 %v5501
        %v5758 = vunpack.c.l.b16 %v5502
        %v5759 = vunpack.c.l.b16 %v5503
        %v5760 = vunpack.c.l.b16 %v5504
        %v5761 = vunpack.c.l.b16 %v5505
        %v5762 = vunpack.c.l.b16 %v5506
        %v5763 = vunpack.c.l.b16 %v5507
        %v5764 = vunpack.c.l.b16 %v5508
        %v5765 = vunpack.c.l.b16 %v5509
        %v5766 = vunpack.c.l.b16 %v5510
        %v5767 = vunpack.c.l.b16 %v5511
        %v5768 = vunpack.c.l.b16 %v5512
        %v5769 = vunpack.c.l.b16 %v5513
        %v5770 = vunpack.c.l.b16 %v5514
        %v5771 = vunpack.c.l.b16 %v5515
        %v5772 = vunpack.c.l.b16 %v5516
        %v5773 = vunpack.c.l.b16 %v5517
        %v5774 = vunpack.c.l.b16 %v5518
        %v5775 = vunpack.c.l.b16 %v5519
        %v5776 = vunpack.c.l.b16 %v5520
        %v5777 = vunpack.c.l.b16 %v5521
        %v5778 = vunpack.c.l.b16 %v5522
        %v5779 = vunpack.c.l.b16 %v5523
        %v5780 = vunpack.c.l.b16 %v5524
        %v5781 = vunpack.c.l.b16 %v5525
        %v5782 = vunpack.c.l.b16 %v5526
        %v5783 = vunpack.c.l.b16 %v5527
        %v5784 = vunpack.c.l.b16 %v5528
        %v5785 = vunpack.c.l.b16 %v5529
        %v5786 = vunpack.c.l.b16 %v5530
        %v5787 = vunpack.c.l.b16 %v5531
        %v5788 = vunpack.c.l.b16 %v5532
        %v5789 = vunpack.c.l.b16 %v5533
        %v5790 = vunpack.c.l.b16 %v5534
        %v5791 = vunpack.c.l.b16 %v5535
        %v5792 = vunpack.c.l.b16 %v5536
        %v5793 = vunpack.c.l.b16 %v5537
        %v5794 = vunpack.c.l.b16 %v5538
        %v5795 = vunpack.c.l.b16 %v5539
        %v5796 = vunpack.c.l.b16 %v5540
        %v5797 = vunpack.c.l.b16 %v5541
        %v5798 = vunpack.c.l.b16 %v5542
        %v5799 = vunpack.c.l.b16 %v5543
        %v5800 = vunpack.c.l.b16 %v5544
        %v5801 = vunpack.c.l.b16 %v5545
        %v5802 = vunpack.c.l.b16 %v5546
        %v5803 = vunpack.c.l.b16 %v5547
        %v5804 = vunpack.c.l.b16 %v5548
        %v5805 = vunpack.c.l.b16 %v5549
        %v5806 = vunpack.c.l.b16 %v5550
        %v5807 = vunpack.c.l.b16 %v5551
        %v5808 = vunpack.c.l.b16 %v5552
        %v5809 = vunpack.c.l.b16 %v5553
        %v5810 = vunpack.c.l.b16 %v5554
        %v5811 = vunpack.c.l.b16 %v5555
        %v5812 = vunpack.c.l.b16 %v5556
        %v5813 = vunpack.c.l.b16 %v5557
        %v5814 = vunpack.c.l.b16 %v5558
        %v5815 = vunpack.c.l.b16 %v5559
        %v5816 = vunpack.c.l.b16 %v5560
        %v5817 = vunpack.c.l.b16 %v5561
        %v5818 = vunpack.c.l.b16 %v5562
        %v5819 = vunpack.c.l.b16 %v5563
        %v5820 = vpack.c.b16 %v5693, %v5692
        %v5821 = vpack.c.b16 %v5695, %v5694
        %v5822 = vpack.c.b16 %v5697, %v5696
        %v5823 = vpack.c.b16 %v5699, %v5698
        %v5824 = vpack.c.b16 %v5701, %v5700
        %v5825 = vpack.c.b16 %v5703, %v5702
        %v5826 = vpack.c.b16 %v5705, %v5704
        %v5827 = vpack.c.b16 %v5707, %v5706
        %v5828 = vpack.c.b16 %v5709, %v5708
        %v5829 = vpack.c.b16 %v5711, %v5710
        %v5830 = vpack.c.b16 %v5713, %v5712
        %v5831 = vpack.c.b16 %v5715, %v5714
        %v5832 = vpack.c.b16 %v5717, %v5716
        %v5833 = vpack.c.b16 %v5719, %v5718
        %v5834 = vpack.c.b16 %v5721, %v5720
        %v5835 = vpack.c.b16 %v5723, %v5722
        %v5836 = vpack.c.b16 %v5725, %v5724
        %v5837 = vpack.c.b16 %v5727, %v5726
        %v5838 = vpack.c.b16 %v5729, %v5728
        %v5839 = vpack.c.b16 %v5731, %v5730
        %v5840 = vpack.c.b16 %v5733, %v5732
        %v5841 = vpack.c.b16 %v5735, %v5734
        %v5842 = vpack.c.b16 %v5737, %v5736
        %v5843 = vpack.c.b16 %v5739, %v5738
        %v5844 = vpack.c.b16 %v5741, %v5740
        %v5845 = vpack.c.b16 %v5743, %v5742
        %v5846 = vpack.c.b16 %v5745, %v5744
        %v5847 = vpack.c.b16 %v5747, %v5746
        %v5848 = vpack.c.b16 %v5749, %v5748
        %v5849 = vpack.c.b16 %v5751, %v5750
        %v5850 = vpack.c.b16 %v5753, %v5752
        %v5851 = vpack.c.b16 %v5755, %v5754
        %v5852 = vpack.c.b16 %v5757, %v5756
        %v5853 = vpack.c.b16 %v5759, %v5758
        %v5854 = vpack.c.b16 %v5761, %v5760
        %v5855 = vpack.c.b16 %v5763, %v5762
        %v5856 = vpack.c.b16 %v5765, %v5764
        %v5857 = vpack.c.b16 %v5767, %v5766
        %v5858 = vpack.c.b16 %v5769, %v5768
        %v5859 = vpack.c.b16 %v5771, %v5770
        %v5860 = vpack.c.b16 %v5773, %v5772
        %v5861 = vpack.c.b16 %v5775, %v5774
        %v5862 = vpack.c.b16 %v5777, %v5776
        %v5863 = vpack.c.b16 %v5779, %v5778
        %v5864 = vpack.c.b16 %v5781, %v5780
        %v5865 = vpack.c.b16 %v5783, %v5782
        %v5866 = vpack.c.b16 %v5785, %v5784
        %v5867 = vpack.c.b16 %v5787, %v5786
        %v5868 = vpack.c.b16 %v5789, %v5788
        %v5869 = vpack.c.b16 %v5791, %v5790
        %v5870 = vpack.c.b16 %v5793, %v5792
        %v5871 = vpack.c.b16 %v5795, %v5794
        %v5872 = vpack.c.b16 %v5797, %v5796
        %v5873 = vpack.c.b16 %v5799, %v5798
        %v5874 = vpack.c.b16 %v5801, %v5800
        %v5875 = vpack.c.b16 %v5803, %v5802
        %v5876 = vpack.c.b16 %v5805, %v5804
        %v5877 = vpack.c.b16 %v5807, %v5806
        %v5878 = vpack.c.b16 %v5809, %v5808
        %v5879 = vpack.c.b16 %v5811, %v5810
        %v5880 = vpack.c.b16 %v5813, %v5812
        %v5881 = vpack.c.b16 %v5815, %v5814
        %v5882 = vpack.c.b16 %v5817, %v5816
        %v5883 = vpack.c.b16 %v5819, %v5818
        %5948 = vmatprep.subr.bf16.mxu0 0
        %5949 = vmatpush1.bf16.msra.mxu0 %v5820
        %5950 = vmatprep.subr.bf16.mxu0 0
        %5951 = vmatpush1.bf16.msra.mxu0 %v5821
        %5952 = vmatprep.subr.bf16.mxu0 0
        %5953 = vmatpush1.bf16.msra.mxu0 %v5822
        %5954 = vmatprep.subr.bf16.mxu0 0
        %5955 = vmatpush1.bf16.msra.mxu0 %v5823
        %5956 = vmatprep.subr.bf16.mxu0 0
        %5957 = vmatpush1.bf16.msra.mxu0 %v5824
        %5958 = vmatprep.subr.bf16.mxu0 0
        %5959 = vmatpush1.bf16.msra.mxu0 %v5825
        %5960 = vmatprep.subr.bf16.mxu0 0
        %5961 = vmatpush1.bf16.msra.mxu0 %v5826
        %5962 = vmatprep.subr.bf16.mxu0 0
        %5963 = vmatpush1.bf16.msra.mxu0 %v5827
        %5964 = vmatprep.subr.bf16.mxu0 0
        %5965 = vmatpush1.bf16.msra.mxu0 %v5828
        %5966 = vmatprep.subr.bf16.mxu0 0
        %5967 = vmatpush1.bf16.msra.mxu0 %v5829
        %5968 = vmatprep.subr.bf16.mxu0 0
        %5969 = vmatpush1.bf16.msra.mxu0 %v5830
        %5970 = vmatprep.subr.bf16.mxu0 0
        %5971 = vmatpush1.bf16.msra.mxu0 %v5831
        %5972 = vmatprep.subr.bf16.mxu0 0
        %5973 = vmatpush1.bf16.msra.mxu0 %v5832
        %5974 = vmatprep.subr.bf16.mxu0 0
        %5975 = vmatpush1.bf16.msra.mxu0 %v5833
        %5976 = vmatprep.subr.bf16.mxu0 0
        %5977 = vmatpush1.bf16.msra.mxu0 %v5834
        %5978 = vmatprep.subr.bf16.mxu0 0
        %5979 = vmatpush1.bf16.msra.mxu0 %v5835
        %5980 = vmatprep.mubr.bf16.mxu0 %v5428
        %5981 = vmatmul.mubr.bf16.gmra.mrb[0].mxu0 %v5427
        %v5982 = vpop.f32.mrb[0].mxu0
        %v5983 = vadd.f32 0.0, %v5982
        %v5984 = vpop.f32.mrb[0].mxu0
        %v5985 = vpop.f32.mrb[0].mxu0
        %v5986 = vadd.f32 0.0, %v5985
        %v5987 = vpop.f32.mrb[0].mxu0
        %5988 = vdwg.mxu0
        %5989 = vmatprep.subr.bf16.mxu0 0
        %5990 = vmatpush1.bf16.msra.mxu0 %v5836
        %5991 = vmatprep.subr.bf16.mxu0 0
        %5992 = vmatpush1.bf16.msra.mxu0 %v5837
        %5993 = vmatprep.subr.bf16.mxu0 0
        %5994 = vmatpush1.bf16.msra.mxu0 %v5838
        %5995 = vmatprep.subr.bf16.mxu0 0
        %5996 = vmatpush1.bf16.msra.mxu0 %v5839
        %5997 = vmatprep.subr.bf16.mxu0 0
        %5998 = vmatpush1.bf16.msra.mxu0 %v5840
        %5999 = vmatprep.subr.bf16.mxu0 0
        %6000 = vmatpush1.bf16.msra.mxu0 %v5841
        %6001 = vmatprep.subr.bf16.mxu0 0
        %6002 = vmatpush1.bf16.msra.mxu0 %v5842
        %6003 = vmatprep.subr.bf16.mxu0 0
        %6004 = vmatpush1.bf16.msra.mxu0 %v5843
        %6005 = vmatprep.subr.bf16.mxu0 0
        %6006 = vmatpush1.bf16.msra.mxu0 %v5844
        %6007 = vmatprep.subr.bf16.mxu0 0
        %6008 = vmatpush1.bf16.msra.mxu0 %v5845
        %6009 = vmatprep.subr.bf16.mxu0 0
        %6010 = vmatpush1.bf16.msra.mxu0 %v5846
        %6011 = vmatprep.subr.bf16.mxu0 0
        %6012 = vmatpush1.bf16.msra.mxu0 %v5847
        %6013 = vmatprep.subr.bf16.mxu0 0
        %6014 = vmatpush1.bf16.msra.mxu0 %v5848
        %6015 = vmatprep.subr.bf16.mxu0 0
        %6016 = vmatpush1.bf16.msra.mxu0 %v5849
        %6017 = vmatprep.subr.bf16.mxu0 0
        %6018 = vmatpush1.bf16.msra.mxu0 %v5850
        %6019 = vmatprep.subr.bf16.mxu0 0
        %6020 = vmatpush1.bf16.msra.mxu0 %v5851
        %6021 = vmatprep.mubr.bf16.mxu0 %v5430
        %6022 = vmatmul.mubr.bf16.gmra.mrb[0].mxu0 %v5429
        %v6023 = vpop.f32.mrb[0].mxu0
        %v6024 = vadd.f32 %v5983, %v6023
        %v6025 = vpop.f32.mrb[0].mxu0
        %v6026 = vpop.f32.mrb[0].mxu0
        %v6027 = vadd.f32 %v5986, %v6026
        %v6028 = vpop.f32.mrb[0].mxu0
        %6029 = vdwg.mxu0
        %6030 = vmatprep.subr.bf16.mxu0 0
        %6031 = vmatpush1.bf16.msra.mxu0 %v5852
        %6032 = vmatprep.subr.bf16.mxu0 0
        %6033 = vmatpush1.bf16.msra.mxu0 %v5853
        %6034 = vmatprep.subr.bf16.mxu0 0
        %6035 = vmatpush1.bf16.msra.mxu0 %v5854
        %6036 = vmatprep.subr.bf16.mxu0 0
        %6037 = vmatpush1.bf16.msra.mxu0 %v5855
        %6038 = vmatprep.subr.bf16.mxu0 0
        %6039 = vmatpush1.bf16.msra.mxu0 %v5856
        %6040 = vmatprep.subr.bf16.mxu0 0
        %6041 = vmatpush1.bf16.msra.mxu0 %v5857
        %6042 = vmatprep.subr.bf16.mxu0 0
        %6043 = vmatpush1.bf16.msra.mxu0 %v5858
        %6044 = vmatprep.subr.bf16.mxu0 0
        %6045 = vmatpush1.bf16.msra.mxu0 %v5859
        %6046 = vmatprep.subr.bf16.mxu0 0
        %6047 = vmatpush1.bf16.msra.mxu0 %v5860
        %6048 = vmatprep.subr.bf16.mxu0 0
        %6049 = vmatpush1.bf16.msra.mxu0 %v5861
        %6050 = vmatprep.subr.bf16.mxu0 0
        %6051 = vmatpush1.bf16.msra.mxu0 %v5862
        %6052 = vmatprep.subr.bf16.mxu0 0
        %6053 = vmatpush1.bf16.msra.mxu0 %v5863
        %6054 = vmatprep.subr.bf16.mxu0 0
        %6055 = vmatpush1.bf16.msra.mxu0 %v5864
        %6056 = vmatprep.subr.bf16.mxu0 0
        %6057 = vmatpush1.bf16.msra.mxu0 %v5865
        %6058 = vmatprep.subr.bf16.mxu0 0
        %6059 = vmatpush1.bf16.msra.mxu0 %v5866
        %6060 = vmatprep.subr.bf16.mxu0 0
        %6061 = vmatpush1.bf16.msra.mxu0 %v5867
        %6062 = vmatprep.mubr.bf16.mxu0 %v5432
        %6063 = vmatmul.mubr.bf16.gmra.mrb[0].mxu0 %v5431
        %v6064 = vpop.f32.mrb[0].mxu0
        %v6065 = vadd.f32 %v6024, %v6064
        %v6066 = vpop.f32.mrb[0].mxu0
        %v6067 = vpop.f32.mrb[0].mxu0
        %v6068 = vadd.f32 %v6027, %v6067
        %v6069 = vpop.f32.mrb[0].mxu0
        %6070 = vdwg.mxu0
        %6071 = vmatprep.subr.bf16.mxu0 0
        %6072 = vmatpush1.bf16.msra.mxu0 %v5868
        %6073 = vmatprep.subr.bf16.mxu0 0
        %6074 = vmatpush1.bf16.msra.mxu0 %v5869
        %6075 = vmatprep.subr.bf16.mxu0 0
        %6076 = vmatpush1.bf16.msra.mxu0 %v5870
        %6077 = vmatprep.subr.bf16.mxu0 0
        %6078 = vmatpush1.bf16.msra.mxu0 %v5871
        %6079 = vmatprep.subr.bf16.mxu0 0
        %6080 = vmatpush1.bf16.msra.mxu0 %v5872
        %6081 = vmatprep.subr.bf16.mxu0 0
        %6082 = vmatpush1.bf16.msra.mxu0 %v5873
        %6083 = vmatprep.subr.bf16.mxu0 0
        %6084 = vmatpush1.bf16.msra.mxu0 %v5874
        %6085 = vmatprep.subr.bf16.mxu0 0
        %6086 = vmatpush1.bf16.msra.mxu0 %v5875
        %6087 = vmatprep.subr.bf16.mxu0 0
        %6088 = vmatpush1.bf16.msra.mxu0 %v5876
        %6089 = vmatprep.subr.bf16.mxu0 0
        %6090 = vmatpush1.bf16.msra.mxu0 %v5877
        %6091 = vmatprep.subr.bf16.mxu0 0
        %6092 = vmatpush1.bf16.msra.mxu0 %v5878
        %6093 = vmatprep.subr.bf16.mxu0 0
        %6094 = vmatpush1.bf16.msra.mxu0 %v5879
        %6095 = vmatprep.subr.bf16.mxu0 0
        %6096 = vmatpush1.bf16.msra.mxu0 %v5880
        %6097 = vmatprep.subr.bf16.mxu0 0
        %6098 = vmatpush1.bf16.msra.mxu0 %v5881
        %6099 = vmatprep.subr.bf16.mxu0 0
        %6100 = vmatpush1.bf16.msra.mxu0 %v5882
        %6101 = vmatprep.subr.bf16.mxu0 0
        %6102 = vmatpush1.bf16.msra.mxu0 %v5883
        %6103 = vmatprep.mubr.bf16.mxu0 %v5434
        %6104 = vmatmul.mubr.bf16.gmra.mrb[0].mxu0 %v5433
        %v6105 = vpop.f32.mrb[0].mxu0
        %v6106 = vadd.f32 %v6065, %v6105
        %v6107 = vpop.f32.mrb[0].mxu0
        %v6108 = vpop.f32.mrb[0].mxu0
        %v6109 = vadd.f32 %v6068, %v6108
        %v6110 = vpop.f32.mrb[0].mxu0
        %6111 = vdwg.mxu0
        %v6112 = vadd.f32 %v5054, %v6106
        %v6113 = vadd.f32 %v5055, %v6109
        %6114 = vst.msk [vmem:[%s558] sm:$0xff] %vm1437, %v6112
        %6115 = vst.msk [vmem:[%s558 + $0x8] sm:$0xff] %vm1437, %v6113
        %s6116 = smul.u32 2, %s24
        %p6117 = scmp.lt.s32.totalorder %s6116, 3
        %s6118 = scalar_select %p6117, %s6116, 3
        %s6119 = smul.addr %s6118, 8
        %s6120 = scalar_lea.vmem %s13, %s6119
        // Predicated region
        $region114: #{table_decoder_forward.1} parent=108 // pred_check
          %p6121 = pneg %p330
        $region115: #{table_decoder_forward.1} parent=108 // pred_check_branch
          %6123 = sbr.rel (%p6121) target = $region117
        $region116: #{table_decoder_forward.1} parent=108 // pred_region
          %s6124 = smul.u32 2, %s24
        $region117: #{table_decoder_forward.1} parent=108 // pred_fallthru
          _
      $region109: #{table_decoder_forward.1} parent=5 // pred_fallthru
        _
      %p6125 = scmp.le.s32.totalorder 2, %s19
      // Predicated region
      $region118: #{table_decoder_forward.1} parent=5 // pred_check
        %p6126 = pneg %p6125
      $region119: #{table_decoder_forward.1} parent=5 // pred_check_branch
        %6128 = sbr.rel (%p6126) target = $region121
      $region120: #{table_decoder_forward.1} parent=5 // pred_region
        %s6129 = ssub.s32 %s19, 2
        // Predicated region
        $region122: #{table_decoder_forward.1} parent=120 // pred_check
          %p6130 = pneg %p336
        $region123: #{table_decoder_forward.1} parent=120 // pred_check_branch
          %6132 = sbr.rel (%p6130) target = $region125
        $region124: #{table_decoder_forward.1} parent=120 // pred_region
          %s6133 = smul.u32 2, %s25
          %p6134 = scmp.lt.s32.totalorder %s6133, 3
          %s6135 = scalar_select %p6134, %s6133, 3
          %s6136 = smul.addr %s6135, 8
          %s6137 = scalar_lea.vmem %s13, %s6136
        $region125: #{table_decoder_forward.1} parent=120 // pred_fallthru
          _
      $region121: #{table_decoder_forward.1} parent=5 // pred_fallthru
        _
    $region6: #{table_decoder_forward.1} parent=1 // loop_footer
      %s23 = sadd.s32 1, %s19
    $region7: #{table_decoder_forward.1} parent=1 // loop_footer_branch
      %18 = sbr.rel target = $region3
    $region8: #{table_decoder_forward.1} parent=1 // loop_exit
      _

</llo_original>
